<compile_context>
chip_gen: v7x
topology: tpu7x:2x2x1
jax: 0.10.0
libtpu: 0.0.40
codegen_flags: <defaults>
</compile_context>

<pallas_src>
import math

import jax
import jax.numpy as jnp
import numpy as np
from jax.experimental import pallas as pl
from jax.experimental.pallas import tpu as pltpu


def _round_up(x, m):
    return ((x + m - 1) // m) * m


def resblock_kernel(xp_ref, w0_ref, w1_ref, o_ref, p_ref):
    """Fused residual block for one image (grid iterates over batch).

    xp_ref : (1, H+2, W+2, Cp) f32   spatially zero-padded, channel-padded x
    w0_ref : (9*Cp, Cp)        mxu   im2col weights conv0 (rows: tap-major, cin-minor)
    w1_ref : (9*Cp, Cp)        mxu   im2col weights conv1
    o_ref  : (1, H, W, Cp)     f32   lane-dense output block
    p_ref  : (H+2, W+2, Cp)    mxu   scratch: zero-padded relu(conv0) for conv1
    Biases are identically zero per layer_init_normed, so they are omitted.
    """
    _, Hp, Wp, Cp = xp_ref.shape
    H, W = Hp - 2, Wp - 2
    mxu_dtype = w0_ref.dtype

    # relu(x) once, cast to the MXU operand dtype (zero halo stays zero).
    a0 = jnp.maximum(xp_ref[0], 0.0).astype(mxu_dtype)          # (H+2, W+2, Cp)

    # ---- conv0: im2col -> single deep-K matmul (K = 9*Cp) ----
    im0 = jnp.concatenate(
        [a0[dh:dh + H, dw:dw + W, :].reshape(H * W, Cp)
         for dh in range(3) for dw in range(3)], axis=1)        # (H*W, 9*Cp)
    c0 = jnp.dot(im0, w0_ref[...],
                 preferred_element_type=jnp.float32)            # (H*W, Cp) f32

    # ---- relu(conv0) into the padded scratch; zero ONLY the 1-pixel border.
    zrow = jnp.zeros((1, Wp, Cp), mxu_dtype)
    zcol = jnp.zeros((Hp, 1, Cp), mxu_dtype)
    p_ref[0:1, :, :] = zrow
    p_ref[H + 1:H + 2, :, :] = zrow
    p_ref[:, 0:1, :] = zcol
    p_ref[:, W + 1:W + 2, :] = zcol
    p_ref[1:H + 1, 1:W + 1, :] = (
        jnp.maximum(c0, 0.0).reshape(H, W, Cp).astype(mxu_dtype))

    # ---- conv1: im2col -> single deep-K matmul ----
    im1 = jnp.concatenate(
        [p_ref[dh:dh + H, dw:dw + W, :].reshape(H * W, Cp)
         for dh in range(3) for dw in range(3)], axis=1)        # (H*W, 9*Cp)
    c1 = jnp.dot(im1, w1_ref[...],
                 preferred_element_type=jnp.float32)            # (H*W, Cp) f32

    # ---- residual add in f32 (x re-read from VMEM only here) ----
    x = xp_ref[0, 1:H + 1, 1:W + 1, :]
    o_ref[0] = (c1.reshape(H, W, Cp) + x).astype(o_ref.dtype)


def prep_weight_im2col(w_oihw, cp, dtype):
    """OIHW (cout, cin, 3, 3) -> im2col matrix (9*cp, cp), tap-major rows."""
    cout, cin, kh, kw = w_oihw.shape
    w = jnp.transpose(w_oihw, (2, 3, 1, 0))                     # (3, 3, cin, cout)
    w = jnp.pad(w, ((0, 0), (0, 0), (0, cp - cin), (0, cp - cout)))
    return w.reshape(kh * kw * cp, cp).astype(dtype)


def residual_block_nhwc(x_nhwc, w0_oihw, w1_oihw, *, mxu_dtype=jnp.bfloat16):
    """x_nhwc: (N, H, W, C) float32. Returns (N, H, W, C) float32."""
    N, H, W, C = x_nhwc.shape
    Cp = _round_up(C, 128)                                      # lane-dense channels
    KK = 9

    # One wrapper-side pad: spatial halo of 1 for conv0 + channel pad to Cp.
    xp = jnp.pad(x_nhwc, ((0, 0), (1, 1), (1, 1), (0, Cp - C)))
    w0 = prep_weight_im2col(w0_oihw, Cp, mxu_dtype)
    w1 = prep_weight_im2col(w1_oihw, Cp, mxu_dtype)

    out = pl.pallas_call(
        resblock_kernel,
        out_shape=jax.ShapeDtypeStruct((N, H, W, Cp), x_nhwc.dtype),
        grid=(N,),
        in_specs=[
            pl.BlockSpec((1, H + 2, W + 2, Cp), lambda n: (n, 0, 0, 0)),
            pl.BlockSpec((KK * Cp, Cp), lambda n: (0, 0)),
            pl.BlockSpec((KK * Cp, Cp), lambda n: (0, 0)),
        ],
        out_specs=pl.BlockSpec((1, H, W, Cp), lambda n: (n, 0, 0, 0)),
        scratch_shapes=[pltpu.VMEM((H + 2, W + 2, Cp), mxu_dtype)],
        compiler_params=pltpu.CompilerParams(
            dimension_semantics=("parallel",)),
    )(xp, w0, w1)

    return out[..., :C]


def residual_block(x_nchw, w0_oihw, w1_oihw, *, mxu_dtype=jnp.bfloat16):
    """PyTorch-convention wrapper: x (N, C, H, W), weights OIHW."""
    x = jnp.transpose(x_nchw, (0, 2, 3, 1))
    out = residual_block_nhwc(x, w0_oihw, w1_oihw, mxu_dtype=mxu_dtype)
    return jnp.transpose(out, (0, 3, 1, 2))


def init_conv_weight(key, channels, scale):
    """nn.Conv2d default init + layer_init_normed (bias -> 0). Returns OIHW."""
    fan_in = channels * 3 * 3
    bound = 1.0 / math.sqrt(fan_in)  # PyTorch kaiming_uniform(a=sqrt(5)) bound
    w = jax.random.uniform(key, (channels, channels, 3, 3),
                           dtype=jnp.float32, minval=-bound, maxval=bound)
    norm = jnp.sqrt(jnp.sum(w * w, axis=(1, 2, 3), keepdims=True))
    return w * (math.sqrt(scale) / norm)


def reference_resblock(x_nchw, w0_oihw, w1_oihw):
    """Pure-JAX f32 reference (XLA conv) for validation."""
    x = jnp.transpose(x_nchw, (0, 2, 3, 1))
    w0 = jnp.transpose(w0_oihw, (2, 3, 1, 0))
    w1 = jnp.transpose(w1_oihw, (2, 3, 1, 0))
    dn = jax.lax.conv_dimension_numbers(x.shape, w0.shape,
                                        ("NHWC", "HWIO", "NHWC"))
    h = jax.nn.relu(x)
    h = jax.lax.conv_general_dilated(h, w0, (1, 1), "SAME",
                                     dimension_numbers=dn,
                                     preferred_element_type=jnp.float32)
    h = jax.nn.relu(h)
    h = jax.lax.conv_general_dilated(h, w1, (1, 1), "SAME",
                                     dimension_numbers=dn,
                                     preferred_element_type=jnp.float32)
    return jnp.transpose(h + x, (0, 3, 1, 2))


if __name__ == "__main__":
    N, C, H, W = 2, 4, 16, 16
    scale = 1.0

    key = jax.random.PRNGKey(0)
    kx, k0, k1 = jax.random.split(key, 3)
    x = jax.random.normal(kx, (N, C, H, W), dtype=jnp.float32)
    w0 = init_conv_weight(k0, C, scale)
    w1 = init_conv_weight(k1, C, scale)

    ref = jax.block_until_ready(reference_resblock(x, w0, w1))

    # f32 MXU operands: tight check against the f32 XLA reference.
    out_f32 = jax.block_until_ready(
        residual_block(x, w0, w1, mxu_dtype=jnp.float32))
    np.testing.assert_allclose(np.asarray(out_f32), np.asarray(ref),
                               rtol=1e-4, atol=1e-4)

    # bf16 MXU operands + f32 accumulation (v6e/v7x fast path): loose check.
    out_bf16 = jax.block_until_ready(
        residual_block(x, w0, w1, mxu_dtype=jnp.bfloat16))
    np.testing.assert_allclose(np.asarray(out_bf16), np.asarray(ref),
                               rtol=3e-2, atol=3e-2)

    print("KERNEL_OK")
</pallas_src>

<mosaic_0001>
module attributes {stable_mosaic.version = 11 : i64} {
  func.func @resblock_kernel(%arg0: i32, %arg1: memref<1x18x18x128xf32, #tpu.memory_space<vmem>>, %arg2: memref<1152x128xf32, #tpu.memory_space<vmem>>, %arg3: memref<1152x128xf32, #tpu.memory_space<vmem>>, %arg4: memref<1x16x16x128xf32, #tpu.memory_space<vmem>>, %arg5: memref<18x18x128xf32, #tpu.memory_space<vmem>>) attributes {dimension_semantics = [#tpu.dimension_semantics<parallel>], iteration_bounds = array<i64: 2>, scalar_prefetch = 0 : i64, scratch_operands = 1 : i64, tpu.core_type = #tpu.core_type<tc>, window_params = [{transform_indices = @transform_0, window_bounds = array<i64: 1, 18, 18, 128>}, {pipeline_mode = #tpu.pipeline_mode<synchronous>, transform_indices = @transform_1, window_bounds = array<i64: 1152, 128>}, {pipeline_mode = #tpu.pipeline_mode<synchronous>, transform_indices = @transform_2, window_bounds = array<i64: 1152, 128>}, {transform_indices = @transform_3, window_bounds = array<i64: 1, 16, 16, 128>}]} {
    %c0 = arith.constant 0 : index
    %c0_0 = arith.constant 0 : index
    %c0_1 = arith.constant 0 : index
    %c0_2 = arith.constant 0 : index
    %0 = vector.load %arg1[%c0, %c0_0, %c0_1, %c0_2] : memref<1x18x18x128xf32, #tpu.memory_space<vmem>>, vector<1x18x18x128xf32>
    %1 = vector.shape_cast %0 : vector<1x18x18x128xf32> to vector<18x18x128xf32>
    %cst = arith.constant 0.000000e+00 : f32
    %2 = vector.broadcast %cst : f32 to vector<18x18x128xf32>
    %3 = arith.maximumf %1, %2 : vector<18x18x128xf32>
    %4 = vector.extract_strided_slice %3 {offsets = [0, 0, 0], sizes = [16, 16, 128], strides = [1, 1, 1]} : vector<18x18x128xf32> to vector<16x16x128xf32>
    %5 = vector.shape_cast %4 : vector<16x16x128xf32> to vector<256x128xf32>
    %6 = vector.extract_strided_slice %3 {offsets = [0, 1, 0], sizes = [16, 16, 128], strides = [1, 1, 1]} : vector<18x18x128xf32> to vector<16x16x128xf32>
    %7 = vector.shape_cast %6 : vector<16x16x128xf32> to vector<256x128xf32>
    %8 = vector.extract_strided_slice %3 {offsets = [0, 2, 0], sizes = [16, 16, 128], strides = [1, 1, 1]} : vector<18x18x128xf32> to vector<16x16x128xf32>
    %9 = vector.shape_cast %8 : vector<16x16x128xf32> to vector<256x128xf32>
    %10 = vector.extract_strided_slice %3 {offsets = [1, 0, 0], sizes = [16, 16, 128], strides = [1, 1, 1]} : vector<18x18x128xf32> to vector<16x16x128xf32>
    %11 = vector.shape_cast %10 : vector<16x16x128xf32> to vector<256x128xf32>
    %12 = vector.extract_strided_slice %3 {offsets = [1, 1, 0], sizes = [16, 16, 128], strides = [1, 1, 1]} : vector<18x18x128xf32> to vector<16x16x128xf32>
    %13 = vector.shape_cast %12 : vector<16x16x128xf32> to vector<256x128xf32>
    %14 = vector.extract_strided_slice %3 {offsets = [1, 2, 0], sizes = [16, 16, 128], strides = [1, 1, 1]} : vector<18x18x128xf32> to vector<16x16x128xf32>
    %15 = vector.shape_cast %14 : vector<16x16x128xf32> to vector<256x128xf32>
    %16 = vector.extract_strided_slice %3 {offsets = [2, 0, 0], sizes = [16, 16, 128], strides = [1, 1, 1]} : vector<18x18x128xf32> to vector<16x16x128xf32>
    %17 = vector.shape_cast %16 : vector<16x16x128xf32> to vector<256x128xf32>
    %18 = vector.extract_strided_slice %3 {offsets = [2, 1, 0], sizes = [16, 16, 128], strides = [1, 1, 1]} : vector<18x18x128xf32> to vector<16x16x128xf32>
    %19 = vector.shape_cast %18 : vector<16x16x128xf32> to vector<256x128xf32>
    %20 = vector.extract_strided_slice %3 {offsets = [2, 2, 0], sizes = [16, 16, 128], strides = [1, 1, 1]} : vector<18x18x128xf32> to vector<16x16x128xf32>
    %21 = vector.shape_cast %20 : vector<16x16x128xf32> to vector<256x128xf32>
    %22 = tpu.concatenate %5, %7, %9, %11, %13, %15, %17, %19, %21 in 1 : vector<256x128xf32>, vector<256x128xf32>, vector<256x128xf32>, vector<256x128xf32>, vector<256x128xf32>, vector<256x128xf32>, vector<256x128xf32>, vector<256x128xf32>, vector<256x128xf32> -> vector<256x1152xf32>
    %c0_3 = arith.constant 0 : index
    %c0_4 = arith.constant 0 : index
    %23 = vector.load %arg2[%c0_3, %c0_4] : memref<1152x128xf32, #tpu.memory_space<vmem>>, vector<1152x128xf32>
    %cst_5 = arith.constant dense<0.000000e+00> : vector<256x128xf32>
    %24 = tpu.matmul %22, %23, %cst_5 {dimension_numbers = #tpu.dot_dimension_numbers<[1], [0], [0], [1], [0, 0, 1, 1], [], []>} : vector<256x1152xf32>, vector<1152x128xf32>, vector<256x128xf32> -> vector<256x128xf32>
    %cst_6 = arith.constant 0.000000e+00 : f32
    %25 = vector.broadcast %cst_6 : f32 to vector<1x18x128xf32>
    %cst_7 = arith.constant 0.000000e+00 : f32
    %26 = vector.broadcast %cst_7 : f32 to vector<18x1x128xf32>
    %c0_8 = arith.constant 0 : index
    %c0_9 = arith.constant 0 : index
    %c0_10 = arith.constant 0 : index
    %27 = vector.load %arg5[%c0_8, %c0_9, %c0_10] : memref<18x18x128xf32, #tpu.memory_space<vmem>>, vector<1x18x128xf32>
    tpu.vector_store %arg5[%c0_8, %c0_9, %c0_10], %25 {strides = array<i32>} : memref<18x18x128xf32, #tpu.memory_space<vmem>>, vector<1x18x128xf32>,
    %c17 = arith.constant 17 : index
    %c0_11 = arith.constant 0 : index
    %c0_12 = arith.constant 0 : index
    %28 = vector.load %arg5[%c17, %c0_11, %c0_12] : memref<18x18x128xf32, #tpu.memory_space<vmem>>, vector<1x18x128xf32>
    tpu.vector_store %arg5[%c17, %c0_11, %c0_12], %25 {strides = array<i32>} : memref<18x18x128xf32, #tpu.memory_space<vmem>>, vector<1x18x128xf32>,
    %c0_13 = arith.constant 0 : index
    %c0_14 = arith.constant 0 : index
    %c0_15 = arith.constant 0 : index
    %29 = vector.load %arg5[%c0_13, %c0_14, %c0_15] : memref<18x18x128xf32, #tpu.memory_space<vmem>>, vector<18x1x128xf32>
    tpu.vector_store %arg5[%c0_13, %c0_14, %c0_15], %26 {strides = array<i32>} : memref<18x18x128xf32, #tpu.memory_space<vmem>>, vector<18x1x128xf32>,
    %c0_16 = arith.constant 0 : index
    %c17_17 = arith.constant 17 : index
    %c0_18 = arith.constant 0 : index
    %30 = vector.load %arg5[%c0_16, %c17_17, %c0_18] : memref<18x18x128xf32, #tpu.memory_space<vmem>>, vector<18x1x128xf32>
    tpu.vector_store %arg5[%c0_16, %c17_17, %c0_18], %26 {strides = array<i32>} : memref<18x18x128xf32, #tpu.memory_space<vmem>>, vector<18x1x128xf32>,
    %cst_19 = arith.constant 0.000000e+00 : f32
    %31 = vector.broadcast %cst_19 : f32 to vector<256x128xf32>
    %32 = arith.maximumf %24, %31 : vector<256x128xf32>
    %33 = vector.shape_cast %32 : vector<256x128xf32> to vector<16x16x128xf32>
    %c1 = arith.constant 1 : index
    %c1_20 = arith.constant 1 : index
    %c0_21 = arith.constant 0 : index
    %34 = vector.load %arg5[%c1, %c1_20, %c0_21] : memref<18x18x128xf32, #tpu.memory_space<vmem>>, vector<16x16x128xf32>
    tpu.vector_store %arg5[%c1, %c1_20, %c0_21], %33 {strides = array<i32>} : memref<18x18x128xf32, #tpu.memory_space<vmem>>, vector<16x16x128xf32>,
    %c0_22 = arith.constant 0 : index
    %c0_23 = arith.constant 0 : index
    %c0_24 = arith.constant 0 : index
    %35 = vector.load %arg5[%c0_22, %c0_23, %c0_24] : memref<18x18x128xf32, #tpu.memory_space<vmem>>, vector<16x16x128xf32>
    %36 = vector.shape_cast %35 : vector<16x16x128xf32> to vector<256x128xf32>
    %c0_25 = arith.constant 0 : index
    %c1_26 = arith.constant 1 : index
    %c0_27 = arith.constant 0 : index
    %37 = vector.load %arg5[%c0_25, %c1_26, %c0_27] : memref<18x18x128xf32, #tpu.memory_space<vmem>>, vector<16x16x128xf32>
    %38 = vector.shape_cast %37 : vector<16x16x128xf32> to vector<256x128xf32>
    %c0_28 = arith.constant 0 : index
    %c2 = arith.constant 2 : index
    %c0_29 = arith.constant 0 : index
    %39 = vector.load %arg5[%c0_28, %c2, %c0_29] : memref<18x18x128xf32, #tpu.memory_space<vmem>>, vector<16x16x128xf32>
    %40 = vector.shape_cast %39 : vector<16x16x128xf32> to vector<256x128xf32>
    %c1_30 = arith.constant 1 : index
    %c0_31 = arith.constant 0 : index
    %c0_32 = arith.constant 0 : index
    %41 = vector.load %arg5[%c1_30, %c0_31, %c0_32] : memref<18x18x128xf32, #tpu.memory_space<vmem>>, vector<16x16x128xf32>
    %42 = vector.shape_cast %41 : vector<16x16x128xf32> to vector<256x128xf32>
    %c1_33 = arith.constant 1 : index
    %c1_34 = arith.constant 1 : index
    %c0_35 = arith.constant 0 : index
    %43 = vector.load %arg5[%c1_33, %c1_34, %c0_35] : memref<18x18x128xf32, #tpu.memory_space<vmem>>, vector<16x16x128xf32>
    %44 = vector.shape_cast %43 : vector<16x16x128xf32> to vector<256x128xf32>
    %c1_36 = arith.constant 1 : index
    %c2_37 = arith.constant 2 : index
    %c0_38 = arith.constant 0 : index
    %45 = vector.load %arg5[%c1_36, %c2_37, %c0_38] : memref<18x18x128xf32, #tpu.memory_space<vmem>>, vector<16x16x128xf32>
    %46 = vector.shape_cast %45 : vector<16x16x128xf32> to vector<256x128xf32>
    %c2_39 = arith.constant 2 : index
    %c0_40 = arith.constant 0 : index
    %c0_41 = arith.constant 0 : index
    %47 = vector.load %arg5[%c2_39, %c0_40, %c0_41] : memref<18x18x128xf32, #tpu.memory_space<vmem>>, vector<16x16x128xf32>
    %48 = vector.shape_cast %47 : vector<16x16x128xf32> to vector<256x128xf32>
    %c2_42 = arith.constant 2 : index
    %c1_43 = arith.constant 1 : index
    %c0_44 = arith.constant 0 : index
    %49 = vector.load %arg5[%c2_42, %c1_43, %c0_44] : memref<18x18x128xf32, #tpu.memory_space<vmem>>, vector<16x16x128xf32>
    %50 = vector.shape_cast %49 : vector<16x16x128xf32> to vector<256x128xf32>
    %c2_45 = arith.constant 2 : index
    %c2_46 = arith.constant 2 : index
    %c0_47 = arith.constant 0 : index
    %51 = vector.load %arg5[%c2_45, %c2_46, %c0_47] : memref<18x18x128xf32, #tpu.memory_space<vmem>>, vector<16x16x128xf32>
    %52 = vector.shape_cast %51 : vector<16x16x128xf32> to vector<256x128xf32>
    %53 = tpu.concatenate %36, %38, %40, %42, %44, %46, %48, %50, %52 in 1 : vector<256x128xf32>, vector<256x128xf32>, vector<256x128xf32>, vector<256x128xf32>, vector<256x128xf32>, vector<256x128xf32>, vector<256x128xf32>, vector<256x128xf32>, vector<256x128xf32> -> vector<256x1152xf32>
    %c0_48 = arith.constant 0 : index
    %c0_49 = arith.constant 0 : index
    %54 = vector.load %arg3[%c0_48, %c0_49] : memref<1152x128xf32, #tpu.memory_space<vmem>>, vector<1152x128xf32>
    %cst_50 = arith.constant dense<0.000000e+00> : vector<256x128xf32>
    %55 = tpu.matmul %53, %54, %cst_50 {dimension_numbers = #tpu.dot_dimension_numbers<[1], [0], [0], [1], [0, 0, 1, 1], [], []>} : vector<256x1152xf32>, vector<1152x128xf32>, vector<256x128xf32> -> vector<256x128xf32>
    %c0_51 = arith.constant 0 : index
    %c1_52 = arith.constant 1 : index
    %c1_53 = arith.constant 1 : index
    %c0_54 = arith.constant 0 : index
    %56 = vector.load %arg1[%c0_51, %c1_52, %c1_53, %c0_54] : memref<1x18x18x128xf32, #tpu.memory_space<vmem>>, vector<1x16x16x128xf32>
    %57 = vector.shape_cast %56 : vector<1x16x16x128xf32> to vector<16x16x128xf32>
    %58 = vector.shape_cast %55 : vector<256x128xf32> to vector<16x16x128xf32>
    %59 = arith.addf %58, %57 : vector<16x16x128xf32>
    %c0_55 = arith.constant 0 : index
    %c0_56 = arith.constant 0 : index
    %c0_57 = arith.constant 0 : index
    %c0_58 = arith.constant 0 : index
    %60 = vector.load %arg4[%c0_55, %c0_56, %c0_57, %c0_58] : memref<1x16x16x128xf32, #tpu.memory_space<vmem>>, vector<1x16x16x128xf32>
    %61 = vector.shape_cast %60 : vector<1x16x16x128xf32> to vector<16x16x128xf32>
    %62 = vector.shape_cast %59 : vector<16x16x128xf32> to vector<1x16x16x128xf32>
    tpu.vector_store %arg4[%c0_55, %c0_56, %c0_57, %c0_58], %62 {strides = array<i32>} : memref<1x16x16x128xf32, #tpu.memory_space<vmem>>, vector<1x16x16x128xf32>,
    return
  }
  func.func @transform_0(%arg0: i32) -> (i32, i32, i32, i32) {
    %c0_i32 = arith.constant 0 : i32
    %c0_i32_0 = arith.constant 0 : i32
    %c0_i32_1 = arith.constant 0 : i32
    %c0_i32_2 = arith.constant 0 : i32
    return %arg0, %c0_i32, %c0_i32_0, %c0_i32_1 : i32, i32, i32, i32
  }
  func.func @transform_1(%arg0: i32) -> (i32, i32) {
    %c0_i32 = arith.constant 0 : i32
    %c0_i32_0 = arith.constant 0 : i32
    %c0_i32_1 = arith.constant 0 : i32
    return %c0_i32, %c0_i32_0 : i32, i32
  }
  func.func @transform_2(%arg0: i32) -> (i32, i32) {
    %c0_i32 = arith.constant 0 : i32
    %c0_i32_0 = arith.constant 0 : i32
    %c0_i32_1 = arith.constant 0 : i32
    return %c0_i32, %c0_i32_0 : i32, i32
  }
  func.func @transform_3(%arg0: i32) -> (i32, i32, i32, i32) {
    %c0_i32 = arith.constant 0 : i32
    %c0_i32_0 = arith.constant 0 : i32
    %c0_i32_1 = arith.constant 0 : i32
    %c0_i32_2 = arith.constant 0 : i32
    return %arg0, %c0_i32, %c0_i32_0, %c0_i32_1 : i32, i32, i32, i32
  }
}

</mosaic_0001>

<llo_original>
// kernel: tpu_custom_call.1
$region0: #{tpu_custom_call.1}
  #allocation0 [shape = 'u32[]', space=smem, size = 0x4, offset = 0x4, fixed_abs, tag = 'smem constant byte address 0x4 - core index']
  #allocation1 [shape = 'u32[144,128]{1,0:T(1,128)}', space=vmem, size = 0x12000, scoped, tag = 'internal scratch']
  #allocation2 [shape = 'f32[18,18,128]{2,1,0:T(8,128)}', space=vmem, size = 0x36000, scoped, tag = 'scratch operand']
  %s0 = inlined_call_operand.vmem [shape: f32[2,18,18,128], index: 0, kind: input, shape index: {}]
  %s1 = inlined_call_operand.vmem [shape: f32[1152,128], index: 1, kind: input, shape index: {}]
  %s2 = inlined_call_operand.hbm [shape: f32[1152,128], index: 2, kind: input, shape index: {}]
  %s3 = inlined_call_operand.hbm [shape: f32[2,16,16,128], index: 3, kind: output, shape index: {}]
  %s4 = sld [smem:[#allocation0]]
  $region49: #{tpu_custom_call.1} parent=0
    _
  %s6 = ssub.s32 1, %s4
  %s7 = scalar_select 0, %s6, %s4
  $region1: #{tpu_custom_call.1} parent=0
    #allocation3 [shape = 'u8[589824]{0}', space=vmem, size = 0x90000, scoped, tag = 'input window, operand 2, single buffered']
    #allocation4 [shape = 's32[2]{0}', space=sflag, size = 0x8, scoped, tag = 'scoped memory for tpu_custom_call.1']
    #allocation5 [shape = 's32[2]{0}', space=sflag, size = 0x8, scoped, tag = 'scoped memory for tpu_custom_call.1']
    #allocation6 [shape = 'u8[262144]{0}', space=vmem, size = 0x40000, scoped, tag = 'output window, operand 0']
    %8 = vsyncpa [#allocation4], 0
    %9 = vsyncpa [#allocation5], 0
    %s10 = scalar_lea.sflag [#allocation5], 1
    %11 = vsyncpa %s10, 0
    loop: start=0, step=1, limit=4
    $region2: #{tpu_custom_call.1} parent=1 // loop_pre_header
      _
    $region3: #{tpu_custom_call.1} parent=1 // loop_header
      %s13 = sphi 0, %s17
      %p14 = scmp.ge.s32.totalorder %s13, 4
      %s23 = sphi 0, %s25
      %s26 = sphi 0, %s23
      %s27 = sphi 0, %s26
      %s43 = sphi 0, %s27
      %s47 = sphi 0, %s47
      %s49 = sphi 0, %s47
      %s50 = sphi 0, %s49
      %s64 = sphi 0, %s50
      %s68 = sphi 0, %s68
      %s70 = sphi 0, %s68
      %s71 = sphi 0, %s70
      %s85 = sphi 0, %s71
      %s91 = sphi 0, %s93
      %s94 = sphi 0, %s91
      %s95 = sphi 0, %s94
      %s111 = sphi 0, %s95
    $region4: #{tpu_custom_call.1} parent=1 // loop_header_branch
      %16 = sbr.rel (%p14) target = $region8
    $region5: #{tpu_custom_call.1} parent=1 // loop_body
      %s18 = ssub.s32 %s13, 1
      %s19 = ssub.s32 %s13, 2
      %s20 = sadd.s32 %s13, 1
      %s21 = ssub.s32 %s13, %s20
      %p22 = scmp.eq.s32.totalorder %s21, 0
      %s24 = sadd.s32 %s23, 1
      %s25 = scalar_select %p22, %s23, %s24
      %p28 = pneg %p22
      %p29 = scmp.eq.s32.totalorder %s13, 1
      %p30 = por %p28, %p29
      %p31 = scmp.ne.s32.totalorder %s23, %s26
      %p32 = scmp.eq.s32.totalorder %s13, 0
      %p33 = por %p31, %p32
      %p34 = scmp.ne.s32.totalorder %s23, %s26
      %p35 = scmp.eq.s32.totalorder %s18, 1
      %p36 = por %p34, %p35
      %p37 = scmp.ne.s32.totalorder %s26, %s27
      %p38 = scmp.eq.s32.totalorder %s18, 0
      %p39 = por %p37, %p38
      %p40 = scmp.ne.s32.totalorder %s26, %s27
      %p41 = scmp.eq.s32.totalorder %s19, 1
      %p42 = por %p40, %p41
      %p44 = scmp.ne.s32.totalorder %s27, %s43
      %p45 = scmp.eq.s32.totalorder %s19, 0
      %p46 = por %p44, %p45
      %s48 = sadd.s32 %s47, 1
      %p51 = scmp.eq.s32.totalorder %s13, 1
      %p52 = scmp.ne.s32.totalorder %s47, %s49
      %p53 = scmp.eq.s32.totalorder %s13, 0
      %p54 = por %p52, %p53
      %p55 = scmp.ne.s32.totalorder %s47, %s49
      %p56 = scmp.eq.s32.totalorder %s18, 1
      %p57 = por %p55, %p56
      %p58 = scmp.ne.s32.totalorder %s49, %s50
      %p59 = scmp.eq.s32.totalorder %s18, 0
      %p60 = por %p58, %p59
      %p61 = scmp.ne.s32.totalorder %s49, %s50
      %p62 = scmp.eq.s32.totalorder %s19, 1
      %p63 = por %p61, %p62
      %p65 = scmp.ne.s32.totalorder %s50, %s64
      %p66 = scmp.eq.s32.totalorder %s19, 0
      %p67 = por %p65, %p66
      %s69 = sadd.s32 %s68, 1
      %p72 = scmp.eq.s32.totalorder %s13, 1
      %p73 = scmp.ne.s32.totalorder %s68, %s70
      %p74 = scmp.eq.s32.totalorder %s13, 0
      %p75 = por %p73, %p74
      %p76 = scmp.ne.s32.totalorder %s68, %s70
      %p77 = scmp.eq.s32.totalorder %s18, 1
      %p78 = por %p76, %p77
      %p79 = scmp.ne.s32.totalorder %s70, %s71
      %p80 = scmp.eq.s32.totalorder %s18, 0
      %p81 = por %p79, %p80
      %p82 = scmp.ne.s32.totalorder %s70, %s71
      %p83 = scmp.eq.s32.totalorder %s19, 1
      %p84 = por %p82, %p83
      %p86 = scmp.ne.s32.totalorder %s71, %s85
      %p87 = scmp.eq.s32.totalorder %s19, 0
      %p88 = por %p86, %p87
      %s89 = ssub.s32 %s13, %s20
      %p90 = scmp.eq.s32.totalorder %s89, 0
      %s92 = sadd.s32 %s91, 1
      %s93 = scalar_select %p90, %s91, %s92
      %p96 = pneg %p90
      %p97 = scmp.eq.s32.totalorder %s13, 1
      %p98 = por %p96, %p97
      %p99 = scmp.ne.s32.totalorder %s91, %s94
      %p100 = scmp.eq.s32.totalorder %s13, 0
      %p101 = por %p99, %p100
      %p102 = scmp.ne.s32.totalorder %s91, %s94
      %p103 = scmp.eq.s32.totalorder %s18, 1
      %p104 = por %p102, %p103
      %p105 = scmp.ne.s32.totalorder %s94, %s95
      %p106 = scmp.eq.s32.totalorder %s18, 0
      %p107 = por %p105, %p106
      %p108 = scmp.ne.s32.totalorder %s94, %s95
      %p109 = scmp.eq.s32.totalorder %s19, 1
      %p110 = por %p108, %p109
      %p112 = scmp.ne.s32.totalorder %s95, %s111
      %p113 = scmp.eq.s32.totalorder %s19, 0
      %p114 = por %p112, %p113
      %p115 = scmp.le.s32.totalorder 1, %s13
      %p116 = scmp.lt.s32.totalorder %s13, 3
      %p117 = pnand %p115, %p116
      %p118 = pneg %p117
      // Predicated region
      $region9: #{tpu_custom_call.1} parent=5 // pred_check
        _
      $region10: #{tpu_custom_call.1} parent=5 // pred_check_branch
        %120 = sbr.rel (%p117) target = $region12
      $region11: #{tpu_custom_call.1} parent=5 // pred_region
        %s121 = ssub.s32 %s13, 1
        // Predicated region
        $region13: #{tpu_custom_call.1} parent=11 // pred_check
          %p122 = pneg %p60
        $region14: #{tpu_custom_call.1} parent=11 // pred_check_branch
          %124 = sbr.rel (%p122) target = $region16
        $region15: #{tpu_custom_call.1} parent=11 // pred_region
          _
        $region16: #{tpu_custom_call.1} parent=11 // pred_fallthru
          _
        // Predicated region
        $region17: #{tpu_custom_call.1} parent=11 // pred_check
          %p125 = pneg %p81
        $region18: #{tpu_custom_call.1} parent=11 // pred_check_branch
          %127 = sbr.rel (%p125) target = $region20
        $region19: #{tpu_custom_call.1} parent=11 // pred_region
          %s129 = ssub.s32 18432, 18432
          %130 = vsyncadd [#allocation4], %s129
          %s131 = sshll.u32 [#allocation3], 4
          %s132 = int_to_ptr.vmem [resolvable:$true] %s131
          %137 = dma.hbm_to_vmem [thread:$0]  %s2, 18432, %s132, [#allocation4], 128, 128, 8
        $region20: #{tpu_custom_call.1} parent=11 // pred_fallthru
          _
      $region12: #{tpu_custom_call.1} parent=5 // pred_fallthru
        _
      %p138 = scmp.lt.s32.totalorder %s13, 2
      // Predicated region
      $region21: #{tpu_custom_call.1} parent=5 // pred_check
        %p139 = pneg %p138
      $region22: #{tpu_custom_call.1} parent=5 // pred_check_branch
        %141 = sbr.rel (%p139) target = $region24
      $region23: #{tpu_custom_call.1} parent=5 // pred_region
        // Predicated region
        $region25: #{tpu_custom_call.1} parent=23 // pred_check
          %p142 = pneg %p33
        $region26: #{tpu_custom_call.1} parent=23 // pred_check_branch
          %144 = sbr.rel (%p142) target = $region28
        $region27: #{tpu_custom_call.1} parent=23 // pred_region
          %p145 = scmp.lt.s32.totalorder %s13, 1
          %s146 = scalar_select %p145, %s13, 1
          %s147 = smul.addr %s146, 54
          %s148 = smul.addr %s147, 8
          %s149 = scalar_lea.vmem %s0, %s148
        $region28: #{tpu_custom_call.1} parent=23 // pred_fallthru
          _
      $region24: #{tpu_custom_call.1} parent=5 // pred_fallthru
        _
      %p150 = scmp.le.s32.totalorder 1, %s13
      %p151 = scmp.lt.s32.totalorder %s13, 3
      %p152 = pnand %p150, %p151
      %p153 = pneg %p152
      // Predicated region
      $region29: #{tpu_custom_call.1} parent=5 // pred_check
        _
      $region30: #{tpu_custom_call.1} parent=5 // pred_check_branch
        %155 = sbr.rel (%p152) target = $region32
      $region31: #{tpu_custom_call.1} parent=5 // pred_region
        %s156 = ssub.s32 %s13, 1
        // Predicated region
        $region33: #{tpu_custom_call.1} parent=31 // pred_check
          %p157 = pneg %p81
        $region34: #{tpu_custom_call.1} parent=31 // pred_check_branch
          %159 = sbr.rel (%p157) target = $region36
        $region35: #{tpu_custom_call.1} parent=31 // pred_region
          %160 = dma.done [#allocation4], 18432
        $region36: #{tpu_custom_call.1} parent=31 // pred_fallthru
          _
        %p161 = scmp.lt.s32.totalorder %s18, 1
        %s162 = scalar_select %p161, %s18, 1
        %s163 = smul.addr %s162, 54
        %s164 = smul.addr %s163, 8
        %s165 = scalar_lea.vmem %s0, %s164
        %p166 = pneg %p39
        %p167 = pneg %p36
        %p168 = pneg %p60
        %p169 = pneg %p57
        %p170 = pneg %p81
        %p171 = pneg %p78
        %p172 = pneg %p107
        %p173 = pneg %p104
        %s174 = sand.u32 %s94, 1
        %s175 = scalar_lea.sflag [#allocation5], %s174
        %s176 = sand.u32 %s94, 1
        %s177 = smul.addr %s176, 256
        %s178 = scalar_lea.vmem [#allocation6], %s177
        %p179 = scmp.lt.s32.totalorder %s18, 1
        %s180 = scalar_select %p179, %s18, 1
        %s181 = smul.addr %s180, 54
        %s182 = smul.addr %s181, 8
        %s183 = scalar_lea.vmem %s0, %s182
        %v184 = vld [vmem:[%s183] sm:$0xff]
        %v185 = vld [vmem:[%s183 + $0x8] sm:$0xff]
        %v186 = vld [vmem:[%s183 + $0x10] sm:$0x3]
        %v187 = vld [vmem:[%s183 + $0x18] sm:$0xff]
        %v188 = vld [vmem:[%s183 + $0x20] sm:$0xff]
        %v189 = vld [vmem:[%s183 + $0x28] sm:$0x3]
        %v190 = vld [vmem:[%s183 + $0x30] sm:$0xff]
        %v191 = vld [vmem:[%s183 + $0x38] sm:$0xff]
        %v192 = vld [vmem:[%s183 + $0x40] sm:$0x3]
        %v193 = vld [vmem:[%s183 + $0x48] sm:$0xff]
        %v194 = vld [vmem:[%s183 + $0x50] sm:$0xff]
        %v195 = vld [vmem:[%s183 + $0x58] sm:$0x3]
        %v196 = vld [vmem:[%s183 + $0x60] sm:$0xff]
        %v197 = vld [vmem:[%s183 + $0x68] sm:$0xff]
        %v198 = vld [vmem:[%s183 + $0x70] sm:$0x3]
        %v199 = vld [vmem:[%s183 + $0x78] sm:$0xff]
        %v200 = vld [vmem:[%s183 + $0x80] sm:$0xff]
        %v201 = vld [vmem:[%s183 + $0x88] sm:$0x3]
        %v202 = vld [vmem:[%s183 + $0x90] sm:$0xff]
        %v203 = vld [vmem:[%s183 + $0x98] sm:$0xff]
        %v204 = vld [vmem:[%s183 + $0xa0] sm:$0x3]
        %v205 = vld [vmem:[%s183 + $0xa8] sm:$0xff]
        %v206 = vld [vmem:[%s183 + $0xb0] sm:$0xff]
        %v207 = vld [vmem:[%s183 + $0xb8] sm:$0x3]
        %v208 = vld [vmem:[%s183 + $0xc0] sm:$0xff]
        %v209 = vld [vmem:[%s183 + $0xc8] sm:$0xff]
        %v210 = vld [vmem:[%s183 + $0xd0] sm:$0x3]
        %v211 = vld [vmem:[%s183 + $0xd8] sm:$0xff]
        %v212 = vld [vmem:[%s183 + $0xe0] sm:$0xff]
        %v213 = vld [vmem:[%s183 + $0xe8] sm:$0x3]
        %v214 = vld [vmem:[%s183 + $0xf0] sm:$0xff]
        %v215 = vld [vmem:[%s183 + $0xf8] sm:$0xff]
        %v216 = vld [vmem:[%s183 + $0x100] sm:$0x3]
        %v217 = vld [vmem:[%s183 + $0x108] sm:$0xff]
        %v218 = vld [vmem:[%s183 + $0x110] sm:$0xff]
        %v219 = vld [vmem:[%s183 + $0x118] sm:$0x3]
        %v220 = vld [vmem:[%s183 + $0x120] sm:$0xff]
        %v221 = vld [vmem:[%s183 + $0x128] sm:$0xff]
        %v222 = vld [vmem:[%s183 + $0x130] sm:$0x3]
        %v223 = vld [vmem:[%s183 + $0x138] sm:$0xff]
        %v224 = vld [vmem:[%s183 + $0x140] sm:$0xff]
        %v225 = vld [vmem:[%s183 + $0x148] sm:$0x3]
        %v226 = vld [vmem:[%s183 + $0x150] sm:$0xff]
        %v227 = vld [vmem:[%s183 + $0x158] sm:$0xff]
        %v228 = vld [vmem:[%s183 + $0x160] sm:$0x3]
        %v229 = vld [vmem:[%s183 + $0x168] sm:$0xff]
        %v230 = vld [vmem:[%s183 + $0x170] sm:$0xff]
        %v231 = vld [vmem:[%s183 + $0x178] sm:$0x3]
        %v232 = vld [vmem:[%s183 + $0x180] sm:$0xff]
        %v233 = vld [vmem:[%s183 + $0x188] sm:$0xff]
        %v234 = vld [vmem:[%s183 + $0x190] sm:$0x3]
        %v235 = vld [vmem:[%s183 + $0x198] sm:$0xff]
        %v236 = vld [vmem:[%s183 + $0x1a0] sm:$0xff]
        %v237 = vld [vmem:[%s183 + $0x1a8] sm:$0x3]
        %v238 = vmax.f32 %v184, 0.0
        %v239 = vmax.f32 %v185, 0.0
        %v240 = vmax.f32 %v186, 0.0
        %v241 = vmax.f32 %v187, 0.0
        %v242 = vmax.f32 %v188, 0.0
        %v243 = vmax.f32 %v189, 0.0
        %v244 = vmax.f32 %v190, 0.0
        %v245 = vmax.f32 %v191, 0.0
        %v246 = vmax.f32 %v192, 0.0
        %v247 = vmax.f32 %v193, 0.0
        %v248 = vmax.f32 %v194, 0.0
        %v249 = vmax.f32 %v195, 0.0
        %v250 = vmax.f32 %v196, 0.0
        %v251 = vmax.f32 %v197, 0.0
        %v252 = vmax.f32 %v198, 0.0
        %v253 = vmax.f32 %v199, 0.0
        %v254 = vmax.f32 %v200, 0.0
        %v255 = vmax.f32 %v201, 0.0
        %v256 = vmax.f32 %v202, 0.0
        %v257 = vmax.f32 %v203, 0.0
        %v258 = vmax.f32 %v204, 0.0
        %v259 = vmax.f32 %v205, 0.0
        %v260 = vmax.f32 %v206, 0.0
        %v261 = vmax.f32 %v207, 0.0
        %v262 = vmax.f32 %v208, 0.0
        %v263 = vmax.f32 %v209, 0.0
        %v264 = vmax.f32 %v210, 0.0
        %v265 = vmax.f32 %v211, 0.0
        %v266 = vmax.f32 %v212, 0.0
        %v267 = vmax.f32 %v213, 0.0
        %v268 = vmax.f32 %v214, 0.0
        %v269 = vmax.f32 %v215, 0.0
        %v270 = vmax.f32 %v216, 0.0
        %v271 = vmax.f32 %v217, 0.0
        %v272 = vmax.f32 %v218, 0.0
        %v273 = vmax.f32 %v219, 0.0
        %v274 = vmax.f32 %v220, 0.0
        %v275 = vmax.f32 %v221, 0.0
        %v276 = vmax.f32 %v222, 0.0
        %v277 = vmax.f32 %v223, 0.0
        %v278 = vmax.f32 %v224, 0.0
        %v279 = vmax.f32 %v225, 0.0
        %v280 = vmax.f32 %v226, 0.0
        %v281 = vmax.f32 %v227, 0.0
        %v282 = vmax.f32 %v228, 0.0
        %v283 = vmax.f32 %v229, 0.0
        %v284 = vmax.f32 %v230, 0.0
        %v285 = vmax.f32 %v231, 0.0
        %v286 = vmax.f32 %v232, 0.0
        %v287 = vmax.f32 %v233, 0.0
        %v288 = vmax.f32 %v234, 0.0
        %v289 = vmax.f32 %v235, 0.0
        %v290 = vmax.f32 %v236, 0.0
        %v291 = vmax.f32 %v237, 0.0
        %vm340 = vcmask 1046528
        %v341 = vrot.slane %v238, 1
        %v342 = vrot.slane %v239, 1
        %v343 = vsel %vm340, %v341, %v342
        %v344 = vrot.slane %v240, 1
        %v345 = vsel %vm340, %v342, %v344
        %v346 = vrot.slane %v241, 1
        %v347 = vrot.slane %v242, 1
        %v348 = vsel %vm340, %v346, %v347
        %v349 = vrot.slane %v243, 1
        %v350 = vsel %vm340, %v347, %v349
        %v351 = vrot.slane %v244, 1
        %v352 = vrot.slane %v245, 1
        %v353 = vsel %vm340, %v351, %v352
        %v354 = vrot.slane %v246, 1
        %v355 = vsel %vm340, %v352, %v354
        %v356 = vrot.slane %v247, 1
        %v357 = vrot.slane %v248, 1
        %v358 = vsel %vm340, %v356, %v357
        %v359 = vrot.slane %v249, 1
        %v360 = vsel %vm340, %v357, %v359
        %v361 = vrot.slane %v250, 1
        %v362 = vrot.slane %v251, 1
        %v363 = vsel %vm340, %v361, %v362
        %v364 = vrot.slane %v252, 1
        %v365 = vsel %vm340, %v362, %v364
        %v366 = vrot.slane %v253, 1
        %v367 = vrot.slane %v254, 1
        %v368 = vsel %vm340, %v366, %v367
        %v369 = vrot.slane %v255, 1
        %v370 = vsel %vm340, %v367, %v369
        %v371 = vrot.slane %v256, 1
        %v372 = vrot.slane %v257, 1
        %v373 = vsel %vm340, %v371, %v372
        %v374 = vrot.slane %v258, 1
        %v375 = vsel %vm340, %v372, %v374
        %v376 = vrot.slane %v259, 1
        %v377 = vrot.slane %v260, 1
        %v378 = vsel %vm340, %v376, %v377
        %v379 = vrot.slane %v261, 1
        %v380 = vsel %vm340, %v377, %v379
        %v381 = vrot.slane %v262, 1
        %v382 = vrot.slane %v263, 1
        %v383 = vsel %vm340, %v381, %v382
        %v384 = vrot.slane %v264, 1
        %v385 = vsel %vm340, %v382, %v384
        %v386 = vrot.slane %v265, 1
        %v387 = vrot.slane %v266, 1
        %v388 = vsel %vm340, %v386, %v387
        %v389 = vrot.slane %v267, 1
        %v390 = vsel %vm340, %v387, %v389
        %v391 = vrot.slane %v268, 1
        %v392 = vrot.slane %v269, 1
        %v393 = vsel %vm340, %v391, %v392
        %v394 = vrot.slane %v270, 1
        %v395 = vsel %vm340, %v392, %v394
        %v396 = vrot.slane %v271, 1
        %v397 = vrot.slane %v272, 1
        %v398 = vsel %vm340, %v396, %v397
        %v399 = vrot.slane %v273, 1
        %v400 = vsel %vm340, %v397, %v399
        %v401 = vrot.slane %v274, 1
        %v402 = vrot.slane %v275, 1
        %v403 = vsel %vm340, %v401, %v402
        %v404 = vrot.slane %v276, 1
        %v405 = vsel %vm340, %v402, %v404
        %v406 = vrot.slane %v277, 1
        %v407 = vrot.slane %v278, 1
        %v408 = vsel %vm340, %v406, %v407
        %v409 = vrot.slane %v279, 1
        %v410 = vsel %vm340, %v407, %v409
        %v411 = vrot.slane %v280, 1
        %v412 = vrot.slane %v281, 1
        %v413 = vsel %vm340, %v411, %v412
        %v414 = vrot.slane %v282, 1
        %v415 = vsel %vm340, %v412, %v414
        %v416 = vrot.slane %v283, 1
        %v417 = vrot.slane %v284, 1
        %v418 = vsel %vm340, %v416, %v417
        %v419 = vrot.slane %v285, 1
        %v420 = vsel %vm340, %v417, %v419
        %vm453 = vcmask 1045504
        %v454 = vrot.slane %v238, 2
        %v455 = vrot.slane %v239, 2
        %v456 = vsel %vm453, %v454, %v455
        %v457 = vrot.slane %v240, 2
        %v458 = vsel %vm453, %v455, %v457
        %v459 = vrot.slane %v241, 2
        %v460 = vrot.slane %v242, 2
        %v461 = vsel %vm453, %v459, %v460
        %v462 = vrot.slane %v243, 2
        %v463 = vsel %vm453, %v460, %v462
        %v464 = vrot.slane %v244, 2
        %v465 = vrot.slane %v245, 2
        %v466 = vsel %vm453, %v464, %v465
        %v467 = vrot.slane %v246, 2
        %v468 = vsel %vm453, %v465, %v467
        %v469 = vrot.slane %v247, 2
        %v470 = vrot.slane %v248, 2
        %v471 = vsel %vm453, %v469, %v470
        %v472 = vrot.slane %v249, 2
        %v473 = vsel %vm453, %v470, %v472
        %v474 = vrot.slane %v250, 2
        %v475 = vrot.slane %v251, 2
        %v476 = vsel %vm453, %v474, %v475
        %v477 = vrot.slane %v252, 2
        %v478 = vsel %vm453, %v475, %v477
        %v479 = vrot.slane %v253, 2
        %v480 = vrot.slane %v254, 2
        %v481 = vsel %vm453, %v479, %v480
        %v482 = vrot.slane %v255, 2
        %v483 = vsel %vm453, %v480, %v482
        %v484 = vrot.slane %v256, 2
        %v485 = vrot.slane %v257, 2
        %v486 = vsel %vm453, %v484, %v485
        %v487 = vrot.slane %v258, 2
        %v488 = vsel %vm453, %v485, %v487
        %v489 = vrot.slane %v259, 2
        %v490 = vrot.slane %v260, 2
        %v491 = vsel %vm453, %v489, %v490
        %v492 = vrot.slane %v261, 2
        %v493 = vsel %vm453, %v490, %v492
        %v494 = vrot.slane %v262, 2
        %v495 = vrot.slane %v263, 2
        %v496 = vsel %vm453, %v494, %v495
        %v497 = vrot.slane %v264, 2
        %v498 = vsel %vm453, %v495, %v497
        %v499 = vrot.slane %v265, 2
        %v500 = vrot.slane %v266, 2
        %v501 = vsel %vm453, %v499, %v500
        %v502 = vrot.slane %v267, 2
        %v503 = vsel %vm453, %v500, %v502
        %v504 = vrot.slane %v268, 2
        %v505 = vrot.slane %v269, 2
        %v506 = vsel %vm453, %v504, %v505
        %v507 = vrot.slane %v270, 2
        %v508 = vsel %vm453, %v505, %v507
        %v509 = vrot.slane %v271, 2
        %v510 = vrot.slane %v272, 2
        %v511 = vsel %vm453, %v509, %v510
        %v512 = vrot.slane %v273, 2
        %v513 = vsel %vm453, %v510, %v512
        %v514 = vrot.slane %v274, 2
        %v515 = vrot.slane %v275, 2
        %v516 = vsel %vm453, %v514, %v515
        %v517 = vrot.slane %v276, 2
        %v518 = vsel %vm453, %v515, %v517
        %v519 = vrot.slane %v277, 2
        %v520 = vrot.slane %v278, 2
        %v521 = vsel %vm453, %v519, %v520
        %v522 = vrot.slane %v279, 2
        %v523 = vsel %vm453, %v520, %v522
        %v524 = vrot.slane %v280, 2
        %v525 = vrot.slane %v281, 2
        %v526 = vsel %vm453, %v524, %v525
        %v527 = vrot.slane %v282, 2
        %v528 = vsel %vm453, %v525, %v527
        %v529 = vrot.slane %v283, 2
        %v530 = vrot.slane %v284, 2
        %v531 = vsel %vm453, %v529, %v530
        %v532 = vrot.slane %v285, 2
        %v533 = vsel %vm453, %v530, %v532
        %v569 = vrot.slane %v286, 1
        %v570 = vrot.slane %v287, 1
        %v571 = vsel %vm340, %v569, %v570
        %v572 = vrot.slane %v288, 1
        %v573 = vsel %vm340, %v570, %v572
        %v576 = vrot.slane %v286, 2
        %v577 = vrot.slane %v287, 2
        %v578 = vsel %vm453, %v576, %v577
        %v579 = vrot.slane %v288, 2
        %v580 = vsel %vm453, %v577, %v579
        %v586 = vrot.slane %v289, 1
        %v587 = vrot.slane %v290, 1
        %v588 = vsel %vm340, %v586, %v587
        %v589 = vrot.slane %v291, 1
        %v590 = vsel %vm340, %v587, %v589
        %v593 = vrot.slane %v289, 2
        %v594 = vrot.slane %v290, 2
        %v595 = vsel %vm453, %v593, %v594
        %v596 = vrot.slane %v291, 2
        %v597 = vsel %vm453, %v594, %v596
        %v600 = vld [vmem:[%s1] sm:$0xff]
        %v601 = vld [vmem:[%s1 + $0x8] sm:$0xff]
        %v602 = vld [vmem:[%s1 + $0x10] sm:$0xff]
        %v603 = vld [vmem:[%s1 + $0x18] sm:$0xff]
        %v604 = vld [vmem:[%s1 + $0x20] sm:$0xff]
        %v605 = vld [vmem:[%s1 + $0x28] sm:$0xff]
        %v606 = vld [vmem:[%s1 + $0x30] sm:$0xff]
        %v607 = vld [vmem:[%s1 + $0x38] sm:$0xff]
        %v608 = vld [vmem:[%s1 + $0x40] sm:$0xff]
        %v609 = vld [vmem:[%s1 + $0x48] sm:$0xff]
        %v610 = vld [vmem:[%s1 + $0x50] sm:$0xff]
        %v611 = vld [vmem:[%s1 + $0x58] sm:$0xff]
        %v612 = vld [vmem:[%s1 + $0x60] sm:$0xff]
        %v613 = vld [vmem:[%s1 + $0x68] sm:$0xff]
        %v614 = vld [vmem:[%s1 + $0x70] sm:$0xff]
        %v615 = vld [vmem:[%s1 + $0x78] sm:$0xff]
        %v616 = vld [vmem:[%s1 + $0x80] sm:$0xff]
        %v617 = vld [vmem:[%s1 + $0x88] sm:$0xff]
        %v618 = vld [vmem:[%s1 + $0x90] sm:$0xff]
        %v619 = vld [vmem:[%s1 + $0x98] sm:$0xff]
        %v620 = vld [vmem:[%s1 + $0xa0] sm:$0xff]
        %v621 = vld [vmem:[%s1 + $0xa8] sm:$0xff]
        %v622 = vld [vmem:[%s1 + $0xb0] sm:$0xff]
        %v623 = vld [vmem:[%s1 + $0xb8] sm:$0xff]
        %v624 = vld [vmem:[%s1 + $0xc0] sm:$0xff]
        %v625 = vld [vmem:[%s1 + $0xc8] sm:$0xff]
        %v626 = vld [vmem:[%s1 + $0xd0] sm:$0xff]
        %v627 = vld [vmem:[%s1 + $0xd8] sm:$0xff]
        %v628 = vld [vmem:[%s1 + $0xe0] sm:$0xff]
        %v629 = vld [vmem:[%s1 + $0xe8] sm:$0xff]
        %v630 = vld [vmem:[%s1 + $0xf0] sm:$0xff]
        %v631 = vld [vmem:[%s1 + $0xf8] sm:$0xff]
        %v632 = vld [vmem:[%s1 + $0x100] sm:$0xff]
        %v633 = vld [vmem:[%s1 + $0x108] sm:$0xff]
        %v634 = vld [vmem:[%s1 + $0x110] sm:$0xff]
        %v635 = vld [vmem:[%s1 + $0x118] sm:$0xff]
        %v636 = vld [vmem:[%s1 + $0x120] sm:$0xff]
        %v637 = vld [vmem:[%s1 + $0x128] sm:$0xff]
        %v638 = vld [vmem:[%s1 + $0x130] sm:$0xff]
        %v639 = vld [vmem:[%s1 + $0x138] sm:$0xff]
        %v640 = vld [vmem:[%s1 + $0x140] sm:$0xff]
        %v641 = vld [vmem:[%s1 + $0x148] sm:$0xff]
        %v642 = vld [vmem:[%s1 + $0x150] sm:$0xff]
        %v643 = vld [vmem:[%s1 + $0x158] sm:$0xff]
        %v644 = vld [vmem:[%s1 + $0x160] sm:$0xff]
        %v645 = vld [vmem:[%s1 + $0x168] sm:$0xff]
        %v646 = vld [vmem:[%s1 + $0x170] sm:$0xff]
        %v647 = vld [vmem:[%s1 + $0x178] sm:$0xff]
        %v648 = vld [vmem:[%s1 + $0x180] sm:$0xff]
        %v649 = vld [vmem:[%s1 + $0x188] sm:$0xff]
        %v650 = vld [vmem:[%s1 + $0x190] sm:$0xff]
        %v651 = vld [vmem:[%s1 + $0x198] sm:$0xff]
        %v652 = vld [vmem:[%s1 + $0x1a0] sm:$0xff]
        %v653 = vld [vmem:[%s1 + $0x1a8] sm:$0xff]
        %v654 = vld [vmem:[%s1 + $0x1b0] sm:$0xff]
        %v655 = vld [vmem:[%s1 + $0x1b8] sm:$0xff]
        %v656 = vld [vmem:[%s1 + $0x1c0] sm:$0xff]
        %v657 = vld [vmem:[%s1 + $0x1c8] sm:$0xff]
        %v658 = vld [vmem:[%s1 + $0x1d0] sm:$0xff]
        %v659 = vld [vmem:[%s1 + $0x1d8] sm:$0xff]
        %v660 = vld [vmem:[%s1 + $0x1e0] sm:$0xff]
        %v661 = vld [vmem:[%s1 + $0x1e8] sm:$0xff]
        %v662 = vld [vmem:[%s1 + $0x1f0] sm:$0xff]
        %v663 = vld [vmem:[%s1 + $0x1f8] sm:$0xff]
        %v664 = vld [vmem:[%s1 + $0x200] sm:$0xff]
        %v665 = vld [vmem:[%s1 + $0x208] sm:$0xff]
        %v666 = vld [vmem:[%s1 + $0x210] sm:$0xff]
        %v667 = vld [vmem:[%s1 + $0x218] sm:$0xff]
        %v668 = vld [vmem:[%s1 + $0x220] sm:$0xff]
        %v669 = vld [vmem:[%s1 + $0x228] sm:$0xff]
        %v670 = vld [vmem:[%s1 + $0x230] sm:$0xff]
        %v671 = vld [vmem:[%s1 + $0x238] sm:$0xff]
        %v672 = vld [vmem:[%s1 + $0x240] sm:$0xff]
        %v673 = vld [vmem:[%s1 + $0x248] sm:$0xff]
        %v674 = vld [vmem:[%s1 + $0x250] sm:$0xff]
        %v675 = vld [vmem:[%s1 + $0x258] sm:$0xff]
        %v676 = vld [vmem:[%s1 + $0x260] sm:$0xff]
        %v677 = vld [vmem:[%s1 + $0x268] sm:$0xff]
        %v678 = vld [vmem:[%s1 + $0x270] sm:$0xff]
        %v679 = vld [vmem:[%s1 + $0x278] sm:$0xff]
        %v680 = vld [vmem:[%s1 + $0x280] sm:$0xff]
        %v681 = vld [vmem:[%s1 + $0x288] sm:$0xff]
        %v682 = vld [vmem:[%s1 + $0x290] sm:$0xff]
        %v683 = vld [vmem:[%s1 + $0x298] sm:$0xff]
        %v684 = vld [vmem:[%s1 + $0x2a0] sm:$0xff]
        %v685 = vld [vmem:[%s1 + $0x2a8] sm:$0xff]
        %v686 = vld [vmem:[%s1 + $0x2b0] sm:$0xff]
        %v687 = vld [vmem:[%s1 + $0x2b8] sm:$0xff]
        %v688 = vld [vmem:[%s1 + $0x2c0] sm:$0xff]
        %v689 = vld [vmem:[%s1 + $0x2c8] sm:$0xff]
        %v690 = vld [vmem:[%s1 + $0x2d0] sm:$0xff]
        %v691 = vld [vmem:[%s1 + $0x2d8] sm:$0xff]
        %v692 = vld [vmem:[%s1 + $0x2e0] sm:$0xff]
        %v693 = vld [vmem:[%s1 + $0x2e8] sm:$0xff]
        %v694 = vld [vmem:[%s1 + $0x2f0] sm:$0xff]
        %v695 = vld [vmem:[%s1 + $0x2f8] sm:$0xff]
        %v696 = vld [vmem:[%s1 + $0x300] sm:$0xff]
        %v697 = vld [vmem:[%s1 + $0x308] sm:$0xff]
        %v698 = vld [vmem:[%s1 + $0x310] sm:$0xff]
        %v699 = vld [vmem:[%s1 + $0x318] sm:$0xff]
        %v700 = vld [vmem:[%s1 + $0x320] sm:$0xff]
        %v701 = vld [vmem:[%s1 + $0x328] sm:$0xff]
        %v702 = vld [vmem:[%s1 + $0x330] sm:$0xff]
        %v703 = vld [vmem:[%s1 + $0x338] sm:$0xff]
        %v704 = vld [vmem:[%s1 + $0x340] sm:$0xff]
        %v705 = vld [vmem:[%s1 + $0x348] sm:$0xff]
        %v706 = vld [vmem:[%s1 + $0x350] sm:$0xff]
        %v707 = vld [vmem:[%s1 + $0x358] sm:$0xff]
        %v708 = vld [vmem:[%s1 + $0x360] sm:$0xff]
        %v709 = vld [vmem:[%s1 + $0x368] sm:$0xff]
        %v710 = vld [vmem:[%s1 + $0x370] sm:$0xff]
        %v711 = vld [vmem:[%s1 + $0x378] sm:$0xff]
        %v712 = vld [vmem:[%s1 + $0x380] sm:$0xff]
        %v713 = vld [vmem:[%s1 + $0x388] sm:$0xff]
        %v714 = vld [vmem:[%s1 + $0x390] sm:$0xff]
        %v715 = vld [vmem:[%s1 + $0x398] sm:$0xff]
        %v716 = vld [vmem:[%s1 + $0x3a0] sm:$0xff]
        %v717 = vld [vmem:[%s1 + $0x3a8] sm:$0xff]
        %v718 = vld [vmem:[%s1 + $0x3b0] sm:$0xff]
        %v719 = vld [vmem:[%s1 + $0x3b8] sm:$0xff]
        %v720 = vld [vmem:[%s1 + $0x3c0] sm:$0xff]
        %v721 = vld [vmem:[%s1 + $0x3c8] sm:$0xff]
        %v722 = vld [vmem:[%s1 + $0x3d0] sm:$0xff]
        %v723 = vld [vmem:[%s1 + $0x3d8] sm:$0xff]
        %v724 = vld [vmem:[%s1 + $0x3e0] sm:$0xff]
        %v725 = vld [vmem:[%s1 + $0x3e8] sm:$0xff]
        %v726 = vld [vmem:[%s1 + $0x3f0] sm:$0xff]
        %v727 = vld [vmem:[%s1 + $0x3f8] sm:$0xff]
        %v728 = vld [vmem:[%s1 + $0x400] sm:$0xff]
        %v729 = vld [vmem:[%s1 + $0x408] sm:$0xff]
        %v730 = vld [vmem:[%s1 + $0x410] sm:$0xff]
        %v731 = vld [vmem:[%s1 + $0x418] sm:$0xff]
        %v732 = vld [vmem:[%s1 + $0x420] sm:$0xff]
        %v733 = vld [vmem:[%s1 + $0x428] sm:$0xff]
        %v734 = vld [vmem:[%s1 + $0x430] sm:$0xff]
        %v735 = vld [vmem:[%s1 + $0x438] sm:$0xff]
        %v736 = vld [vmem:[%s1 + $0x440] sm:$0xff]
        %v737 = vld [vmem:[%s1 + $0x448] sm:$0xff]
        %v738 = vld [vmem:[%s1 + $0x450] sm:$0xff]
        %v739 = vld [vmem:[%s1 + $0x458] sm:$0xff]
        %v740 = vld [vmem:[%s1 + $0x460] sm:$0xff]
        %v741 = vld [vmem:[%s1 + $0x468] sm:$0xff]
        %v742 = vld [vmem:[%s1 + $0x470] sm:$0xff]
        %v743 = vld [vmem:[%s1 + $0x478] sm:$0xff]
        %744 = vmatprep.subr.mxu0 0.0
        %745 = vmatpush1.msra.mxu0 %v600
        %746 = vmatprep.subr.mxu0 0.0
        %747 = vmatpush1.msra.mxu0 %v601
        %748 = vmatprep.subr.mxu0 0.0
        %749 = vmatpush1.msra.mxu0 %v602
        %750 = vmatprep.subr.mxu0 0.0
        %751 = vmatpush1.msra.mxu0 %v603
        %752 = vmatprep.subr.mxu0 0.0
        %753 = vmatpush1.msra.mxu0 %v604
        %754 = vmatprep.subr.mxu0 0.0
        %755 = vmatpush1.msra.mxu0 %v605
        %756 = vmatprep.subr.mxu0 0.0
        %757 = vmatpush1.msra.mxu0 %v606
        %758 = vmatprep.subr.mxu0 0.0
        %759 = vmatpush1.msra.mxu0 %v607
        %760 = vmatprep.subr.mxu0 0.0
        %761 = vmatpush1.msra.mxu0 %v608
        %762 = vmatprep.subr.mxu0 0.0
        %763 = vmatpush1.msra.mxu0 %v609
        %764 = vmatprep.subr.mxu0 0.0
        %765 = vmatpush1.msra.mxu0 %v610
        %766 = vmatprep.subr.mxu0 0.0
        %767 = vmatpush1.msra.mxu0 %v611
        %768 = vmatprep.subr.mxu0 0.0
        %769 = vmatpush1.msra.mxu0 %v612
        %770 = vmatprep.subr.mxu0 0.0
        %771 = vmatpush1.msra.mxu0 %v613
        %772 = vmatprep.subr.mxu0 0.0
        %773 = vmatpush1.msra.mxu0 %v614
        %774 = vmatprep.subr.mxu0 0.0
        %775 = vmatpush1.msra.mxu0 %v615
        %776 = vmatprep.subr.mxu0 0.0
        %777 = vmatpush1.msra.mxu0 %v616
        %778 = vmatprep.subr.mxu0 0.0
        %779 = vmatpush1.msra.mxu0 %v617
        %780 = vmatprep.subr.mxu0 0.0
        %781 = vmatpush1.msra.mxu0 %v618
        %782 = vmatprep.subr.mxu0 0.0
        %783 = vmatpush1.msra.mxu0 %v619
        %784 = vmatprep.subr.mxu0 0.0
        %785 = vmatpush1.msra.mxu0 %v620
        %786 = vmatprep.subr.mxu0 0.0
        %787 = vmatpush1.msra.mxu0 %v621
        %788 = vmatprep.subr.mxu0 0.0
        %789 = vmatpush1.msra.mxu0 %v622
        %790 = vmatprep.subr.mxu0 0.0
        %791 = vmatpush1.msra.mxu0 %v623
        %792 = vmatprep.subr.mxu0 0.0
        %793 = vmatpush1.msra.mxu0 %v624
        %794 = vmatprep.subr.mxu0 0.0
        %795 = vmatpush1.msra.mxu0 %v625
        %796 = vmatprep.subr.mxu0 0.0
        %797 = vmatpush1.msra.mxu0 %v626
        %798 = vmatprep.subr.mxu0 0.0
        %799 = vmatpush1.msra.mxu0 %v627
        %800 = vmatprep.subr.mxu0 0.0
        %801 = vmatpush1.msra.mxu0 %v628
        %802 = vmatprep.subr.mxu0 0.0
        %803 = vmatpush1.msra.mxu0 %v629
        %804 = vmatprep.subr.mxu0 0.0
        %805 = vmatpush1.msra.mxu0 %v630
        %806 = vmatprep.subr.mxu0 0.0
        %807 = vmatpush1.msra.mxu0 %v631
        %808 = vmatprep.mubr.f32.mxu0 %v343
        %809 = vmatmul.mubr.f32.gmra.mrb[0].mxu0 %v238
        %v810 = vpop.f32.mrb[0].mxu0
        %v811 = vadd.f32 0.0, %v810
        %v812 = vpop.f32.mrb[0].mxu0
        %813 = vmatprep.mubr.f32.mxu0 %v345
        %814 = vmatmul.mubr.f32.gmra.mrb[0].mxu0 %v239
        %v815 = vpop.f32.mrb[0].mxu0
        %v816 = vadd.f32 0.0, %v815
        %v817 = vpop.f32.mrb[0].mxu0
        %818 = vmatprep.mubr.f32.mxu0 %v348
        %819 = vmatmul.mubr.f32.gmra.mrb[0].mxu0 %v241
        %v820 = vpop.f32.mrb[0].mxu0
        %v821 = vadd.f32 0.0, %v820
        %v822 = vpop.f32.mrb[0].mxu0
        %823 = vmatprep.mubr.f32.mxu0 %v350
        %824 = vmatmul.mubr.f32.gmra.mrb[0].mxu0 %v242
        %v825 = vpop.f32.mrb[0].mxu0
        %v826 = vadd.f32 0.0, %v825
        %v827 = vpop.f32.mrb[0].mxu0
        %828 = vmatprep.mubr.f32.mxu0 %v353
        %829 = vmatmul.mubr.f32.gmra.mrb[0].mxu0 %v244
        %v830 = vpop.f32.mrb[0].mxu0
        %v831 = vadd.f32 0.0, %v830
        %v832 = vpop.f32.mrb[0].mxu0
        %833 = vmatprep.mubr.f32.mxu0 %v355
        %834 = vmatmul.mubr.f32.gmra.mrb[0].mxu0 %v245
        %v835 = vpop.f32.mrb[0].mxu0
        %v836 = vadd.f32 0.0, %v835
        %v837 = vpop.f32.mrb[0].mxu0
        %838 = vmatprep.mubr.f32.mxu0 %v358
        %839 = vmatmul.mubr.f32.gmra.mrb[0].mxu0 %v247
        %v840 = vpop.f32.mrb[0].mxu0
        %v841 = vadd.f32 0.0, %v840
        %v842 = vpop.f32.mrb[0].mxu0
        %843 = vmatprep.mubr.f32.mxu0 %v360
        %844 = vmatmul.mubr.f32.gmra.mrb[0].mxu0 %v248
        %v845 = vpop.f32.mrb[0].mxu0
        %v846 = vadd.f32 0.0, %v845
        %v847 = vpop.f32.mrb[0].mxu0
        %848 = vmatprep.mubr.f32.mxu0 %v363
        %849 = vmatmul.mubr.f32.gmra.mrb[0].mxu0 %v250
        %v850 = vpop.f32.mrb[0].mxu0
        %v851 = vadd.f32 0.0, %v850
        %v852 = vpop.f32.mrb[0].mxu0
        %853 = vmatprep.mubr.f32.mxu0 %v365
        %854 = vmatmul.mubr.f32.gmra.mrb[0].mxu0 %v251
        %v855 = vpop.f32.mrb[0].mxu0
        %v856 = vadd.f32 0.0, %v855
        %v857 = vpop.f32.mrb[0].mxu0
        %858 = vmatprep.mubr.f32.mxu0 %v368
        %859 = vmatmul.mubr.f32.gmra.mrb[0].mxu0 %v253
        %v860 = vpop.f32.mrb[0].mxu0
        %v861 = vadd.f32 0.0, %v860
        %v862 = vpop.f32.mrb[0].mxu0
        %863 = vmatprep.mubr.f32.mxu0 %v370
        %864 = vmatmul.mubr.f32.gmra.mrb[0].mxu0 %v254
        %v865 = vpop.f32.mrb[0].mxu0
        %v866 = vadd.f32 0.0, %v865
        %v867 = vpop.f32.mrb[0].mxu0
        %868 = vmatprep.mubr.f32.mxu0 %v373
        %869 = vmatmul.mubr.f32.gmra.mrb[0].mxu0 %v256
        %v870 = vpop.f32.mrb[0].mxu0
        %v871 = vadd.f32 0.0, %v870
        %v872 = vpop.f32.mrb[0].mxu0
        %873 = vmatprep.mubr.f32.mxu0 %v375
        %874 = vmatmul.mubr.f32.gmra.mrb[0].mxu0 %v257
        %v875 = vpop.f32.mrb[0].mxu0
        %v876 = vadd.f32 0.0, %v875
        %v877 = vpop.f32.mrb[0].mxu0
        %878 = vmatprep.mubr.f32.mxu0 %v378
        %879 = vmatmul.mubr.f32.gmra.mrb[0].mxu0 %v259
        %v880 = vpop.f32.mrb[0].mxu0
        %v881 = vadd.f32 0.0, %v880
        %v882 = vpop.f32.mrb[0].mxu0
        %883 = vmatprep.mubr.f32.mxu0 %v380
        %884 = vmatmul.mubr.f32.gmra.mrb[0].mxu0 %v260
        %v885 = vpop.f32.mrb[0].mxu0
        %v886 = vadd.f32 0.0, %v885
        %v887 = vpop.f32.mrb[0].mxu0
        %888 = vmatprep.mubr.f32.mxu0 %v383
        %889 = vmatmul.mubr.f32.gmra.mrb[0].mxu0 %v262
        %v890 = vpop.f32.mrb[0].mxu0
        %v891 = vadd.f32 0.0, %v890
        %v892 = vpop.f32.mrb[0].mxu0
        %893 = vmatprep.mubr.f32.mxu0 %v385
        %894 = vmatmul.mubr.f32.gmra.mrb[0].mxu0 %v263
        %v895 = vpop.f32.mrb[0].mxu0
        %v896 = vadd.f32 0.0, %v895
        %v897 = vpop.f32.mrb[0].mxu0
        %898 = vmatprep.mubr.f32.mxu0 %v388
        %899 = vmatmul.mubr.f32.gmra.mrb[0].mxu0 %v265
        %v900 = vpop.f32.mrb[0].mxu0
        %v901 = vadd.f32 0.0, %v900
        %v902 = vpop.f32.mrb[0].mxu0
        %903 = vmatprep.mubr.f32.mxu0 %v390
        %904 = vmatmul.mubr.f32.gmra.mrb[0].mxu0 %v266
        %v905 = vpop.f32.mrb[0].mxu0
        %v906 = vadd.f32 0.0, %v905
        %v907 = vpop.f32.mrb[0].mxu0
        %908 = vmatprep.mubr.f32.mxu0 %v393
        %909 = vmatmul.mubr.f32.gmra.mrb[0].mxu0 %v268
        %v910 = vpop.f32.mrb[0].mxu0
        %v911 = vadd.f32 0.0, %v910
        %v912 = vpop.f32.mrb[0].mxu0
        %913 = vmatprep.mubr.f32.mxu0 %v395
        %914 = vmatmul.mubr.f32.gmra.mrb[0].mxu0 %v269
        %v915 = vpop.f32.mrb[0].mxu0
        %v916 = vadd.f32 0.0, %v915
        %v917 = vpop.f32.mrb[0].mxu0
        %918 = vmatprep.mubr.f32.mxu0 %v398
        %919 = vmatmul.mubr.f32.gmra.mrb[0].mxu0 %v271
        %v920 = vpop.f32.mrb[0].mxu0
        %v921 = vadd.f32 0.0, %v920
        %v922 = vpop.f32.mrb[0].mxu0
        %923 = vmatprep.mubr.f32.mxu0 %v400
        %924 = vmatmul.mubr.f32.gmra.mrb[0].mxu0 %v272
        %v925 = vpop.f32.mrb[0].mxu0
        %v926 = vadd.f32 0.0, %v925
        %v927 = vpop.f32.mrb[0].mxu0
        %928 = vmatprep.mubr.f32.mxu0 %v403
        %929 = vmatmul.mubr.f32.gmra.mrb[0].mxu0 %v274
        %v930 = vpop.f32.mrb[0].mxu0
        %v931 = vadd.f32 0.0, %v930
        %v932 = vpop.f32.mrb[0].mxu0
        %933 = vmatprep.mubr.f32.mxu0 %v405
        %934 = vmatmul.mubr.f32.gmra.mrb[0].mxu0 %v275
        %v935 = vpop.f32.mrb[0].mxu0
        %v936 = vadd.f32 0.0, %v935
        %v937 = vpop.f32.mrb[0].mxu0
        %938 = vmatprep.mubr.f32.mxu0 %v408
        %939 = vmatmul.mubr.f32.gmra.mrb[0].mxu0 %v277
        %v940 = vpop.f32.mrb[0].mxu0
        %v941 = vadd.f32 0.0, %v940
        %v942 = vpop.f32.mrb[0].mxu0
        %943 = vmatprep.mubr.f32.mxu0 %v410
        %944 = vmatmul.mubr.f32.gmra.mrb[0].mxu0 %v278
        %v945 = vpop.f32.mrb[0].mxu0
        %v946 = vadd.f32 0.0, %v945
        %v947 = vpop.f32.mrb[0].mxu0
        %948 = vmatprep.mubr.f32.mxu0 %v413
        %949 = vmatmul.mubr.f32.gmra.mrb[0].mxu0 %v280
        %v950 = vpop.f32.mrb[0].mxu0
        %v951 = vadd.f32 0.0, %v950
        %v952 = vpop.f32.mrb[0].mxu0
        %953 = vmatprep.mubr.f32.mxu0 %v415
        %954 = vmatmul.mubr.f32.gmra.mrb[0].mxu0 %v281
        %v955 = vpop.f32.mrb[0].mxu0
        %v956 = vadd.f32 0.0, %v955
        %v957 = vpop.f32.mrb[0].mxu0
        %958 = vmatprep.mubr.f32.mxu0 %v418
        %959 = vmatmul.mubr.f32.gmra.mrb[0].mxu0 %v283
        %v960 = vpop.f32.mrb[0].mxu0
        %v961 = vadd.f32 0.0, %v960
        %v962 = vpop.f32.mrb[0].mxu0
        %963 = vmatprep.mubr.f32.mxu0 %v420
        %964 = vmatmul.mubr.f32.gmra.mrb[0].mxu0 %v284
        %v965 = vpop.f32.mrb[0].mxu0
        %v966 = vadd.f32 0.0, %v965
        %v967 = vpop.f32.mrb[0].mxu0
        %968 = vdwg.mxu0
        %969 = vmatprep.subr.mxu0 0.0
        %970 = vmatpush1.msra.mxu0 %v632
        %971 = vmatprep.subr.mxu0 0.0
        %972 = vmatpush1.msra.mxu0 %v633
        %973 = vmatprep.subr.mxu0 0.0
        %974 = vmatpush1.msra.mxu0 %v634
        %975 = vmatprep.subr.mxu0 0.0
        %976 = vmatpush1.msra.mxu0 %v635
        %977 = vmatprep.subr.mxu0 0.0
        %978 = vmatpush1.msra.mxu0 %v636
        %979 = vmatprep.subr.mxu0 0.0
        %980 = vmatpush1.msra.mxu0 %v637
        %981 = vmatprep.subr.mxu0 0.0
        %982 = vmatpush1.msra.mxu0 %v638
        %983 = vmatprep.subr.mxu0 0.0
        %984 = vmatpush1.msra.mxu0 %v639
        %985 = vmatprep.subr.mxu0 0.0
        %986 = vmatpush1.msra.mxu0 %v640
        %987 = vmatprep.subr.mxu0 0.0
        %988 = vmatpush1.msra.mxu0 %v641
        %989 = vmatprep.subr.mxu0 0.0
        %990 = vmatpush1.msra.mxu0 %v642
        %991 = vmatprep.subr.mxu0 0.0
        %992 = vmatpush1.msra.mxu0 %v643
        %993 = vmatprep.subr.mxu0 0.0
        %994 = vmatpush1.msra.mxu0 %v644
        %995 = vmatprep.subr.mxu0 0.0
        %996 = vmatpush1.msra.mxu0 %v645
        %997 = vmatprep.subr.mxu0 0.0
        %998 = vmatpush1.msra.mxu0 %v646
        %999 = vmatprep.subr.mxu0 0.0
        %1000 = vmatpush1.msra.mxu0 %v647
        %1001 = vmatprep.subr.mxu0 0.0
        %1002 = vmatpush1.msra.mxu0 %v648
        %1003 = vmatprep.subr.mxu0 0.0
        %1004 = vmatpush1.msra.mxu0 %v649
        %1005 = vmatprep.subr.mxu0 0.0
        %1006 = vmatpush1.msra.mxu0 %v650
        %1007 = vmatprep.subr.mxu0 0.0
        %1008 = vmatpush1.msra.mxu0 %v651
        %1009 = vmatprep.subr.mxu0 0.0
        %1010 = vmatpush1.msra.mxu0 %v652
        %1011 = vmatprep.subr.mxu0 0.0
        %1012 = vmatpush1.msra.mxu0 %v653
        %1013 = vmatprep.subr.mxu0 0.0
        %1014 = vmatpush1.msra.mxu0 %v654
        %1015 = vmatprep.subr.mxu0 0.0
        %1016 = vmatpush1.msra.mxu0 %v655
        %1017 = vmatprep.subr.mxu0 0.0
        %1018 = vmatpush1.msra.mxu0 %v656
        %1019 = vmatprep.subr.mxu0 0.0
        %1020 = vmatpush1.msra.mxu0 %v657
        %1021 = vmatprep.subr.mxu0 0.0
        %1022 = vmatpush1.msra.mxu0 %v658
        %1023 = vmatprep.subr.mxu0 0.0
        %1024 = vmatpush1.msra.mxu0 %v659
        %1025 = vmatprep.subr.mxu0 0.0
        %1026 = vmatpush1.msra.mxu0 %v660
        %1027 = vmatprep.subr.mxu0 0.0
        %1028 = vmatpush1.msra.mxu0 %v661
        %1029 = vmatprep.subr.mxu0 0.0
        %1030 = vmatpush1.msra.mxu0 %v662
        %1031 = vmatprep.subr.mxu0 0.0
        %1032 = vmatpush1.msra.mxu0 %v663
        %1033 = vmatprep.mubr.f32.mxu0 %v241
        %1034 = vmatmul.mubr.f32.gmra.mrb[0].mxu0 %v456
        %v1035 = vpop.f32.mrb[0].mxu0
        %v1036 = vadd.f32 %v811, %v1035
        %v1037 = vpop.f32.mrb[0].mxu0
        %1038 = vmatprep.mubr.f32.mxu0 %v242
        %1039 = vmatmul.mubr.f32.gmra.mrb[0].mxu0 %v458
        %v1040 = vpop.f32.mrb[0].mxu0
        %v1041 = vadd.f32 %v816, %v1040
        %v1042 = vpop.f32.mrb[0].mxu0
        %1043 = vmatprep.mubr.f32.mxu0 %v244
        %1044 = vmatmul.mubr.f32.gmra.mrb[0].mxu0 %v461
        %v1045 = vpop.f32.mrb[0].mxu0
        %v1046 = vadd.f32 %v821, %v1045
        %v1047 = vpop.f32.mrb[0].mxu0
        %1048 = vmatprep.mubr.f32.mxu0 %v245
        %1049 = vmatmul.mubr.f32.gmra.mrb[0].mxu0 %v463
        %v1050 = vpop.f32.mrb[0].mxu0
        %v1051 = vadd.f32 %v826, %v1050
        %v1052 = vpop.f32.mrb[0].mxu0
        %1053 = vmatprep.mubr.f32.mxu0 %v247
        %1054 = vmatmul.mubr.f32.gmra.mrb[0].mxu0 %v466
        %v1055 = vpop.f32.mrb[0].mxu0
        %v1056 = vadd.f32 %v831, %v1055
        %v1057 = vpop.f32.mrb[0].mxu0
        %1058 = vmatprep.mubr.f32.mxu0 %v248
        %1059 = vmatmul.mubr.f32.gmra.mrb[0].mxu0 %v468
        %v1060 = vpop.f32.mrb[0].mxu0
        %v1061 = vadd.f32 %v836, %v1060
        %v1062 = vpop.f32.mrb[0].mxu0
        %1063 = vmatprep.mubr.f32.mxu0 %v250
        %1064 = vmatmul.mubr.f32.gmra.mrb[0].mxu0 %v471
        %v1065 = vpop.f32.mrb[0].mxu0
        %v1066 = vadd.f32 %v841, %v1065
        %v1067 = vpop.f32.mrb[0].mxu0
        %1068 = vmatprep.mubr.f32.mxu0 %v251
        %1069 = vmatmul.mubr.f32.gmra.mrb[0].mxu0 %v473
        %v1070 = vpop.f32.mrb[0].mxu0
        %v1071 = vadd.f32 %v846, %v1070
        %v1072 = vpop.f32.mrb[0].mxu0
        %1073 = vmatprep.mubr.f32.mxu0 %v253
        %1074 = vmatmul.mubr.f32.gmra.mrb[0].mxu0 %v476
        %v1075 = vpop.f32.mrb[0].mxu0
        %v1076 = vadd.f32 %v851, %v1075
        %v1077 = vpop.f32.mrb[0].mxu0
        %1078 = vmatprep.mubr.f32.mxu0 %v254
        %1079 = vmatmul.mubr.f32.gmra.mrb[0].mxu0 %v478
        %v1080 = vpop.f32.mrb[0].mxu0
        %v1081 = vadd.f32 %v856, %v1080
        %v1082 = vpop.f32.mrb[0].mxu0
        %1083 = vmatprep.mubr.f32.mxu0 %v256
        %1084 = vmatmul.mubr.f32.gmra.mrb[0].mxu0 %v481
        %v1085 = vpop.f32.mrb[0].mxu0
        %v1086 = vadd.f32 %v861, %v1085
        %v1087 = vpop.f32.mrb[0].mxu0
        %1088 = vmatprep.mubr.f32.mxu0 %v257
        %1089 = vmatmul.mubr.f32.gmra.mrb[0].mxu0 %v483
        %v1090 = vpop.f32.mrb[0].mxu0
        %v1091 = vadd.f32 %v866, %v1090
        %v1092 = vpop.f32.mrb[0].mxu0
        %1093 = vmatprep.mubr.f32.mxu0 %v259
        %1094 = vmatmul.mubr.f32.gmra.mrb[0].mxu0 %v486
        %v1095 = vpop.f32.mrb[0].mxu0
        %v1096 = vadd.f32 %v871, %v1095
        %v1097 = vpop.f32.mrb[0].mxu0
        %1098 = vmatprep.mubr.f32.mxu0 %v260
        %1099 = vmatmul.mubr.f32.gmra.mrb[0].mxu0 %v488
        %v1100 = vpop.f32.mrb[0].mxu0
        %v1101 = vadd.f32 %v876, %v1100
        %v1102 = vpop.f32.mrb[0].mxu0
        %1103 = vmatprep.mubr.f32.mxu0 %v262
        %1104 = vmatmul.mubr.f32.gmra.mrb[0].mxu0 %v491
        %v1105 = vpop.f32.mrb[0].mxu0
        %v1106 = vadd.f32 %v881, %v1105
        %v1107 = vpop.f32.mrb[0].mxu0
        %1108 = vmatprep.mubr.f32.mxu0 %v263
        %1109 = vmatmul.mubr.f32.gmra.mrb[0].mxu0 %v493
        %v1110 = vpop.f32.mrb[0].mxu0
        %v1111 = vadd.f32 %v886, %v1110
        %v1112 = vpop.f32.mrb[0].mxu0
        %1113 = vmatprep.mubr.f32.mxu0 %v265
        %1114 = vmatmul.mubr.f32.gmra.mrb[0].mxu0 %v496
        %v1115 = vpop.f32.mrb[0].mxu0
        %v1116 = vadd.f32 %v891, %v1115
        %v1117 = vpop.f32.mrb[0].mxu0
        %1118 = vmatprep.mubr.f32.mxu0 %v266
        %1119 = vmatmul.mubr.f32.gmra.mrb[0].mxu0 %v498
        %v1120 = vpop.f32.mrb[0].mxu0
        %v1121 = vadd.f32 %v896, %v1120
        %v1122 = vpop.f32.mrb[0].mxu0
        %1123 = vmatprep.mubr.f32.mxu0 %v268
        %1124 = vmatmul.mubr.f32.gmra.mrb[0].mxu0 %v501
        %v1125 = vpop.f32.mrb[0].mxu0
        %v1126 = vadd.f32 %v901, %v1125
        %v1127 = vpop.f32.mrb[0].mxu0
        %1128 = vmatprep.mubr.f32.mxu0 %v269
        %1129 = vmatmul.mubr.f32.gmra.mrb[0].mxu0 %v503
        %v1130 = vpop.f32.mrb[0].mxu0
        %v1131 = vadd.f32 %v906, %v1130
        %v1132 = vpop.f32.mrb[0].mxu0
        %1133 = vmatprep.mubr.f32.mxu0 %v271
        %1134 = vmatmul.mubr.f32.gmra.mrb[0].mxu0 %v506
        %v1135 = vpop.f32.mrb[0].mxu0
        %v1136 = vadd.f32 %v911, %v1135
        %v1137 = vpop.f32.mrb[0].mxu0
        %1138 = vmatprep.mubr.f32.mxu0 %v272
        %1139 = vmatmul.mubr.f32.gmra.mrb[0].mxu0 %v508
        %v1140 = vpop.f32.mrb[0].mxu0
        %v1141 = vadd.f32 %v916, %v1140
        %v1142 = vpop.f32.mrb[0].mxu0
        %1143 = vmatprep.mubr.f32.mxu0 %v274
        %1144 = vmatmul.mubr.f32.gmra.mrb[0].mxu0 %v511
        %v1145 = vpop.f32.mrb[0].mxu0
        %v1146 = vadd.f32 %v921, %v1145
        %v1147 = vpop.f32.mrb[0].mxu0
        %1148 = vmatprep.mubr.f32.mxu0 %v275
        %1149 = vmatmul.mubr.f32.gmra.mrb[0].mxu0 %v513
        %v1150 = vpop.f32.mrb[0].mxu0
        %v1151 = vadd.f32 %v926, %v1150
        %v1152 = vpop.f32.mrb[0].mxu0
        %1153 = vmatprep.mubr.f32.mxu0 %v277
        %1154 = vmatmul.mubr.f32.gmra.mrb[0].mxu0 %v516
        %v1155 = vpop.f32.mrb[0].mxu0
        %v1156 = vadd.f32 %v931, %v1155
        %v1157 = vpop.f32.mrb[0].mxu0
        %1158 = vmatprep.mubr.f32.mxu0 %v278
        %1159 = vmatmul.mubr.f32.gmra.mrb[0].mxu0 %v518
        %v1160 = vpop.f32.mrb[0].mxu0
        %v1161 = vadd.f32 %v936, %v1160
        %v1162 = vpop.f32.mrb[0].mxu0
        %1163 = vmatprep.mubr.f32.mxu0 %v280
        %1164 = vmatmul.mubr.f32.gmra.mrb[0].mxu0 %v521
        %v1165 = vpop.f32.mrb[0].mxu0
        %v1166 = vadd.f32 %v941, %v1165
        %v1167 = vpop.f32.mrb[0].mxu0
        %1168 = vmatprep.mubr.f32.mxu0 %v281
        %1169 = vmatmul.mubr.f32.gmra.mrb[0].mxu0 %v523
        %v1170 = vpop.f32.mrb[0].mxu0
        %v1171 = vadd.f32 %v946, %v1170
        %v1172 = vpop.f32.mrb[0].mxu0
        %1173 = vmatprep.mubr.f32.mxu0 %v283
        %1174 = vmatmul.mubr.f32.gmra.mrb[0].mxu0 %v526
        %v1175 = vpop.f32.mrb[0].mxu0
        %v1176 = vadd.f32 %v951, %v1175
        %v1177 = vpop.f32.mrb[0].mxu0
        %1178 = vmatprep.mubr.f32.mxu0 %v284
        %1179 = vmatmul.mubr.f32.gmra.mrb[0].mxu0 %v528
        %v1180 = vpop.f32.mrb[0].mxu0
        %v1181 = vadd.f32 %v956, %v1180
        %v1182 = vpop.f32.mrb[0].mxu0
        %1183 = vmatprep.mubr.f32.mxu0 %v286
        %1184 = vmatmul.mubr.f32.gmra.mrb[0].mxu0 %v531
        %v1185 = vpop.f32.mrb[0].mxu0
        %v1186 = vadd.f32 %v961, %v1185
        %v1187 = vpop.f32.mrb[0].mxu0
        %1188 = vmatprep.mubr.f32.mxu0 %v287
        %1189 = vmatmul.mubr.f32.gmra.mrb[0].mxu0 %v533
        %v1190 = vpop.f32.mrb[0].mxu0
        %v1191 = vadd.f32 %v966, %v1190
        %v1192 = vpop.f32.mrb[0].mxu0
        %1193 = vdwg.mxu0
        %1194 = vmatprep.subr.mxu0 0.0
        %1195 = vmatpush1.msra.mxu0 %v664
        %1196 = vmatprep.subr.mxu0 0.0
        %1197 = vmatpush1.msra.mxu0 %v665
        %1198 = vmatprep.subr.mxu0 0.0
        %1199 = vmatpush1.msra.mxu0 %v666
        %1200 = vmatprep.subr.mxu0 0.0
        %1201 = vmatpush1.msra.mxu0 %v667
        %1202 = vmatprep.subr.mxu0 0.0
        %1203 = vmatpush1.msra.mxu0 %v668
        %1204 = vmatprep.subr.mxu0 0.0
        %1205 = vmatpush1.msra.mxu0 %v669
        %1206 = vmatprep.subr.mxu0 0.0
        %1207 = vmatpush1.msra.mxu0 %v670
        %1208 = vmatprep.subr.mxu0 0.0
        %1209 = vmatpush1.msra.mxu0 %v671
        %1210 = vmatprep.subr.mxu0 0.0
        %1211 = vmatpush1.msra.mxu0 %v672
        %1212 = vmatprep.subr.mxu0 0.0
        %1213 = vmatpush1.msra.mxu0 %v673
        %1214 = vmatprep.subr.mxu0 0.0
        %1215 = vmatpush1.msra.mxu0 %v674
        %1216 = vmatprep.subr.mxu0 0.0
        %1217 = vmatpush1.msra.mxu0 %v675
        %1218 = vmatprep.subr.mxu0 0.0
        %1219 = vmatpush1.msra.mxu0 %v676
        %1220 = vmatprep.subr.mxu0 0.0
        %1221 = vmatpush1.msra.mxu0 %v677
        %1222 = vmatprep.subr.mxu0 0.0
        %1223 = vmatpush1.msra.mxu0 %v678
        %1224 = vmatprep.subr.mxu0 0.0
        %1225 = vmatpush1.msra.mxu0 %v679
        %1226 = vmatprep.subr.mxu0 0.0
        %1227 = vmatpush1.msra.mxu0 %v680
        %1228 = vmatprep.subr.mxu0 0.0
        %1229 = vmatpush1.msra.mxu0 %v681
        %1230 = vmatprep.subr.mxu0 0.0
        %1231 = vmatpush1.msra.mxu0 %v682
        %1232 = vmatprep.subr.mxu0 0.0
        %1233 = vmatpush1.msra.mxu0 %v683
        %1234 = vmatprep.subr.mxu0 0.0
        %1235 = vmatpush1.msra.mxu0 %v684
        %1236 = vmatprep.subr.mxu0 0.0
        %1237 = vmatpush1.msra.mxu0 %v685
        %1238 = vmatprep.subr.mxu0 0.0
        %1239 = vmatpush1.msra.mxu0 %v686
        %1240 = vmatprep.subr.mxu0 0.0
        %1241 = vmatpush1.msra.mxu0 %v687
        %1242 = vmatprep.subr.mxu0 0.0
        %1243 = vmatpush1.msra.mxu0 %v688
        %1244 = vmatprep.subr.mxu0 0.0
        %1245 = vmatpush1.msra.mxu0 %v689
        %1246 = vmatprep.subr.mxu0 0.0
        %1247 = vmatpush1.msra.mxu0 %v690
        %1248 = vmatprep.subr.mxu0 0.0
        %1249 = vmatpush1.msra.mxu0 %v691
        %1250 = vmatprep.subr.mxu0 0.0
        %1251 = vmatpush1.msra.mxu0 %v692
        %1252 = vmatprep.subr.mxu0 0.0
        %1253 = vmatpush1.msra.mxu0 %v693
        %1254 = vmatprep.subr.mxu0 0.0
        %1255 = vmatpush1.msra.mxu0 %v694
        %1256 = vmatprep.subr.mxu0 0.0
        %1257 = vmatpush1.msra.mxu0 %v695
        %1258 = vmatprep.mubr.f32.mxu0 %v461
        %1259 = vmatmul.mubr.f32.gmra.mrb[0].mxu0 %v348
        %v1260 = vpop.f32.mrb[0].mxu0
        %v1261 = vadd.f32 %v1036, %v1260
        %v1262 = vpop.f32.mrb[0].mxu0
        %1263 = vmatprep.mubr.f32.mxu0 %v463
        %1264 = vmatmul.mubr.f32.gmra.mrb[0].mxu0 %v350
        %v1265 = vpop.f32.mrb[0].mxu0
        %v1266 = vadd.f32 %v1041, %v1265
        %v1267 = vpop.f32.mrb[0].mxu0
        %1268 = vmatprep.mubr.f32.mxu0 %v466
        %1269 = vmatmul.mubr.f32.gmra.mrb[0].mxu0 %v353
        %v1270 = vpop.f32.mrb[0].mxu0
        %v1271 = vadd.f32 %v1046, %v1270
        %v1272 = vpop.f32.mrb[0].mxu0
        %1273 = vmatprep.mubr.f32.mxu0 %v468
        %1274 = vmatmul.mubr.f32.gmra.mrb[0].mxu0 %v355
        %v1275 = vpop.f32.mrb[0].mxu0
        %v1276 = vadd.f32 %v1051, %v1275
        %v1277 = vpop.f32.mrb[0].mxu0
        %1278 = vmatprep.mubr.f32.mxu0 %v471
        %1279 = vmatmul.mubr.f32.gmra.mrb[0].mxu0 %v358
        %v1280 = vpop.f32.mrb[0].mxu0
        %v1281 = vadd.f32 %v1056, %v1280
        %v1282 = vpop.f32.mrb[0].mxu0
        %1283 = vmatprep.mubr.f32.mxu0 %v473
        %1284 = vmatmul.mubr.f32.gmra.mrb[0].mxu0 %v360
        %v1285 = vpop.f32.mrb[0].mxu0
        %v1286 = vadd.f32 %v1061, %v1285
        %v1287 = vpop.f32.mrb[0].mxu0
        %1288 = vmatprep.mubr.f32.mxu0 %v476
        %1289 = vmatmul.mubr.f32.gmra.mrb[0].mxu0 %v363
        %v1290 = vpop.f32.mrb[0].mxu0
        %v1291 = vadd.f32 %v1066, %v1290
        %v1292 = vpop.f32.mrb[0].mxu0
        %1293 = vmatprep.mubr.f32.mxu0 %v478
        %1294 = vmatmul.mubr.f32.gmra.mrb[0].mxu0 %v365
        %v1295 = vpop.f32.mrb[0].mxu0
        %v1296 = vadd.f32 %v1071, %v1295
        %v1297 = vpop.f32.mrb[0].mxu0
        %1298 = vmatprep.mubr.f32.mxu0 %v481
        %1299 = vmatmul.mubr.f32.gmra.mrb[0].mxu0 %v368
        %v1300 = vpop.f32.mrb[0].mxu0
        %v1301 = vadd.f32 %v1076, %v1300
        %v1302 = vpop.f32.mrb[0].mxu0
        %1303 = vmatprep.mubr.f32.mxu0 %v483
        %1304 = vmatmul.mubr.f32.gmra.mrb[0].mxu0 %v370
        %v1305 = vpop.f32.mrb[0].mxu0
        %v1306 = vadd.f32 %v1081, %v1305
        %v1307 = vpop.f32.mrb[0].mxu0
        %1308 = vmatprep.mubr.f32.mxu0 %v486
        %1309 = vmatmul.mubr.f32.gmra.mrb[0].mxu0 %v373
        %v1310 = vpop.f32.mrb[0].mxu0
        %v1311 = vadd.f32 %v1086, %v1310
        %v1312 = vpop.f32.mrb[0].mxu0
        %1313 = vmatprep.mubr.f32.mxu0 %v488
        %1314 = vmatmul.mubr.f32.gmra.mrb[0].mxu0 %v375
        %v1315 = vpop.f32.mrb[0].mxu0
        %v1316 = vadd.f32 %v1091, %v1315
        %v1317 = vpop.f32.mrb[0].mxu0
        %1318 = vmatprep.mubr.f32.mxu0 %v491
        %1319 = vmatmul.mubr.f32.gmra.mrb[0].mxu0 %v378
        %v1320 = vpop.f32.mrb[0].mxu0
        %v1321 = vadd.f32 %v1096, %v1320
        %v1322 = vpop.f32.mrb[0].mxu0
        %1323 = vmatprep.mubr.f32.mxu0 %v493
        %1324 = vmatmul.mubr.f32.gmra.mrb[0].mxu0 %v380
        %v1325 = vpop.f32.mrb[0].mxu0
        %v1326 = vadd.f32 %v1101, %v1325
        %v1327 = vpop.f32.mrb[0].mxu0
        %1328 = vmatprep.mubr.f32.mxu0 %v496
        %1329 = vmatmul.mubr.f32.gmra.mrb[0].mxu0 %v383
        %v1330 = vpop.f32.mrb[0].mxu0
        %v1331 = vadd.f32 %v1106, %v1330
        %v1332 = vpop.f32.mrb[0].mxu0
        %1333 = vmatprep.mubr.f32.mxu0 %v498
        %1334 = vmatmul.mubr.f32.gmra.mrb[0].mxu0 %v385
        %v1335 = vpop.f32.mrb[0].mxu0
        %v1336 = vadd.f32 %v1111, %v1335
        %v1337 = vpop.f32.mrb[0].mxu0
        %1338 = vmatprep.mubr.f32.mxu0 %v501
        %1339 = vmatmul.mubr.f32.gmra.mrb[0].mxu0 %v388
        %v1340 = vpop.f32.mrb[0].mxu0
        %v1341 = vadd.f32 %v1116, %v1340
        %v1342 = vpop.f32.mrb[0].mxu0
        %1343 = vmatprep.mubr.f32.mxu0 %v503
        %1344 = vmatmul.mubr.f32.gmra.mrb[0].mxu0 %v390
        %v1345 = vpop.f32.mrb[0].mxu0
        %v1346 = vadd.f32 %v1121, %v1345
        %v1347 = vpop.f32.mrb[0].mxu0
        %1348 = vmatprep.mubr.f32.mxu0 %v506
        %1349 = vmatmul.mubr.f32.gmra.mrb[0].mxu0 %v393
        %v1350 = vpop.f32.mrb[0].mxu0
        %v1351 = vadd.f32 %v1126, %v1350
        %v1352 = vpop.f32.mrb[0].mxu0
        %1353 = vmatprep.mubr.f32.mxu0 %v508
        %1354 = vmatmul.mubr.f32.gmra.mrb[0].mxu0 %v395
        %v1355 = vpop.f32.mrb[0].mxu0
        %v1356 = vadd.f32 %v1131, %v1355
        %v1357 = vpop.f32.mrb[0].mxu0
        %1358 = vmatprep.mubr.f32.mxu0 %v511
        %1359 = vmatmul.mubr.f32.gmra.mrb[0].mxu0 %v398
        %v1360 = vpop.f32.mrb[0].mxu0
        %v1361 = vadd.f32 %v1136, %v1360
        %v1362 = vpop.f32.mrb[0].mxu0
        %1363 = vmatprep.mubr.f32.mxu0 %v513
        %1364 = vmatmul.mubr.f32.gmra.mrb[0].mxu0 %v400
        %v1365 = vpop.f32.mrb[0].mxu0
        %v1366 = vadd.f32 %v1141, %v1365
        %v1367 = vpop.f32.mrb[0].mxu0
        %1368 = vmatprep.mubr.f32.mxu0 %v516
        %1369 = vmatmul.mubr.f32.gmra.mrb[0].mxu0 %v403
        %v1370 = vpop.f32.mrb[0].mxu0
        %v1371 = vadd.f32 %v1146, %v1370
        %v1372 = vpop.f32.mrb[0].mxu0
        %1373 = vmatprep.mubr.f32.mxu0 %v518
        %1374 = vmatmul.mubr.f32.gmra.mrb[0].mxu0 %v405
        %v1375 = vpop.f32.mrb[0].mxu0
        %v1376 = vadd.f32 %v1151, %v1375
        %v1377 = vpop.f32.mrb[0].mxu0
        %1378 = vmatprep.mubr.f32.mxu0 %v521
        %1379 = vmatmul.mubr.f32.gmra.mrb[0].mxu0 %v408
        %v1380 = vpop.f32.mrb[0].mxu0
        %v1381 = vadd.f32 %v1156, %v1380
        %v1382 = vpop.f32.mrb[0].mxu0
        %1383 = vmatprep.mubr.f32.mxu0 %v523
        %1384 = vmatmul.mubr.f32.gmra.mrb[0].mxu0 %v410
        %v1385 = vpop.f32.mrb[0].mxu0
        %v1386 = vadd.f32 %v1161, %v1385
        %v1387 = vpop.f32.mrb[0].mxu0
        %1388 = vmatprep.mubr.f32.mxu0 %v526
        %1389 = vmatmul.mubr.f32.gmra.mrb[0].mxu0 %v413
        %v1390 = vpop.f32.mrb[0].mxu0
        %v1391 = vadd.f32 %v1166, %v1390
        %v1392 = vpop.f32.mrb[0].mxu0
        %1393 = vmatprep.mubr.f32.mxu0 %v528
        %1394 = vmatmul.mubr.f32.gmra.mrb[0].mxu0 %v415
        %v1395 = vpop.f32.mrb[0].mxu0
        %v1396 = vadd.f32 %v1171, %v1395
        %v1397 = vpop.f32.mrb[0].mxu0
        %1398 = vmatprep.mubr.f32.mxu0 %v531
        %1399 = vmatmul.mubr.f32.gmra.mrb[0].mxu0 %v418
        %v1400 = vpop.f32.mrb[0].mxu0
        %v1401 = vadd.f32 %v1176, %v1400
        %v1402 = vpop.f32.mrb[0].mxu0
        %1403 = vmatprep.mubr.f32.mxu0 %v533
        %1404 = vmatmul.mubr.f32.gmra.mrb[0].mxu0 %v420
        %v1405 = vpop.f32.mrb[0].mxu0
        %v1406 = vadd.f32 %v1181, %v1405
        %v1407 = vpop.f32.mrb[0].mxu0
        %1408 = vmatprep.mubr.f32.mxu0 %v578
        %1409 = vmatmul.mubr.f32.gmra.mrb[0].mxu0 %v571
        %v1410 = vpop.f32.mrb[0].mxu0
        %v1411 = vadd.f32 %v1186, %v1410
        %v1412 = vpop.f32.mrb[0].mxu0
        %1413 = vmatprep.mubr.f32.mxu0 %v580
        %1414 = vmatmul.mubr.f32.gmra.mrb[0].mxu0 %v573
        %v1415 = vpop.f32.mrb[0].mxu0
        %v1416 = vadd.f32 %v1191, %v1415
        %v1417 = vpop.f32.mrb[0].mxu0
        %1418 = vdwg.mxu0
        %1419 = vmatprep.subr.mxu0 0.0
        %1420 = vmatpush1.msra.mxu0 %v696
        %1421 = vmatprep.subr.mxu0 0.0
        %1422 = vmatpush1.msra.mxu0 %v697
        %1423 = vmatprep.subr.mxu0 0.0
        %1424 = vmatpush1.msra.mxu0 %v698
        %1425 = vmatprep.subr.mxu0 0.0
        %1426 = vmatpush1.msra.mxu0 %v699
        %1427 = vmatprep.subr.mxu0 0.0
        %1428 = vmatpush1.msra.mxu0 %v700
        %1429 = vmatprep.subr.mxu0 0.0
        %1430 = vmatpush1.msra.mxu0 %v701
        %1431 = vmatprep.subr.mxu0 0.0
        %1432 = vmatpush1.msra.mxu0 %v702
        %1433 = vmatprep.subr.mxu0 0.0
        %1434 = vmatpush1.msra.mxu0 %v703
        %1435 = vmatprep.subr.mxu0 0.0
        %1436 = vmatpush1.msra.mxu0 %v704
        %1437 = vmatprep.subr.mxu0 0.0
        %1438 = vmatpush1.msra.mxu0 %v705
        %1439 = vmatprep.subr.mxu0 0.0
        %1440 = vmatpush1.msra.mxu0 %v706
        %1441 = vmatprep.subr.mxu0 0.0
        %1442 = vmatpush1.msra.mxu0 %v707
        %1443 = vmatprep.subr.mxu0 0.0
        %1444 = vmatpush1.msra.mxu0 %v708
        %1445 = vmatprep.subr.mxu0 0.0
        %1446 = vmatpush1.msra.mxu0 %v709
        %1447 = vmatprep.subr.mxu0 0.0
        %1448 = vmatpush1.msra.mxu0 %v710
        %1449 = vmatprep.subr.mxu0 0.0
        %1450 = vmatpush1.msra.mxu0 %v711
        %1451 = vmatprep.subr.mxu0 0.0
        %1452 = vmatpush1.msra.mxu0 %v712
        %1453 = vmatprep.subr.mxu0 0.0
        %1454 = vmatpush1.msra.mxu0 %v713
        %1455 = vmatprep.subr.mxu0 0.0
        %1456 = vmatpush1.msra.mxu0 %v714
        %1457 = vmatprep.subr.mxu0 0.0
        %1458 = vmatpush1.msra.mxu0 %v715
        %1459 = vmatprep.subr.mxu0 0.0
        %1460 = vmatpush1.msra.mxu0 %v716
        %1461 = vmatprep.subr.mxu0 0.0
        %1462 = vmatpush1.msra.mxu0 %v717
        %1463 = vmatprep.subr.mxu0 0.0
        %1464 = vmatpush1.msra.mxu0 %v718
        %1465 = vmatprep.subr.mxu0 0.0
        %1466 = vmatpush1.msra.mxu0 %v719
        %1467 = vmatprep.subr.mxu0 0.0
        %1468 = vmatpush1.msra.mxu0 %v720
        %1469 = vmatprep.subr.mxu0 0.0
        %1470 = vmatpush1.msra.mxu0 %v721
        %1471 = vmatprep.subr.mxu0 0.0
        %1472 = vmatpush1.msra.mxu0 %v722
        %1473 = vmatprep.subr.mxu0 0.0
        %1474 = vmatpush1.msra.mxu0 %v723
        %1475 = vmatprep.subr.mxu0 0.0
        %1476 = vmatpush1.msra.mxu0 %v724
        %1477 = vmatprep.subr.mxu0 0.0
        %1478 = vmatpush1.msra.mxu0 %v725
        %1479 = vmatprep.subr.mxu0 0.0
        %1480 = vmatpush1.msra.mxu0 %v726
        %1481 = vmatprep.subr.mxu0 0.0
        %1482 = vmatpush1.msra.mxu0 %v727
        %1483 = vmatprep.mubr.f32.mxu0 %v353
        %1484 = vmatmul.mubr.f32.gmra.mrb[0].mxu0 %v244
        %v1485 = vpop.f32.mrb[0].mxu0
        %v1486 = vadd.f32 %v1261, %v1485
        %v1487 = vpop.f32.mrb[0].mxu0
        %1488 = vmatprep.mubr.f32.mxu0 %v355
        %1489 = vmatmul.mubr.f32.gmra.mrb[0].mxu0 %v245
        %v1490 = vpop.f32.mrb[0].mxu0
        %v1491 = vadd.f32 %v1266, %v1490
        %v1492 = vpop.f32.mrb[0].mxu0
        %1493 = vmatprep.mubr.f32.mxu0 %v358
        %1494 = vmatmul.mubr.f32.gmra.mrb[0].mxu0 %v247
        %v1495 = vpop.f32.mrb[0].mxu0
        %v1496 = vadd.f32 %v1271, %v1495
        %v1497 = vpop.f32.mrb[0].mxu0
        %1498 = vmatprep.mubr.f32.mxu0 %v360
        %1499 = vmatmul.mubr.f32.gmra.mrb[0].mxu0 %v248
        %v1500 = vpop.f32.mrb[0].mxu0
        %v1501 = vadd.f32 %v1276, %v1500
        %v1502 = vpop.f32.mrb[0].mxu0
        %1503 = vmatprep.mubr.f32.mxu0 %v363
        %1504 = vmatmul.mubr.f32.gmra.mrb[0].mxu0 %v250
        %v1505 = vpop.f32.mrb[0].mxu0
        %v1506 = vadd.f32 %v1281, %v1505
        %v1507 = vpop.f32.mrb[0].mxu0
        %1508 = vmatprep.mubr.f32.mxu0 %v365
        %1509 = vmatmul.mubr.f32.gmra.mrb[0].mxu0 %v251
        %v1510 = vpop.f32.mrb[0].mxu0
        %v1511 = vadd.f32 %v1286, %v1510
        %v1512 = vpop.f32.mrb[0].mxu0
        %1513 = vmatprep.mubr.f32.mxu0 %v368
        %1514 = vmatmul.mubr.f32.gmra.mrb[0].mxu0 %v253
        %v1515 = vpop.f32.mrb[0].mxu0
        %v1516 = vadd.f32 %v1291, %v1515
        %v1517 = vpop.f32.mrb[0].mxu0
        %1518 = vmatprep.mubr.f32.mxu0 %v370
        %1519 = vmatmul.mubr.f32.gmra.mrb[0].mxu0 %v254
        %v1520 = vpop.f32.mrb[0].mxu0
        %v1521 = vadd.f32 %v1296, %v1520
        %v1522 = vpop.f32.mrb[0].mxu0
        %1523 = vmatprep.mubr.f32.mxu0 %v373
        %1524 = vmatmul.mubr.f32.gmra.mrb[0].mxu0 %v256
        %v1525 = vpop.f32.mrb[0].mxu0
        %v1526 = vadd.f32 %v1301, %v1525
        %v1527 = vpop.f32.mrb[0].mxu0
        %1528 = vmatprep.mubr.f32.mxu0 %v375
        %1529 = vmatmul.mubr.f32.gmra.mrb[0].mxu0 %v257
        %v1530 = vpop.f32.mrb[0].mxu0
        %v1531 = vadd.f32 %v1306, %v1530
        %v1532 = vpop.f32.mrb[0].mxu0
        %1533 = vmatprep.mubr.f32.mxu0 %v378
        %1534 = vmatmul.mubr.f32.gmra.mrb[0].mxu0 %v259
        %v1535 = vpop.f32.mrb[0].mxu0
        %v1536 = vadd.f32 %v1311, %v1535
        %v1537 = vpop.f32.mrb[0].mxu0
        %1538 = vmatprep.mubr.f32.mxu0 %v380
        %1539 = vmatmul.mubr.f32.gmra.mrb[0].mxu0 %v260
        %v1540 = vpop.f32.mrb[0].mxu0
        %v1541 = vadd.f32 %v1316, %v1540
        %v1542 = vpop.f32.mrb[0].mxu0
        %1543 = vmatprep.mubr.f32.mxu0 %v383
        %1544 = vmatmul.mubr.f32.gmra.mrb[0].mxu0 %v262
        %v1545 = vpop.f32.mrb[0].mxu0
        %v1546 = vadd.f32 %v1321, %v1545
        %v1547 = vpop.f32.mrb[0].mxu0
        %1548 = vmatprep.mubr.f32.mxu0 %v385
        %1549 = vmatmul.mubr.f32.gmra.mrb[0].mxu0 %v263
        %v1550 = vpop.f32.mrb[0].mxu0
        %v1551 = vadd.f32 %v1326, %v1550
        %v1552 = vpop.f32.mrb[0].mxu0
        %1553 = vmatprep.mubr.f32.mxu0 %v388
        %1554 = vmatmul.mubr.f32.gmra.mrb[0].mxu0 %v265
        %v1555 = vpop.f32.mrb[0].mxu0
        %v1556 = vadd.f32 %v1331, %v1555
        %v1557 = vpop.f32.mrb[0].mxu0
        %1558 = vmatprep.mubr.f32.mxu0 %v390
        %1559 = vmatmul.mubr.f32.gmra.mrb[0].mxu0 %v266
        %v1560 = vpop.f32.mrb[0].mxu0
        %v1561 = vadd.f32 %v1336, %v1560
        %v1562 = vpop.f32.mrb[0].mxu0
        %1563 = vmatprep.mubr.f32.mxu0 %v393
        %1564 = vmatmul.mubr.f32.gmra.mrb[0].mxu0 %v268
        %v1565 = vpop.f32.mrb[0].mxu0
        %v1566 = vadd.f32 %v1341, %v1565
        %v1567 = vpop.f32.mrb[0].mxu0
        %1568 = vmatprep.mubr.f32.mxu0 %v395
        %1569 = vmatmul.mubr.f32.gmra.mrb[0].mxu0 %v269
        %v1570 = vpop.f32.mrb[0].mxu0
        %v1571 = vadd.f32 %v1346, %v1570
        %v1572 = vpop.f32.mrb[0].mxu0
        %1573 = vmatprep.mubr.f32.mxu0 %v398
        %1574 = vmatmul.mubr.f32.gmra.mrb[0].mxu0 %v271
        %v1575 = vpop.f32.mrb[0].mxu0
        %v1576 = vadd.f32 %v1351, %v1575
        %v1577 = vpop.f32.mrb[0].mxu0
        %1578 = vmatprep.mubr.f32.mxu0 %v400
        %1579 = vmatmul.mubr.f32.gmra.mrb[0].mxu0 %v272
        %v1580 = vpop.f32.mrb[0].mxu0
        %v1581 = vadd.f32 %v1356, %v1580
        %v1582 = vpop.f32.mrb[0].mxu0
        %1583 = vmatprep.mubr.f32.mxu0 %v403
        %1584 = vmatmul.mubr.f32.gmra.mrb[0].mxu0 %v274
        %v1585 = vpop.f32.mrb[0].mxu0
        %v1586 = vadd.f32 %v1361, %v1585
        %v1587 = vpop.f32.mrb[0].mxu0
        %1588 = vmatprep.mubr.f32.mxu0 %v405
        %1589 = vmatmul.mubr.f32.gmra.mrb[0].mxu0 %v275
        %v1590 = vpop.f32.mrb[0].mxu0
        %v1591 = vadd.f32 %v1366, %v1590
        %v1592 = vpop.f32.mrb[0].mxu0
        %1593 = vmatprep.mubr.f32.mxu0 %v408
        %1594 = vmatmul.mubr.f32.gmra.mrb[0].mxu0 %v277
        %v1595 = vpop.f32.mrb[0].mxu0
        %v1596 = vadd.f32 %v1371, %v1595
        %v1597 = vpop.f32.mrb[0].mxu0
        %1598 = vmatprep.mubr.f32.mxu0 %v410
        %1599 = vmatmul.mubr.f32.gmra.mrb[0].mxu0 %v278
        %v1600 = vpop.f32.mrb[0].mxu0
        %v1601 = vadd.f32 %v1376, %v1600
        %v1602 = vpop.f32.mrb[0].mxu0
        %1603 = vmatprep.mubr.f32.mxu0 %v413
        %1604 = vmatmul.mubr.f32.gmra.mrb[0].mxu0 %v280
        %v1605 = vpop.f32.mrb[0].mxu0
        %v1606 = vadd.f32 %v1381, %v1605
        %v1607 = vpop.f32.mrb[0].mxu0
        %1608 = vmatprep.mubr.f32.mxu0 %v415
        %1609 = vmatmul.mubr.f32.gmra.mrb[0].mxu0 %v281
        %v1610 = vpop.f32.mrb[0].mxu0
        %v1611 = vadd.f32 %v1386, %v1610
        %v1612 = vpop.f32.mrb[0].mxu0
        %1613 = vmatprep.mubr.f32.mxu0 %v418
        %1614 = vmatmul.mubr.f32.gmra.mrb[0].mxu0 %v283
        %v1615 = vpop.f32.mrb[0].mxu0
        %v1616 = vadd.f32 %v1391, %v1615
        %v1617 = vpop.f32.mrb[0].mxu0
        %1618 = vmatprep.mubr.f32.mxu0 %v420
        %1619 = vmatmul.mubr.f32.gmra.mrb[0].mxu0 %v284
        %v1620 = vpop.f32.mrb[0].mxu0
        %v1621 = vadd.f32 %v1396, %v1620
        %v1622 = vpop.f32.mrb[0].mxu0
        %1623 = vmatprep.mubr.f32.mxu0 %v571
        %1624 = vmatmul.mubr.f32.gmra.mrb[0].mxu0 %v286
        %v1625 = vpop.f32.mrb[0].mxu0
        %v1626 = vadd.f32 %v1401, %v1625
        %v1627 = vpop.f32.mrb[0].mxu0
        %1628 = vmatprep.mubr.f32.mxu0 %v573
        %1629 = vmatmul.mubr.f32.gmra.mrb[0].mxu0 %v287
        %v1630 = vpop.f32.mrb[0].mxu0
        %v1631 = vadd.f32 %v1406, %v1630
        %v1632 = vpop.f32.mrb[0].mxu0
        %1633 = vmatprep.mubr.f32.mxu0 %v588
        %1634 = vmatmul.mubr.f32.gmra.mrb[0].mxu0 %v289
        %v1635 = vpop.f32.mrb[0].mxu0
        %v1636 = vadd.f32 %v1411, %v1635
        %v1637 = vpop.f32.mrb[0].mxu0
        %1638 = vmatprep.mubr.f32.mxu0 %v590
        %1639 = vmatmul.mubr.f32.gmra.mrb[0].mxu0 %v290
        %v1640 = vpop.f32.mrb[0].mxu0
        %v1641 = vadd.f32 %v1416, %v1640
        %v1642 = vpop.f32.mrb[0].mxu0
        %1643 = vdwg.mxu0
        %1644 = vmatprep.subr.mxu0 0.0
        %1645 = vmatpush1.msra.mxu0 %v728
        %1646 = vmatprep.subr.mxu0 0.0
        %1647 = vmatpush1.msra.mxu0 %v729
        %1648 = vmatprep.subr.mxu0 0.0
        %1649 = vmatpush1.msra.mxu0 %v730
        %1650 = vmatprep.subr.mxu0 0.0
        %1651 = vmatpush1.msra.mxu0 %v731
        %1652 = vmatprep.subr.mxu0 0.0
        %1653 = vmatpush1.msra.mxu0 %v732
        %1654 = vmatprep.subr.mxu0 0.0
        %1655 = vmatpush1.msra.mxu0 %v733
        %1656 = vmatprep.subr.mxu0 0.0
        %1657 = vmatpush1.msra.mxu0 %v734
        %1658 = vmatprep.subr.mxu0 0.0
        %1659 = vmatpush1.msra.mxu0 %v735
        %1660 = vmatprep.subr.mxu0 0.0
        %1661 = vmatpush1.msra.mxu0 %v736
        %1662 = vmatprep.subr.mxu0 0.0
        %1663 = vmatpush1.msra.mxu0 %v737
        %1664 = vmatprep.subr.mxu0 0.0
        %1665 = vmatpush1.msra.mxu0 %v738
        %1666 = vmatprep.subr.mxu0 0.0
        %1667 = vmatpush1.msra.mxu0 %v739
        %1668 = vmatprep.subr.mxu0 0.0
        %1669 = vmatpush1.msra.mxu0 %v740
        %1670 = vmatprep.subr.mxu0 0.0
        %1671 = vmatpush1.msra.mxu0 %v741
        %1672 = vmatprep.subr.mxu0 0.0
        %1673 = vmatpush1.msra.mxu0 %v742
        %1674 = vmatprep.subr.mxu0 0.0
        %1675 = vmatpush1.msra.mxu0 %v743
        %1676 = vmatprep.subr.mxu0 0.0
        %1677 = vmatpush1.msra.mxu0 0.0
        %1678 = vmatprep.subr.mxu0 0.0
        %1679 = vmatpush1.msra.mxu0 0.0
        %1680 = vmatprep.subr.mxu0 0.0
        %1681 = vmatpush1.msra.mxu0 0.0
        %1682 = vmatprep.subr.mxu0 0.0
        %1683 = vmatpush1.msra.mxu0 0.0
        %1684 = vmatprep.subr.mxu0 0.0
        %1685 = vmatpush1.msra.mxu0 0.0
        %1686 = vmatprep.subr.mxu0 0.0
        %1687 = vmatpush1.msra.mxu0 0.0
        %1688 = vmatprep.subr.mxu0 0.0
        %1689 = vmatpush1.msra.mxu0 0.0
        %1690 = vmatprep.subr.mxu0 0.0
        %1691 = vmatpush1.msra.mxu0 0.0
        %1692 = vmatprep.subr.mxu0 0.0
        %1693 = vmatpush1.msra.mxu0 0.0
        %1694 = vmatprep.subr.mxu0 0.0
        %1695 = vmatpush1.msra.mxu0 0.0
        %1696 = vmatprep.subr.mxu0 0.0
        %1697 = vmatpush1.msra.mxu0 0.0
        %1698 = vmatprep.subr.mxu0 0.0
        %1699 = vmatpush1.msra.mxu0 0.0
        %1700 = vmatprep.subr.mxu0 0.0
        %1701 = vmatpush1.msra.mxu0 0.0
        %1702 = vmatprep.subr.mxu0 0.0
        %1703 = vmatpush1.msra.mxu0 0.0
        %1704 = vmatprep.subr.mxu0 0.0
        %1705 = vmatpush1.msra.mxu0 0.0
        %1706 = vmatprep.subr.mxu0 0.0
        %1707 = vmatpush1.msra.mxu0 0.0
        %1708 = vmatprep.mubr.f32.mxu0 0.0
        %1709 = vmatmul.mubr.f32.gmra.mrb[0].mxu0 %v466
        %v1710 = vpop.f32.mrb[0].mxu0
        %v1711 = vadd.f32 %v1486, %v1710
        %v1712 = vpop.f32.mrb[0].mxu0
        %1713 = vmatprep.mubr.f32.mxu0 0.0
        %1714 = vmatmul.mubr.f32.gmra.mrb[0].mxu0 %v468
        %v1715 = vpop.f32.mrb[0].mxu0
        %v1716 = vadd.f32 %v1491, %v1715
        %v1717 = vpop.f32.mrb[0].mxu0
        %1718 = vmatprep.mubr.f32.mxu0 0.0
        %1719 = vmatmul.mubr.f32.gmra.mrb[0].mxu0 %v471
        %v1720 = vpop.f32.mrb[0].mxu0
        %v1721 = vadd.f32 %v1496, %v1720
        %v1722 = vpop.f32.mrb[0].mxu0
        %1723 = vmatprep.mubr.f32.mxu0 0.0
        %1724 = vmatmul.mubr.f32.gmra.mrb[0].mxu0 %v473
        %v1725 = vpop.f32.mrb[0].mxu0
        %v1726 = vadd.f32 %v1501, %v1725
        %v1727 = vpop.f32.mrb[0].mxu0
        %1728 = vmatprep.mubr.f32.mxu0 0.0
        %1729 = vmatmul.mubr.f32.gmra.mrb[0].mxu0 %v476
        %v1730 = vpop.f32.mrb[0].mxu0
        %v1731 = vadd.f32 %v1506, %v1730
        %v1732 = vpop.f32.mrb[0].mxu0
        %1733 = vmatprep.mubr.f32.mxu0 0.0
        %1734 = vmatmul.mubr.f32.gmra.mrb[0].mxu0 %v478
        %v1735 = vpop.f32.mrb[0].mxu0
        %v1736 = vadd.f32 %v1511, %v1735
        %v1737 = vpop.f32.mrb[0].mxu0
        %1738 = vmatprep.mubr.f32.mxu0 0.0
        %1739 = vmatmul.mubr.f32.gmra.mrb[0].mxu0 %v481
        %v1740 = vpop.f32.mrb[0].mxu0
        %v1741 = vadd.f32 %v1516, %v1740
        %v1742 = vpop.f32.mrb[0].mxu0
        %1743 = vmatprep.mubr.f32.mxu0 0.0
        %1744 = vmatmul.mubr.f32.gmra.mrb[0].mxu0 %v483
        %v1745 = vpop.f32.mrb[0].mxu0
        %v1746 = vadd.f32 %v1521, %v1745
        %v1747 = vpop.f32.mrb[0].mxu0
        %1748 = vmatprep.mubr.f32.mxu0 0.0
        %1749 = vmatmul.mubr.f32.gmra.mrb[0].mxu0 %v486
        %v1750 = vpop.f32.mrb[0].mxu0
        %v1751 = vadd.f32 %v1526, %v1750
        %v1752 = vpop.f32.mrb[0].mxu0
        %1753 = vmatprep.mubr.f32.mxu0 0.0
        %1754 = vmatmul.mubr.f32.gmra.mrb[0].mxu0 %v488
        %v1755 = vpop.f32.mrb[0].mxu0
        %v1756 = vadd.f32 %v1531, %v1755
        %v1757 = vpop.f32.mrb[0].mxu0
        %1758 = vmatprep.mubr.f32.mxu0 0.0
        %1759 = vmatmul.mubr.f32.gmra.mrb[0].mxu0 %v491
        %v1760 = vpop.f32.mrb[0].mxu0
        %v1761 = vadd.f32 %v1536, %v1760
        %v1762 = vpop.f32.mrb[0].mxu0
        %1763 = vmatprep.mubr.f32.mxu0 0.0
        %1764 = vmatmul.mubr.f32.gmra.mrb[0].mxu0 %v493
        %v1765 = vpop.f32.mrb[0].mxu0
        %v1766 = vadd.f32 %v1541, %v1765
        %v1767 = vpop.f32.mrb[0].mxu0
        %1768 = vmatprep.mubr.f32.mxu0 0.0
        %1769 = vmatmul.mubr.f32.gmra.mrb[0].mxu0 %v496
        %v1770 = vpop.f32.mrb[0].mxu0
        %v1771 = vadd.f32 %v1546, %v1770
        %v1772 = vpop.f32.mrb[0].mxu0
        %1773 = vmatprep.mubr.f32.mxu0 0.0
        %1774 = vmatmul.mubr.f32.gmra.mrb[0].mxu0 %v498
        %v1775 = vpop.f32.mrb[0].mxu0
        %v1776 = vadd.f32 %v1551, %v1775
        %v1777 = vpop.f32.mrb[0].mxu0
        %1778 = vmatprep.mubr.f32.mxu0 0.0
        %1779 = vmatmul.mubr.f32.gmra.mrb[0].mxu0 %v501
        %v1780 = vpop.f32.mrb[0].mxu0
        %v1781 = vadd.f32 %v1556, %v1780
        %v1782 = vpop.f32.mrb[0].mxu0
        %1783 = vmatprep.mubr.f32.mxu0 0.0
        %1784 = vmatmul.mubr.f32.gmra.mrb[0].mxu0 %v503
        %v1785 = vpop.f32.mrb[0].mxu0
        %v1786 = vadd.f32 %v1561, %v1785
        %v1787 = vpop.f32.mrb[0].mxu0
        %1788 = vmatprep.mubr.f32.mxu0 0.0
        %1789 = vmatmul.mubr.f32.gmra.mrb[0].mxu0 %v506
        %v1790 = vpop.f32.mrb[0].mxu0
        %v1791 = vadd.f32 %v1566, %v1790
        %v1792 = vpop.f32.mrb[0].mxu0
        %1793 = vmatprep.mubr.f32.mxu0 0.0
        %1794 = vmatmul.mubr.f32.gmra.mrb[0].mxu0 %v508
        %v1795 = vpop.f32.mrb[0].mxu0
        %v1796 = vadd.f32 %v1571, %v1795
        %v1797 = vpop.f32.mrb[0].mxu0
        %1798 = vmatprep.mubr.f32.mxu0 0.0
        %1799 = vmatmul.mubr.f32.gmra.mrb[0].mxu0 %v511
        %v1800 = vpop.f32.mrb[0].mxu0
        %v1801 = vadd.f32 %v1576, %v1800
        %v1802 = vpop.f32.mrb[0].mxu0
        %1803 = vmatprep.mubr.f32.mxu0 0.0
        %1804 = vmatmul.mubr.f32.gmra.mrb[0].mxu0 %v513
        %v1805 = vpop.f32.mrb[0].mxu0
        %v1806 = vadd.f32 %v1581, %v1805
        %v1807 = vpop.f32.mrb[0].mxu0
        %1808 = vmatprep.mubr.f32.mxu0 0.0
        %1809 = vmatmul.mubr.f32.gmra.mrb[0].mxu0 %v516
        %v1810 = vpop.f32.mrb[0].mxu0
        %v1811 = vadd.f32 %v1586, %v1810
        %v1812 = vpop.f32.mrb[0].mxu0
        %1813 = vmatprep.mubr.f32.mxu0 0.0
        %1814 = vmatmul.mubr.f32.gmra.mrb[0].mxu0 %v518
        %v1815 = vpop.f32.mrb[0].mxu0
        %v1816 = vadd.f32 %v1591, %v1815
        %v1817 = vpop.f32.mrb[0].mxu0
        %1818 = vmatprep.mubr.f32.mxu0 0.0
        %1819 = vmatmul.mubr.f32.gmra.mrb[0].mxu0 %v521
        %v1820 = vpop.f32.mrb[0].mxu0
        %v1821 = vadd.f32 %v1596, %v1820
        %v1822 = vpop.f32.mrb[0].mxu0
        %1823 = vmatprep.mubr.f32.mxu0 0.0
        %1824 = vmatmul.mubr.f32.gmra.mrb[0].mxu0 %v523
        %v1825 = vpop.f32.mrb[0].mxu0
        %v1826 = vadd.f32 %v1601, %v1825
        %v1827 = vpop.f32.mrb[0].mxu0
        %1828 = vmatprep.mubr.f32.mxu0 0.0
        %1829 = vmatmul.mubr.f32.gmra.mrb[0].mxu0 %v526
        %v1830 = vpop.f32.mrb[0].mxu0
        %v1831 = vadd.f32 %v1606, %v1830
        %v1832 = vpop.f32.mrb[0].mxu0
        %1833 = vmatprep.mubr.f32.mxu0 0.0
        %1834 = vmatmul.mubr.f32.gmra.mrb[0].mxu0 %v528
        %v1835 = vpop.f32.mrb[0].mxu0
        %v1836 = vadd.f32 %v1611, %v1835
        %v1837 = vpop.f32.mrb[0].mxu0
        %1838 = vmatprep.mubr.f32.mxu0 0.0
        %1839 = vmatmul.mubr.f32.gmra.mrb[0].mxu0 %v531
        %v1840 = vpop.f32.mrb[0].mxu0
        %v1841 = vadd.f32 %v1616, %v1840
        %v1842 = vpop.f32.mrb[0].mxu0
        %1843 = vmatprep.mubr.f32.mxu0 0.0
        %1844 = vmatmul.mubr.f32.gmra.mrb[0].mxu0 %v533
        %v1845 = vpop.f32.mrb[0].mxu0
        %v1846 = vadd.f32 %v1621, %v1845
        %v1847 = vpop.f32.mrb[0].mxu0
        %1848 = vmatprep.mubr.f32.mxu0 0.0
        %1849 = vmatmul.mubr.f32.gmra.mrb[0].mxu0 %v578
        %v1850 = vpop.f32.mrb[0].mxu0
        %v1851 = vadd.f32 %v1626, %v1850
        %v1852 = vpop.f32.mrb[0].mxu0
        %1853 = vmatprep.mubr.f32.mxu0 0.0
        %1854 = vmatmul.mubr.f32.gmra.mrb[0].mxu0 %v580
        %v1855 = vpop.f32.mrb[0].mxu0
        %v1856 = vadd.f32 %v1631, %v1855
        %v1857 = vpop.f32.mrb[0].mxu0
        %1858 = vmatprep.mubr.f32.mxu0 0.0
        %1859 = vmatmul.mubr.f32.gmra.mrb[0].mxu0 %v595
        %v1860 = vpop.f32.mrb[0].mxu0
        %v1861 = vadd.f32 %v1636, %v1860
        %v1862 = vpop.f32.mrb[0].mxu0
        %1863 = vmatprep.mubr.f32.mxu0 0.0
        %1864 = vmatmul.mubr.f32.gmra.mrb[0].mxu0 %v597
        %v1865 = vpop.f32.mrb[0].mxu0
        %v1866 = vadd.f32 %v1641, %v1865
        %v1867 = vpop.f32.mrb[0].mxu0
        %1868 = vdwg.mxu0
        %1869 = vst [vmem:[#allocation2] sm:$0xff] 0.0
        %1870 = vst [vmem:[#allocation2 + $0x8] sm:$0xff] 0.0
        %1871 = vst [vmem:[#allocation2 + $0x10] sm:$0x3] 0.0
        %s1872 = scalar_lea.vmem [#allocation2], 408
        %1873 = vst [vmem:[%s1872] sm:$0xff] 0.0
        %1874 = vst [vmem:[%s1872 + $0x8] sm:$0xff] 0.0
        %1875 = vst [vmem:[%s1872 + $0x10] sm:$0x3] 0.0
        %1876 = vst [vmem:[#allocation2] sm:$0x1] 0.0
        %1877 = vst [vmem:[#allocation2 + $0x18] sm:$0x1] 0.0
        %1878 = vst [vmem:[#allocation2 + $0x30] sm:$0x1] 0.0
        %1879 = vst [vmem:[#allocation2 + $0x48] sm:$0x1] 0.0
        %1880 = vst [vmem:[#allocation2 + $0x60] sm:$0x1] 0.0
        %1881 = vst [vmem:[#allocation2 + $0x78] sm:$0x1] 0.0
        %1882 = vst [vmem:[#allocation2 + $0x90] sm:$0x1] 0.0
        %1883 = vst [vmem:[#allocation2 + $0xa8] sm:$0x1] 0.0
        %1884 = vst [vmem:[#allocation2 + $0xc0] sm:$0x1] 0.0
        %1885 = vst [vmem:[#allocation2 + $0xd8] sm:$0x1] 0.0
        %1886 = vst [vmem:[#allocation2 + $0xf0] sm:$0x1] 0.0
        %1887 = vst [vmem:[#allocation2 + $0x108] sm:$0x1] 0.0
        %1888 = vst [vmem:[#allocation2 + $0x120] sm:$0x1] 0.0
        %1889 = vst [vmem:[#allocation2 + $0x138] sm:$0x1] 0.0
        %1890 = vst [vmem:[#allocation2 + $0x150] sm:$0x1] 0.0
        %1891 = vst [vmem:[#allocation2 + $0x168] sm:$0x1] 0.0
        %1892 = vst [vmem:[#allocation2 + $0x180] sm:$0x1] 0.0
        %1893 = vst [vmem:[#allocation2 + $0x198] sm:$0x1] 0.0
        %1894 = vst [vmem:[#allocation2 + $0x11] sm:$0x1] 0.0
        %1895 = vst [vmem:[#allocation2 + $0x29] sm:$0x1] 0.0
        %1896 = vst [vmem:[#allocation2 + $0x41] sm:$0x1] 0.0
        %1897 = vst [vmem:[#allocation2 + $0x59] sm:$0x1] 0.0
        %1898 = vst [vmem:[#allocation2 + $0x71] sm:$0x1] 0.0
        %1899 = vst [vmem:[#allocation2 + $0x89] sm:$0x1] 0.0
        %1900 = vst [vmem:[#allocation2 + $0xa1] sm:$0x1] 0.0
        %1901 = vst [vmem:[#allocation2 + $0xb9] sm:$0x1] 0.0
        %1902 = vst [vmem:[#allocation2 + $0xd1] sm:$0x1] 0.0
        %1903 = vst [vmem:[#allocation2 + $0xe9] sm:$0x1] 0.0
        %1904 = vst [vmem:[#allocation2 + $0x101] sm:$0x1] 0.0
        %1905 = vst [vmem:[#allocation2 + $0x119] sm:$0x1] 0.0
        %1906 = vst [vmem:[#allocation2 + $0x131] sm:$0x1] 0.0
        %1907 = vst [vmem:[#allocation2 + $0x149] sm:$0x1] 0.0
        %1908 = vst [vmem:[#allocation2 + $0x161] sm:$0x1] 0.0
        %1909 = vst [vmem:[#allocation2 + $0x179] sm:$0x1] 0.0
        %1910 = vst [vmem:[#allocation2 + $0x191] sm:$0x1] 0.0
        %1911 = vst [vmem:[#allocation2 + $0x1a9] sm:$0x1] 0.0
        %v1912 = vmax.f32 %v1711, 0.0
        %v1913 = vmax.f32 %v1716, 0.0
        %v1914 = vmax.f32 %v1721, 0.0
        %v1915 = vmax.f32 %v1726, 0.0
        %v1916 = vmax.f32 %v1731, 0.0
        %v1917 = vmax.f32 %v1736, 0.0
        %v1918 = vmax.f32 %v1741, 0.0
        %v1919 = vmax.f32 %v1746, 0.0
        %v1920 = vmax.f32 %v1751, 0.0
        %v1921 = vmax.f32 %v1756, 0.0
        %v1922 = vmax.f32 %v1761, 0.0
        %v1923 = vmax.f32 %v1766, 0.0
        %v1924 = vmax.f32 %v1771, 0.0
        %v1925 = vmax.f32 %v1776, 0.0
        %v1926 = vmax.f32 %v1781, 0.0
        %v1927 = vmax.f32 %v1786, 0.0
        %v1928 = vmax.f32 %v1791, 0.0
        %v1929 = vmax.f32 %v1796, 0.0
        %v1930 = vmax.f32 %v1801, 0.0
        %v1931 = vmax.f32 %v1806, 0.0
        %v1932 = vmax.f32 %v1811, 0.0
        %v1933 = vmax.f32 %v1816, 0.0
        %v1934 = vmax.f32 %v1821, 0.0
        %v1935 = vmax.f32 %v1826, 0.0
        %v1936 = vmax.f32 %v1831, 0.0
        %v1937 = vmax.f32 %v1836, 0.0
        %v1938 = vmax.f32 %v1841, 0.0
        %v1939 = vmax.f32 %v1846, 0.0
        %v1940 = vmax.f32 %v1851, 0.0
        %v1941 = vmax.f32 %v1856, 0.0
        %v1942 = vmax.f32 %v1861, 0.0
        %v1943 = vmax.f32 %v1866, 0.0
        %s1944 = scalar_lea.vmem [#allocation2], 24
        %1945 = vst [vmem:[%s1944 + $0x1] sm:$0xff] %v1912
        %1946 = vst [vmem:[%s1944 + $0x9] sm:$0xff] %v1913
        %1947 = vst [vmem:[%s1944 + $0x19] sm:$0xff] %v1914
        %1948 = vst [vmem:[%s1944 + $0x21] sm:$0xff] %v1915
        %1949 = vst [vmem:[%s1944 + $0x31] sm:$0xff] %v1916
        %1950 = vst [vmem:[%s1944 + $0x39] sm:$0xff] %v1917
        %1951 = vst [vmem:[%s1944 + $0x49] sm:$0xff] %v1918
        %1952 = vst [vmem:[%s1944 + $0x51] sm:$0xff] %v1919
        %1953 = vst [vmem:[%s1944 + $0x61] sm:$0xff] %v1920
        %1954 = vst [vmem:[%s1944 + $0x69] sm:$0xff] %v1921
        %1955 = vst [vmem:[%s1944 + $0x79] sm:$0xff] %v1922
        %1956 = vst [vmem:[%s1944 + $0x81] sm:$0xff] %v1923
        %1957 = vst [vmem:[%s1944 + $0x91] sm:$0xff] %v1924
        %1958 = vst [vmem:[%s1944 + $0x99] sm:$0xff] %v1925
        %1959 = vst [vmem:[%s1944 + $0xa9] sm:$0xff] %v1926
        %1960 = vst [vmem:[%s1944 + $0xb1] sm:$0xff] %v1927
        %1961 = vst [vmem:[%s1944 + $0xc1] sm:$0xff] %v1928
        %1962 = vst [vmem:[%s1944 + $0xc9] sm:$0xff] %v1929
        %1963 = vst [vmem:[%s1944 + $0xd9] sm:$0xff] %v1930
        %1964 = vst [vmem:[%s1944 + $0xe1] sm:$0xff] %v1931
        %1965 = vst [vmem:[%s1944 + $0xf1] sm:$0xff] %v1932
        %1966 = vst [vmem:[%s1944 + $0xf9] sm:$0xff] %v1933
        %1967 = vst [vmem:[%s1944 + $0x109] sm:$0xff] %v1934
        %1968 = vst [vmem:[%s1944 + $0x111] sm:$0xff] %v1935
        %1969 = vst [vmem:[%s1944 + $0x121] sm:$0xff] %v1936
        %1970 = vst [vmem:[%s1944 + $0x129] sm:$0xff] %v1937
        %1971 = vst [vmem:[%s1944 + $0x139] sm:$0xff] %v1938
        %1972 = vst [vmem:[%s1944 + $0x141] sm:$0xff] %v1939
        %1973 = vst [vmem:[%s1944 + $0x151] sm:$0xff] %v1940
        %1974 = vst [vmem:[%s1944 + $0x159] sm:$0xff] %v1941
        %1975 = vst [vmem:[%s1944 + $0x169] sm:$0xff] %v1942
        %1976 = vst [vmem:[%s1944 + $0x171] sm:$0xff] %v1943
        %v1977 = vld [vmem:[#allocation2] sm:$0xff]
        %v1978 = vld [vmem:[#allocation2 + $0x8] sm:$0xff]
        %v1979 = vld [vmem:[#allocation2 + $0x18] sm:$0xff]
        %v1980 = vld [vmem:[#allocation2 + $0x20] sm:$0xff]
        %v1981 = vld [vmem:[#allocation2 + $0x30] sm:$0xff]
        %v1982 = vld [vmem:[#allocation2 + $0x38] sm:$0xff]
        %v1983 = vld [vmem:[#allocation2 + $0x48] sm:$0xff]
        %v1984 = vld [vmem:[#allocation2 + $0x50] sm:$0xff]
        %v1985 = vld [vmem:[#allocation2 + $0x60] sm:$0xff]
        %v1986 = vld [vmem:[#allocation2 + $0x68] sm:$0xff]
        %v1987 = vld [vmem:[#allocation2 + $0x78] sm:$0xff]
        %v1988 = vld [vmem:[#allocation2 + $0x80] sm:$0xff]
        %v1989 = vld [vmem:[#allocation2 + $0x90] sm:$0xff]
        %v1990 = vld [vmem:[#allocation2 + $0x98] sm:$0xff]
        %v1991 = vld [vmem:[#allocation2 + $0xa8] sm:$0xff]
        %v1992 = vld [vmem:[#allocation2 + $0xb0] sm:$0xff]
        %v1993 = vld [vmem:[#allocation2 + $0xc0] sm:$0xff]
        %v1994 = vld [vmem:[#allocation2 + $0xc8] sm:$0xff]
        %v1995 = vld [vmem:[#allocation2 + $0xd8] sm:$0xff]
        %v1996 = vld [vmem:[#allocation2 + $0xe0] sm:$0xff]
        %v1997 = vld [vmem:[#allocation2 + $0xf0] sm:$0xff]
        %v1998 = vld [vmem:[#allocation2 + $0xf8] sm:$0xff]
        %v1999 = vld [vmem:[#allocation2 + $0x108] sm:$0xff]
        %v2000 = vld [vmem:[#allocation2 + $0x110] sm:$0xff]
        %v2001 = vld [vmem:[#allocation2 + $0x120] sm:$0xff]
        %v2002 = vld [vmem:[#allocation2 + $0x128] sm:$0xff]
        %v2003 = vld [vmem:[#allocation2 + $0x138] sm:$0xff]
        %v2004 = vld [vmem:[#allocation2 + $0x140] sm:$0xff]
        %v2005 = vld [vmem:[#allocation2 + $0x150] sm:$0xff]
        %v2006 = vld [vmem:[#allocation2 + $0x158] sm:$0xff]
        %v2007 = vld [vmem:[#allocation2 + $0x168] sm:$0xff]
        %v2008 = vld [vmem:[#allocation2 + $0x170] sm:$0xff]
        %v2009 = vld [vmem:[#allocation2 + $0x1] sm:$0xff]
        %v2010 = vld [vmem:[#allocation2 + $0x9] sm:$0xff]
        %v2011 = vld [vmem:[#allocation2 + $0x19] sm:$0xff]
        %v2012 = vld [vmem:[#allocation2 + $0x21] sm:$0xff]
        %v2013 = vld [vmem:[#allocation2 + $0x31] sm:$0xff]
        %v2014 = vld [vmem:[#allocation2 + $0x39] sm:$0xff]
        %v2015 = vld [vmem:[#allocation2 + $0x49] sm:$0xff]
        %v2016 = vld [vmem:[#allocation2 + $0x51] sm:$0xff]
        %v2017 = vld [vmem:[#allocation2 + $0x61] sm:$0xff]
        %v2018 = vld [vmem:[#allocation2 + $0x69] sm:$0xff]
        %v2019 = vld [vmem:[#allocation2 + $0x79] sm:$0xff]
        %v2020 = vld [vmem:[#allocation2 + $0x81] sm:$0xff]
        %v2021 = vld [vmem:[#allocation2 + $0x91] sm:$0xff]
        %v2022 = vld [vmem:[#allocation2 + $0x99] sm:$0xff]
        %v2023 = vld [vmem:[#allocation2 + $0xa9] sm:$0xff]
        %v2024 = vld [vmem:[#allocation2 + $0xb1] sm:$0xff]
        %v2025 = vld [vmem:[#allocation2 + $0xc1] sm:$0xff]
        %v2026 = vld [vmem:[#allocation2 + $0xc9] sm:$0xff]
        %v2027 = vld [vmem:[#allocation2 + $0xd9] sm:$0xff]
        %v2028 = vld [vmem:[#allocation2 + $0xe1] sm:$0xff]
        %v2029 = vld [vmem:[#allocation2 + $0xf1] sm:$0xff]
        %v2030 = vld [vmem:[#allocation2 + $0xf9] sm:$0xff]
        %v2031 = vld [vmem:[#allocation2 + $0x109] sm:$0xff]
        %v2032 = vld [vmem:[#allocation2 + $0x111] sm:$0xff]
        %v2033 = vld [vmem:[#allocation2 + $0x121] sm:$0xff]
        %v2034 = vld [vmem:[#allocation2 + $0x129] sm:$0xff]
        %v2035 = vld [vmem:[#allocation2 + $0x139] sm:$0xff]
        %v2036 = vld [vmem:[#allocation2 + $0x141] sm:$0xff]
        %v2037 = vld [vmem:[#allocation2 + $0x151] sm:$0xff]
        %v2038 = vld [vmem:[#allocation2 + $0x159] sm:$0xff]
        %v2039 = vld [vmem:[#allocation2 + $0x169] sm:$0xff]
        %v2040 = vld [vmem:[#allocation2 + $0x171] sm:$0xff]
        %v2041 = vld [vmem:[#allocation2 + $0x2] sm:$0xff]
        %v2042 = vld [vmem:[#allocation2 + $0xa] sm:$0xff]
        %v2043 = vld [vmem:[#allocation2 + $0x1a] sm:$0xff]
        %v2044 = vld [vmem:[#allocation2 + $0x22] sm:$0xff]
        %v2045 = vld [vmem:[#allocation2 + $0x32] sm:$0xff]
        %v2046 = vld [vmem:[#allocation2 + $0x3a] sm:$0xff]
        %v2047 = vld [vmem:[#allocation2 + $0x4a] sm:$0xff]
        %v2048 = vld [vmem:[#allocation2 + $0x52] sm:$0xff]
        %v2049 = vld [vmem:[#allocation2 + $0x62] sm:$0xff]
        %v2050 = vld [vmem:[#allocation2 + $0x6a] sm:$0xff]
        %v2051 = vld [vmem:[#allocation2 + $0x7a] sm:$0xff]
        %v2052 = vld [vmem:[#allocation2 + $0x82] sm:$0xff]
        %v2053 = vld [vmem:[#allocation2 + $0x92] sm:$0xff]
        %v2054 = vld [vmem:[#allocation2 + $0x9a] sm:$0xff]
        %v2055 = vld [vmem:[#allocation2 + $0xaa] sm:$0xff]
        %v2056 = vld [vmem:[#allocation2 + $0xb2] sm:$0xff]
        %v2057 = vld [vmem:[#allocation2 + $0xc2] sm:$0xff]
        %v2058 = vld [vmem:[#allocation2 + $0xca] sm:$0xff]
        %v2059 = vld [vmem:[#allocation2 + $0xda] sm:$0xff]
        %v2060 = vld [vmem:[#allocation2 + $0xe2] sm:$0xff]
        %v2061 = vld [vmem:[#allocation2 + $0xf2] sm:$0xff]
        %v2062 = vld [vmem:[#allocation2 + $0xfa] sm:$0xff]
        %v2063 = vld [vmem:[#allocation2 + $0x10a] sm:$0xff]
        %v2064 = vld [vmem:[#allocation2 + $0x112] sm:$0xff]
        %v2065 = vld [vmem:[#allocation2 + $0x122] sm:$0xff]
        %v2066 = vld [vmem:[#allocation2 + $0x12a] sm:$0xff]
        %v2067 = vld [vmem:[#allocation2 + $0x13a] sm:$0xff]
        %v2068 = vld [vmem:[#allocation2 + $0x142] sm:$0xff]
        %v2069 = vld [vmem:[#allocation2 + $0x152] sm:$0xff]
        %v2070 = vld [vmem:[#allocation2 + $0x15a] sm:$0xff]
        %v2071 = vld [vmem:[#allocation2 + $0x16a] sm:$0xff]
        %v2072 = vld [vmem:[#allocation2 + $0x172] sm:$0xff]
        %v2073 = vld [vmem:[%s1944] sm:$0xff]
        %v2074 = vld [vmem:[%s1944 + $0x8] sm:$0xff]
        %v2075 = vld [vmem:[%s1944 + $0x18] sm:$0xff]
        %v2076 = vld [vmem:[%s1944 + $0x20] sm:$0xff]
        %v2077 = vld [vmem:[%s1944 + $0x30] sm:$0xff]
        %v2078 = vld [vmem:[%s1944 + $0x38] sm:$0xff]
        %v2079 = vld [vmem:[%s1944 + $0x48] sm:$0xff]
        %v2080 = vld [vmem:[%s1944 + $0x50] sm:$0xff]
        %v2081 = vld [vmem:[%s1944 + $0x60] sm:$0xff]
        %v2082 = vld [vmem:[%s1944 + $0x68] sm:$0xff]
        %v2083 = vld [vmem:[%s1944 + $0x78] sm:$0xff]
        %v2084 = vld [vmem:[%s1944 + $0x80] sm:$0xff]
        %v2085 = vld [vmem:[%s1944 + $0x90] sm:$0xff]
        %v2086 = vld [vmem:[%s1944 + $0x98] sm:$0xff]
        %v2087 = vld [vmem:[%s1944 + $0xa8] sm:$0xff]
        %v2088 = vld [vmem:[%s1944 + $0xb0] sm:$0xff]
        %v2089 = vld [vmem:[%s1944 + $0xc0] sm:$0xff]
        %v2090 = vld [vmem:[%s1944 + $0xc8] sm:$0xff]
        %v2091 = vld [vmem:[%s1944 + $0xd8] sm:$0xff]
        %v2092 = vld [vmem:[%s1944 + $0xe0] sm:$0xff]
        %v2093 = vld [vmem:[%s1944 + $0xf0] sm:$0xff]
        %v2094 = vld [vmem:[%s1944 + $0xf8] sm:$0xff]
        %v2095 = vld [vmem:[%s1944 + $0x108] sm:$0xff]
        %v2096 = vld [vmem:[%s1944 + $0x110] sm:$0xff]
        %v2097 = vld [vmem:[%s1944 + $0x120] sm:$0xff]
        %v2098 = vld [vmem:[%s1944 + $0x128] sm:$0xff]
        %v2099 = vld [vmem:[%s1944 + $0x138] sm:$0xff]
        %v2100 = vld [vmem:[%s1944 + $0x140] sm:$0xff]
        %v2101 = vld [vmem:[%s1944 + $0x150] sm:$0xff]
        %v2102 = vld [vmem:[%s1944 + $0x158] sm:$0xff]
        %v2103 = vld [vmem:[%s1944 + $0x168] sm:$0xff]
        %v2104 = vld [vmem:[%s1944 + $0x170] sm:$0xff]
        %v2105 = vld [vmem:[%s1944 + $0x1] sm:$0xff]
        %v2106 = vld [vmem:[%s1944 + $0x9] sm:$0xff]
        %v2107 = vld [vmem:[%s1944 + $0x19] sm:$0xff]
        %v2108 = vld [vmem:[%s1944 + $0x21] sm:$0xff]
        %v2109 = vld [vmem:[%s1944 + $0x31] sm:$0xff]
        %v2110 = vld [vmem:[%s1944 + $0x39] sm:$0xff]
        %v2111 = vld [vmem:[%s1944 + $0x49] sm:$0xff]
        %v2112 = vld [vmem:[%s1944 + $0x51] sm:$0xff]
        %v2113 = vld [vmem:[%s1944 + $0x61] sm:$0xff]
        %v2114 = vld [vmem:[%s1944 + $0x69] sm:$0xff]
        %v2115 = vld [vmem:[%s1944 + $0x79] sm:$0xff]
        %v2116 = vld [vmem:[%s1944 + $0x81] sm:$0xff]
        %v2117 = vld [vmem:[%s1944 + $0x91] sm:$0xff]
        %v2118 = vld [vmem:[%s1944 + $0x99] sm:$0xff]
        %v2119 = vld [vmem:[%s1944 + $0xa9] sm:$0xff]
        %v2120 = vld [vmem:[%s1944 + $0xb1] sm:$0xff]
        %v2121 = vld [vmem:[%s1944 + $0xc1] sm:$0xff]
        %v2122 = vld [vmem:[%s1944 + $0xc9] sm:$0xff]
        %v2123 = vld [vmem:[%s1944 + $0xd9] sm:$0xff]
        %v2124 = vld [vmem:[%s1944 + $0xe1] sm:$0xff]
        %v2125 = vld [vmem:[%s1944 + $0xf1] sm:$0xff]
        %v2126 = vld [vmem:[%s1944 + $0xf9] sm:$0xff]
        %v2127 = vld [vmem:[%s1944 + $0x109] sm:$0xff]
        %v2128 = vld [vmem:[%s1944 + $0x111] sm:$0xff]
        %v2129 = vld [vmem:[%s1944 + $0x121] sm:$0xff]
        %v2130 = vld [vmem:[%s1944 + $0x129] sm:$0xff]
        %v2131 = vld [vmem:[%s1944 + $0x139] sm:$0xff]
        %v2132 = vld [vmem:[%s1944 + $0x141] sm:$0xff]
        %v2133 = vld [vmem:[%s1944 + $0x151] sm:$0xff]
        %v2134 = vld [vmem:[%s1944 + $0x159] sm:$0xff]
        %v2135 = vld [vmem:[%s1944 + $0x169] sm:$0xff]
        %v2136 = vld [vmem:[%s1944 + $0x171] sm:$0xff]
        %v2137 = vld [vmem:[%s1944 + $0x2] sm:$0xff]
        %v2138 = vld [vmem:[%s1944 + $0xa] sm:$0xff]
        %v2139 = vld [vmem:[%s1944 + $0x1a] sm:$0xff]
        %v2140 = vld [vmem:[%s1944 + $0x22] sm:$0xff]
        %v2141 = vld [vmem:[%s1944 + $0x32] sm:$0xff]
        %v2142 = vld [vmem:[%s1944 + $0x3a] sm:$0xff]
        %v2143 = vld [vmem:[%s1944 + $0x4a] sm:$0xff]
        %v2144 = vld [vmem:[%s1944 + $0x52] sm:$0xff]
        %v2145 = vld [vmem:[%s1944 + $0x62] sm:$0xff]
        %v2146 = vld [vmem:[%s1944 + $0x6a] sm:$0xff]
        %v2147 = vld [vmem:[%s1944 + $0x7a] sm:$0xff]
        %v2148 = vld [vmem:[%s1944 + $0x82] sm:$0xff]
        %v2149 = vld [vmem:[%s1944 + $0x92] sm:$0xff]
        %v2150 = vld [vmem:[%s1944 + $0x9a] sm:$0xff]
        %v2151 = vld [vmem:[%s1944 + $0xaa] sm:$0xff]
        %v2152 = vld [vmem:[%s1944 + $0xb2] sm:$0xff]
        %v2153 = vld [vmem:[%s1944 + $0xc2] sm:$0xff]
        %v2154 = vld [vmem:[%s1944 + $0xca] sm:$0xff]
        %v2155 = vld [vmem:[%s1944 + $0xda] sm:$0xff]
        %v2156 = vld [vmem:[%s1944 + $0xe2] sm:$0xff]
        %v2157 = vld [vmem:[%s1944 + $0xf2] sm:$0xff]
        %v2158 = vld [vmem:[%s1944 + $0xfa] sm:$0xff]
        %v2159 = vld [vmem:[%s1944 + $0x10a] sm:$0xff]
        %v2160 = vld [vmem:[%s1944 + $0x112] sm:$0xff]
        %v2161 = vld [vmem:[%s1944 + $0x122] sm:$0xff]
        %v2162 = vld [vmem:[%s1944 + $0x12a] sm:$0xff]
        %v2163 = vld [vmem:[%s1944 + $0x13a] sm:$0xff]
        %v2164 = vld [vmem:[%s1944 + $0x142] sm:$0xff]
        %v2165 = vld [vmem:[%s1944 + $0x152] sm:$0xff]
        %v2166 = vld [vmem:[%s1944 + $0x15a] sm:$0xff]
        %v2167 = vld [vmem:[%s1944 + $0x16a] sm:$0xff]
        %v2168 = vld [vmem:[%s1944 + $0x172] sm:$0xff]
        %s2169 = scalar_lea.vmem [#allocation2], 48
        %v2170 = vld [vmem:[%s2169] sm:$0xff]
        %v2171 = vld [vmem:[%s2169 + $0x8] sm:$0xff]
        %v2172 = vld [vmem:[%s2169 + $0x18] sm:$0xff]
        %v2173 = vld [vmem:[%s2169 + $0x20] sm:$0xff]
        %v2174 = vld [vmem:[%s2169 + $0x30] sm:$0xff]
        %v2175 = vld [vmem:[%s2169 + $0x38] sm:$0xff]
        %v2176 = vld [vmem:[%s2169 + $0x48] sm:$0xff]
        %v2177 = vld [vmem:[%s2169 + $0x50] sm:$0xff]
        %v2178 = vld [vmem:[%s2169 + $0x60] sm:$0xff]
        %v2179 = vld [vmem:[%s2169 + $0x68] sm:$0xff]
        %v2180 = vld [vmem:[%s2169 + $0x78] sm:$0xff]
        %v2181 = vld [vmem:[%s2169 + $0x80] sm:$0xff]
        %v2182 = vld [vmem:[%s2169 + $0x90] sm:$0xff]
        %v2183 = vld [vmem:[%s2169 + $0x98] sm:$0xff]
        %v2184 = vld [vmem:[%s2169 + $0xa8] sm:$0xff]
        %v2185 = vld [vmem:[%s2169 + $0xb0] sm:$0xff]
        %v2186 = vld [vmem:[%s2169 + $0xc0] sm:$0xff]
        %v2187 = vld [vmem:[%s2169 + $0xc8] sm:$0xff]
        %v2188 = vld [vmem:[%s2169 + $0xd8] sm:$0xff]
        %v2189 = vld [vmem:[%s2169 + $0xe0] sm:$0xff]
        %v2190 = vld [vmem:[%s2169 + $0xf0] sm:$0xff]
        %v2191 = vld [vmem:[%s2169 + $0xf8] sm:$0xff]
        %v2192 = vld [vmem:[%s2169 + $0x108] sm:$0xff]
        %v2193 = vld [vmem:[%s2169 + $0x110] sm:$0xff]
        %v2194 = vld [vmem:[%s2169 + $0x120] sm:$0xff]
        %v2195 = vld [vmem:[%s2169 + $0x128] sm:$0xff]
        %v2196 = vld [vmem:[%s2169 + $0x138] sm:$0xff]
        %v2197 = vld [vmem:[%s2169 + $0x140] sm:$0xff]
        %v2198 = vld [vmem:[%s2169 + $0x150] sm:$0xff]
        %v2199 = vld [vmem:[%s2169 + $0x158] sm:$0xff]
        %v2200 = vld [vmem:[%s2169 + $0x168] sm:$0xff]
        %v2201 = vld [vmem:[%s2169 + $0x170] sm:$0xff]
        %v2202 = vld [vmem:[%s2169 + $0x1] sm:$0xff]
        %v2203 = vld [vmem:[%s2169 + $0x9] sm:$0xff]
        %v2204 = vld [vmem:[%s2169 + $0x19] sm:$0xff]
        %v2205 = vld [vmem:[%s2169 + $0x21] sm:$0xff]
        %v2206 = vld [vmem:[%s2169 + $0x31] sm:$0xff]
        %v2207 = vld [vmem:[%s2169 + $0x39] sm:$0xff]
        %v2208 = vld [vmem:[%s2169 + $0x49] sm:$0xff]
        %v2209 = vld [vmem:[%s2169 + $0x51] sm:$0xff]
        %v2210 = vld [vmem:[%s2169 + $0x61] sm:$0xff]
        %v2211 = vld [vmem:[%s2169 + $0x69] sm:$0xff]
        %v2212 = vld [vmem:[%s2169 + $0x79] sm:$0xff]
        %v2213 = vld [vmem:[%s2169 + $0x81] sm:$0xff]
        %v2214 = vld [vmem:[%s2169 + $0x91] sm:$0xff]
        %v2215 = vld [vmem:[%s2169 + $0x99] sm:$0xff]
        %v2216 = vld [vmem:[%s2169 + $0xa9] sm:$0xff]
        %v2217 = vld [vmem:[%s2169 + $0xb1] sm:$0xff]
        %v2218 = vld [vmem:[%s2169 + $0xc1] sm:$0xff]
        %v2219 = vld [vmem:[%s2169 + $0xc9] sm:$0xff]
        %v2220 = vld [vmem:[%s2169 + $0xd9] sm:$0xff]
        %v2221 = vld [vmem:[%s2169 + $0xe1] sm:$0xff]
        %v2222 = vld [vmem:[%s2169 + $0xf1] sm:$0xff]
        %v2223 = vld [vmem:[%s2169 + $0xf9] sm:$0xff]
        %v2224 = vld [vmem:[%s2169 + $0x109] sm:$0xff]
        %v2225 = vld [vmem:[%s2169 + $0x111] sm:$0xff]
        %v2226 = vld [vmem:[%s2169 + $0x121] sm:$0xff]
        %v2227 = vld [vmem:[%s2169 + $0x129] sm:$0xff]
        %v2228 = vld [vmem:[%s2169 + $0x139] sm:$0xff]
        %v2229 = vld [vmem:[%s2169 + $0x141] sm:$0xff]
        %v2230 = vld [vmem:[%s2169 + $0x151] sm:$0xff]
        %v2231 = vld [vmem:[%s2169 + $0x159] sm:$0xff]
        %v2232 = vld [vmem:[%s2169 + $0x169] sm:$0xff]
        %v2233 = vld [vmem:[%s2169 + $0x171] sm:$0xff]
        %v2234 = vld [vmem:[%s2169 + $0x2] sm:$0xff]
        %v2235 = vld [vmem:[%s2169 + $0xa] sm:$0xff]
        %v2236 = vld [vmem:[%s2169 + $0x1a] sm:$0xff]
        %v2237 = vld [vmem:[%s2169 + $0x22] sm:$0xff]
        %v2238 = vld [vmem:[%s2169 + $0x32] sm:$0xff]
        %v2239 = vld [vmem:[%s2169 + $0x3a] sm:$0xff]
        %v2240 = vld [vmem:[%s2169 + $0x4a] sm:$0xff]
        %v2241 = vld [vmem:[%s2169 + $0x52] sm:$0xff]
        %v2242 = vld [vmem:[%s2169 + $0x62] sm:$0xff]
        %v2243 = vld [vmem:[%s2169 + $0x6a] sm:$0xff]
        %v2244 = vld [vmem:[%s2169 + $0x7a] sm:$0xff]
        %v2245 = vld [vmem:[%s2169 + $0x82] sm:$0xff]
        %v2246 = vld [vmem:[%s2169 + $0x92] sm:$0xff]
        %v2247 = vld [vmem:[%s2169 + $0x9a] sm:$0xff]
        %v2248 = vld [vmem:[%s2169 + $0xaa] sm:$0xff]
        %v2249 = vld [vmem:[%s2169 + $0xb2] sm:$0xff]
        %v2250 = vld [vmem:[%s2169 + $0xc2] sm:$0xff]
        %v2251 = vld [vmem:[%s2169 + $0xca] sm:$0xff]
        %v2252 = vld [vmem:[%s2169 + $0xda] sm:$0xff]
        %v2253 = vld [vmem:[%s2169 + $0xe2] sm:$0xff]
        %v2254 = vld [vmem:[%s2169 + $0xf2] sm:$0xff]
        %v2255 = vld [vmem:[%s2169 + $0xfa] sm:$0xff]
        %v2256 = vld [vmem:[%s2169 + $0x10a] sm:$0xff]
        %v2257 = vld [vmem:[%s2169 + $0x112] sm:$0xff]
        %v2258 = vld [vmem:[%s2169 + $0x122] sm:$0xff]
        %v2259 = vld [vmem:[%s2169 + $0x12a] sm:$0xff]
        %v2260 = vld [vmem:[%s2169 + $0x13a] sm:$0xff]
        %v2261 = vld [vmem:[%s2169 + $0x142] sm:$0xff]
        %v2262 = vld [vmem:[%s2169 + $0x152] sm:$0xff]
        %v2263 = vld [vmem:[%s2169 + $0x15a] sm:$0xff]
        %v2264 = vld [vmem:[%s2169 + $0x16a] sm:$0xff]
        %v2265 = vld [vmem:[%s2169 + $0x172] sm:$0xff]
        %v2266 = vld [vmem:[#allocation3] sm:$0xff]
        %v2267 = vld [vmem:[#allocation3 + $0x8] sm:$0xff]
        %v2268 = vld [vmem:[#allocation3 + $0x10] sm:$0xff]
        %v2269 = vld [vmem:[#allocation3 + $0x18] sm:$0xff]
        %v2270 = vld [vmem:[#allocation3 + $0x20] sm:$0xff]
        %v2271 = vld [vmem:[#allocation3 + $0x28] sm:$0xff]
        %v2272 = vld [vmem:[#allocation3 + $0x30] sm:$0xff]
        %v2273 = vld [vmem:[#allocation3 + $0x38] sm:$0xff]
        %v2274 = vld [vmem:[#allocation3 + $0x40] sm:$0xff]
        %v2275 = vld [vmem:[#allocation3 + $0x48] sm:$0xff]
        %v2276 = vld [vmem:[#allocation3 + $0x50] sm:$0xff]
        %v2277 = vld [vmem:[#allocation3 + $0x58] sm:$0xff]
        %v2278 = vld [vmem:[#allocation3 + $0x60] sm:$0xff]
        %v2279 = vld [vmem:[#allocation3 + $0x68] sm:$0xff]
        %v2280 = vld [vmem:[#allocation3 + $0x70] sm:$0xff]
        %v2281 = vld [vmem:[#allocation3 + $0x78] sm:$0xff]
        %v2282 = vld [vmem:[#allocation3 + $0x80] sm:$0xff]
        %v2283 = vld [vmem:[#allocation3 + $0x88] sm:$0xff]
        %v2284 = vld [vmem:[#allocation3 + $0x90] sm:$0xff]
        %v2285 = vld [vmem:[#allocation3 + $0x98] sm:$0xff]
        %v2286 = vld [vmem:[#allocation3 + $0xa0] sm:$0xff]
        %v2287 = vld [vmem:[#allocation3 + $0xa8] sm:$0xff]
        %v2288 = vld [vmem:[#allocation3 + $0xb0] sm:$0xff]
        %v2289 = vld [vmem:[#allocation3 + $0xb8] sm:$0xff]
        %v2290 = vld [vmem:[#allocation3 + $0xc0] sm:$0xff]
        %v2291 = vld [vmem:[#allocation3 + $0xc8] sm:$0xff]
        %v2292 = vld [vmem:[#allocation3 + $0xd0] sm:$0xff]
        %v2293 = vld [vmem:[#allocation3 + $0xd8] sm:$0xff]
        %v2294 = vld [vmem:[#allocation3 + $0xe0] sm:$0xff]
        %v2295 = vld [vmem:[#allocation3 + $0xe8] sm:$0xff]
        %v2296 = vld [vmem:[#allocation3 + $0xf0] sm:$0xff]
        %v2297 = vld [vmem:[#allocation3 + $0xf8] sm:$0xff]
        %v2298 = vld [vmem:[#allocation3 + $0x100] sm:$0xff]
        %v2299 = vld [vmem:[#allocation3 + $0x108] sm:$0xff]
        %v2300 = vld [vmem:[#allocation3 + $0x110] sm:$0xff]
        %v2301 = vld [vmem:[#allocation3 + $0x118] sm:$0xff]
        %v2302 = vld [vmem:[#allocation3 + $0x120] sm:$0xff]
        %v2303 = vld [vmem:[#allocation3 + $0x128] sm:$0xff]
        %v2304 = vld [vmem:[#allocation3 + $0x130] sm:$0xff]
        %v2305 = vld [vmem:[#allocation3 + $0x138] sm:$0xff]
        %v2306 = vld [vmem:[#allocation3 + $0x140] sm:$0xff]
        %v2307 = vld [vmem:[#allocation3 + $0x148] sm:$0xff]
        %v2308 = vld [vmem:[#allocation3 + $0x150] sm:$0xff]
        %v2309 = vld [vmem:[#allocation3 + $0x158] sm:$0xff]
        %v2310 = vld [vmem:[#allocation3 + $0x160] sm:$0xff]
        %v2311 = vld [vmem:[#allocation3 + $0x168] sm:$0xff]
        %v2312 = vld [vmem:[#allocation3 + $0x170] sm:$0xff]
        %v2313 = vld [vmem:[#allocation3 + $0x178] sm:$0xff]
        %v2314 = vld [vmem:[#allocation3 + $0x180] sm:$0xff]
        %v2315 = vld [vmem:[#allocation3 + $0x188] sm:$0xff]
        %v2316 = vld [vmem:[#allocation3 + $0x190] sm:$0xff]
        %v2317 = vld [vmem:[#allocation3 + $0x198] sm:$0xff]
        %v2318 = vld [vmem:[#allocation3 + $0x1a0] sm:$0xff]
        %v2319 = vld [vmem:[#allocation3 + $0x1a8] sm:$0xff]
        %v2320 = vld [vmem:[#allocation3 + $0x1b0] sm:$0xff]
        %v2321 = vld [vmem:[#allocation3 + $0x1b8] sm:$0xff]
        %v2322 = vld [vmem:[#allocation3 + $0x1c0] sm:$0xff]
        %v2323 = vld [vmem:[#allocation3 + $0x1c8] sm:$0xff]
        %v2324 = vld [vmem:[#allocation3 + $0x1d0] sm:$0xff]
        %v2325 = vld [vmem:[#allocation3 + $0x1d8] sm:$0xff]
        %v2326 = vld [vmem:[#allocation3 + $0x1e0] sm:$0xff]
        %v2327 = vld [vmem:[#allocation3 + $0x1e8] sm:$0xff]
        %v2328 = vld [vmem:[#allocation3 + $0x1f0] sm:$0xff]
        %v2329 = vld [vmem:[#allocation3 + $0x1f8] sm:$0xff]
        %v2330 = vld [vmem:[#allocation3 + $0x200] sm:$0xff]
        %v2331 = vld [vmem:[#allocation3 + $0x208] sm:$0xff]
        %v2332 = vld [vmem:[#allocation3 + $0x210] sm:$0xff]
        %v2333 = vld [vmem:[#allocation3 + $0x218] sm:$0xff]
        %v2334 = vld [vmem:[#allocation3 + $0x220] sm:$0xff]
        %v2335 = vld [vmem:[#allocation3 + $0x228] sm:$0xff]
        %v2336 = vld [vmem:[#allocation3 + $0x230] sm:$0xff]
        %v2337 = vld [vmem:[#allocation3 + $0x238] sm:$0xff]
        %v2338 = vld [vmem:[#allocation3 + $0x240] sm:$0xff]
        %v2339 = vld [vmem:[#allocation3 + $0x248] sm:$0xff]
        %v2340 = vld [vmem:[#allocation3 + $0x250] sm:$0xff]
        %v2341 = vld [vmem:[#allocation3 + $0x258] sm:$0xff]
        %v2342 = vld [vmem:[#allocation3 + $0x260] sm:$0xff]
        %v2343 = vld [vmem:[#allocation3 + $0x268] sm:$0xff]
        %v2344 = vld [vmem:[#allocation3 + $0x270] sm:$0xff]
        %v2345 = vld [vmem:[#allocation3 + $0x278] sm:$0xff]
        %v2346 = vld [vmem:[#allocation3 + $0x280] sm:$0xff]
        %v2347 = vld [vmem:[#allocation3 + $0x288] sm:$0xff]
        %v2348 = vld [vmem:[#allocation3 + $0x290] sm:$0xff]
        %v2349 = vld [vmem:[#allocation3 + $0x298] sm:$0xff]
        %v2350 = vld [vmem:[#allocation3 + $0x2a0] sm:$0xff]
        %v2351 = vld [vmem:[#allocation3 + $0x2a8] sm:$0xff]
        %v2352 = vld [vmem:[#allocation3 + $0x2b0] sm:$0xff]
        %v2353 = vld [vmem:[#allocation3 + $0x2b8] sm:$0xff]
        %v2354 = vld [vmem:[#allocation3 + $0x2c0] sm:$0xff]
        %v2355 = vld [vmem:[#allocation3 + $0x2c8] sm:$0xff]
        %v2356 = vld [vmem:[#allocation3 + $0x2d0] sm:$0xff]
        %v2357 = vld [vmem:[#allocation3 + $0x2d8] sm:$0xff]
        %v2358 = vld [vmem:[#allocation3 + $0x2e0] sm:$0xff]
        %v2359 = vld [vmem:[#allocation3 + $0x2e8] sm:$0xff]
        %v2360 = vld [vmem:[#allocation3 + $0x2f0] sm:$0xff]
        %v2361 = vld [vmem:[#allocation3 + $0x2f8] sm:$0xff]
        %v2362 = vld [vmem:[#allocation3 + $0x300] sm:$0xff]
        %v2363 = vld [vmem:[#allocation3 + $0x308] sm:$0xff]
        %v2364 = vld [vmem:[#allocation3 + $0x310] sm:$0xff]
        %v2365 = vld [vmem:[#allocation3 + $0x318] sm:$0xff]
        %v2366 = vld [vmem:[#allocation3 + $0x320] sm:$0xff]
        %v2367 = vld [vmem:[#allocation3 + $0x328] sm:$0xff]
        %v2368 = vld [vmem:[#allocation3 + $0x330] sm:$0xff]
        %v2369 = vld [vmem:[#allocation3 + $0x338] sm:$0xff]
        %v2370 = vld [vmem:[#allocation3 + $0x340] sm:$0xff]
        %v2371 = vld [vmem:[#allocation3 + $0x348] sm:$0xff]
        %v2372 = vld [vmem:[#allocation3 + $0x350] sm:$0xff]
        %v2373 = vld [vmem:[#allocation3 + $0x358] sm:$0xff]
        %v2374 = vld [vmem:[#allocation3 + $0x360] sm:$0xff]
        %v2375 = vld [vmem:[#allocation3 + $0x368] sm:$0xff]
        %v2376 = vld [vmem:[#allocation3 + $0x370] sm:$0xff]
        %v2377 = vld [vmem:[#allocation3 + $0x378] sm:$0xff]
        %v2378 = vld [vmem:[#allocation3 + $0x380] sm:$0xff]
        %v2379 = vld [vmem:[#allocation3 + $0x388] sm:$0xff]
        %v2380 = vld [vmem:[#allocation3 + $0x390] sm:$0xff]
        %v2381 = vld [vmem:[#allocation3 + $0x398] sm:$0xff]
        %v2382 = vld [vmem:[#allocation3 + $0x3a0] sm:$0xff]
        %v2383 = vld [vmem:[#allocation3 + $0x3a8] sm:$0xff]
        %v2384 = vld [vmem:[#allocation3 + $0x3b0] sm:$0xff]
        %v2385 = vld [vmem:[#allocation3 + $0x3b8] sm:$0xff]
        %v2386 = vld [vmem:[#allocation3 + $0x3c0] sm:$0xff]
        %v2387 = vld [vmem:[#allocation3 + $0x3c8] sm:$0xff]
        %v2388 = vld [vmem:[#allocation3 + $0x3d0] sm:$0xff]
        %v2389 = vld [vmem:[#allocation3 + $0x3d8] sm:$0xff]
        %v2390 = vld [vmem:[#allocation3 + $0x3e0] sm:$0xff]
        %v2391 = vld [vmem:[#allocation3 + $0x3e8] sm:$0xff]
        %v2392 = vld [vmem:[#allocation3 + $0x3f0] sm:$0xff]
        %v2393 = vld [vmem:[#allocation3 + $0x3f8] sm:$0xff]
        %v2394 = vld [vmem:[#allocation3 + $0x400] sm:$0xff]
        %v2395 = vld [vmem:[#allocation3 + $0x408] sm:$0xff]
        %v2396 = vld [vmem:[#allocation3 + $0x410] sm:$0xff]
        %v2397 = vld [vmem:[#allocation3 + $0x418] sm:$0xff]
        %v2398 = vld [vmem:[#allocation3 + $0x420] sm:$0xff]
        %v2399 = vld [vmem:[#allocation3 + $0x428] sm:$0xff]
        %v2400 = vld [vmem:[#allocation3 + $0x430] sm:$0xff]
        %v2401 = vld [vmem:[#allocation3 + $0x438] sm:$0xff]
        %v2402 = vld [vmem:[#allocation3 + $0x440] sm:$0xff]
        %v2403 = vld [vmem:[#allocation3 + $0x448] sm:$0xff]
        %v2404 = vld [vmem:[#allocation3 + $0x450] sm:$0xff]
        %v2405 = vld [vmem:[#allocation3 + $0x458] sm:$0xff]
        %v2406 = vld [vmem:[#allocation3 + $0x460] sm:$0xff]
        %v2407 = vld [vmem:[#allocation3 + $0x468] sm:$0xff]
        %v2408 = vld [vmem:[#allocation3 + $0x470] sm:$0xff]
        %v2409 = vld [vmem:[#allocation3 + $0x478] sm:$0xff]
        %2410 = vmatprep.subr.mxu0 0.0
        %2411 = vmatpush1.msra.mxu0 %v2266
        %2412 = vmatprep.subr.mxu0 0.0
        %2413 = vmatpush1.msra.mxu0 %v2267
        %2414 = vmatprep.subr.mxu0 0.0
        %2415 = vmatpush1.msra.mxu0 %v2268
        %2416 = vmatprep.subr.mxu0 0.0
        %2417 = vmatpush1.msra.mxu0 %v2269
        %2418 = vmatprep.subr.mxu0 0.0
        %2419 = vmatpush1.msra.mxu0 %v2270
        %2420 = vmatprep.subr.mxu0 0.0
        %2421 = vmatpush1.msra.mxu0 %v2271
        %2422 = vmatprep.subr.mxu0 0.0
        %2423 = vmatpush1.msra.mxu0 %v2272
        %2424 = vmatprep.subr.mxu0 0.0
        %2425 = vmatpush1.msra.mxu0 %v2273
        %2426 = vmatprep.subr.mxu0 0.0
        %2427 = vmatpush1.msra.mxu0 %v2274
        %2428 = vmatprep.subr.mxu0 0.0
        %2429 = vmatpush1.msra.mxu0 %v2275
        %2430 = vmatprep.subr.mxu0 0.0
        %2431 = vmatpush1.msra.mxu0 %v2276
        %2432 = vmatprep.subr.mxu0 0.0
        %2433 = vmatpush1.msra.mxu0 %v2277
        %2434 = vmatprep.subr.mxu0 0.0
        %2435 = vmatpush1.msra.mxu0 %v2278
        %2436 = vmatprep.subr.mxu0 0.0
        %2437 = vmatpush1.msra.mxu0 %v2279
        %2438 = vmatprep.subr.mxu0 0.0
        %2439 = vmatpush1.msra.mxu0 %v2280
        %2440 = vmatprep.subr.mxu0 0.0
        %2441 = vmatpush1.msra.mxu0 %v2281
        %2442 = vmatprep.subr.mxu0 0.0
        %2443 = vmatpush1.msra.mxu0 %v2282
        %2444 = vmatprep.subr.mxu0 0.0
        %2445 = vmatpush1.msra.mxu0 %v2283
        %2446 = vmatprep.subr.mxu0 0.0
        %2447 = vmatpush1.msra.mxu0 %v2284
        %2448 = vmatprep.subr.mxu0 0.0
        %2449 = vmatpush1.msra.mxu0 %v2285
        %2450 = vmatprep.subr.mxu0 0.0
        %2451 = vmatpush1.msra.mxu0 %v2286
        %2452 = vmatprep.subr.mxu0 0.0
        %2453 = vmatpush1.msra.mxu0 %v2287
        %2454 = vmatprep.subr.mxu0 0.0
        %2455 = vmatpush1.msra.mxu0 %v2288
        %2456 = vmatprep.subr.mxu0 0.0
        %2457 = vmatpush1.msra.mxu0 %v2289
        %2458 = vmatprep.subr.mxu0 0.0
        %2459 = vmatpush1.msra.mxu0 %v2290
        %2460 = vmatprep.subr.mxu0 0.0
        %2461 = vmatpush1.msra.mxu0 %v2291
        %2462 = vmatprep.subr.mxu0 0.0
        %2463 = vmatpush1.msra.mxu0 %v2292
        %2464 = vmatprep.subr.mxu0 0.0
        %2465 = vmatpush1.msra.mxu0 %v2293
        %2466 = vmatprep.subr.mxu0 0.0
        %2467 = vmatpush1.msra.mxu0 %v2294
        %2468 = vmatprep.subr.mxu0 0.0
        %2469 = vmatpush1.msra.mxu0 %v2295
        %2470 = vmatprep.subr.mxu0 0.0
        %2471 = vmatpush1.msra.mxu0 %v2296
        %2472 = vmatprep.subr.mxu0 0.0
        %2473 = vmatpush1.msra.mxu0 %v2297
        %2474 = vmatprep.mubr.f32.mxu0 %v2009
        %2475 = vmatmul.mubr.f32.gmra.mrb[0].mxu0 %v1977
        %v2476 = vpop.f32.mrb[0].mxu0
        %v2477 = vadd.f32 0.0, %v2476
        %v2478 = vpop.f32.mrb[0].mxu0
        %2479 = vmatprep.mubr.f32.mxu0 %v2010
        %2480 = vmatmul.mubr.f32.gmra.mrb[0].mxu0 %v1978
        %v2481 = vpop.f32.mrb[0].mxu0
        %v2482 = vadd.f32 0.0, %v2481
        %v2483 = vpop.f32.mrb[0].mxu0
        %2484 = vmatprep.mubr.f32.mxu0 %v2011
        %2485 = vmatmul.mubr.f32.gmra.mrb[0].mxu0 %v1979
        %v2486 = vpop.f32.mrb[0].mxu0
        %v2487 = vadd.f32 0.0, %v2486
        %v2488 = vpop.f32.mrb[0].mxu0
        %2489 = vmatprep.mubr.f32.mxu0 %v2012
        %2490 = vmatmul.mubr.f32.gmra.mrb[0].mxu0 %v1980
        %v2491 = vpop.f32.mrb[0].mxu0
        %v2492 = vadd.f32 0.0, %v2491
        %v2493 = vpop.f32.mrb[0].mxu0
        %2494 = vmatprep.mubr.f32.mxu0 %v2013
        %2495 = vmatmul.mubr.f32.gmra.mrb[0].mxu0 %v1981
        %v2496 = vpop.f32.mrb[0].mxu0
        %v2497 = vadd.f32 0.0, %v2496
        %v2498 = vpop.f32.mrb[0].mxu0
        %2499 = vmatprep.mubr.f32.mxu0 %v2014
        %2500 = vmatmul.mubr.f32.gmra.mrb[0].mxu0 %v1982
        %v2501 = vpop.f32.mrb[0].mxu0
        %v2502 = vadd.f32 0.0, %v2501
        %v2503 = vpop.f32.mrb[0].mxu0
        %2504 = vmatprep.mubr.f32.mxu0 %v2015
        %2505 = vmatmul.mubr.f32.gmra.mrb[0].mxu0 %v1983
        %v2506 = vpop.f32.mrb[0].mxu0
        %v2507 = vadd.f32 0.0, %v2506
        %v2508 = vpop.f32.mrb[0].mxu0
        %2509 = vmatprep.mubr.f32.mxu0 %v2016
        %2510 = vmatmul.mubr.f32.gmra.mrb[0].mxu0 %v1984
        %v2511 = vpop.f32.mrb[0].mxu0
        %v2512 = vadd.f32 0.0, %v2511
        %v2513 = vpop.f32.mrb[0].mxu0
        %2514 = vmatprep.mubr.f32.mxu0 %v2017
        %2515 = vmatmul.mubr.f32.gmra.mrb[0].mxu0 %v1985
        %v2516 = vpop.f32.mrb[0].mxu0
        %v2517 = vadd.f32 0.0, %v2516
        %v2518 = vpop.f32.mrb[0].mxu0
        %2519 = vmatprep.mubr.f32.mxu0 %v2018
        %2520 = vmatmul.mubr.f32.gmra.mrb[0].mxu0 %v1986
        %v2521 = vpop.f32.mrb[0].mxu0
        %v2522 = vadd.f32 0.0, %v2521
        %v2523 = vpop.f32.mrb[0].mxu0
        %2524 = vmatprep.mubr.f32.mxu0 %v2019
        %2525 = vmatmul.mubr.f32.gmra.mrb[0].mxu0 %v1987
        %v2526 = vpop.f32.mrb[0].mxu0
        %v2527 = vadd.f32 0.0, %v2526
        %v2528 = vpop.f32.mrb[0].mxu0
        %2529 = vmatprep.mubr.f32.mxu0 %v2020
        %2530 = vmatmul.mubr.f32.gmra.mrb[0].mxu0 %v1988
        %v2531 = vpop.f32.mrb[0].mxu0
        %v2532 = vadd.f32 0.0, %v2531
        %v2533 = vpop.f32.mrb[0].mxu0
        %2534 = vmatprep.mubr.f32.mxu0 %v2021
        %2535 = vmatmul.mubr.f32.gmra.mrb[0].mxu0 %v1989
        %v2536 = vpop.f32.mrb[0].mxu0
        %v2537 = vadd.f32 0.0, %v2536
        %v2538 = vpop.f32.mrb[0].mxu0
        %2539 = vmatprep.mubr.f32.mxu0 %v2022
        %2540 = vmatmul.mubr.f32.gmra.mrb[0].mxu0 %v1990
        %v2541 = vpop.f32.mrb[0].mxu0
        %v2542 = vadd.f32 0.0, %v2541
        %v2543 = vpop.f32.mrb[0].mxu0
        %2544 = vmatprep.mubr.f32.mxu0 %v2023
        %2545 = vmatmul.mubr.f32.gmra.mrb[0].mxu0 %v1991
        %v2546 = vpop.f32.mrb[0].mxu0
        %v2547 = vadd.f32 0.0, %v2546
        %v2548 = vpop.f32.mrb[0].mxu0
        %2549 = vmatprep.mubr.f32.mxu0 %v2024
        %2550 = vmatmul.mubr.f32.gmra.mrb[0].mxu0 %v1992
        %v2551 = vpop.f32.mrb[0].mxu0
        %v2552 = vadd.f32 0.0, %v2551
        %v2553 = vpop.f32.mrb[0].mxu0
        %2554 = vmatprep.mubr.f32.mxu0 %v2025
        %2555 = vmatmul.mubr.f32.gmra.mrb[0].mxu0 %v1993
        %v2556 = vpop.f32.mrb[0].mxu0
        %v2557 = vadd.f32 0.0, %v2556
        %v2558 = vpop.f32.mrb[0].mxu0
        %2559 = vmatprep.mubr.f32.mxu0 %v2026
        %2560 = vmatmul.mubr.f32.gmra.mrb[0].mxu0 %v1994
        %v2561 = vpop.f32.mrb[0].mxu0
        %v2562 = vadd.f32 0.0, %v2561
        %v2563 = vpop.f32.mrb[0].mxu0
        %2564 = vmatprep.mubr.f32.mxu0 %v2027
        %2565 = vmatmul.mubr.f32.gmra.mrb[0].mxu0 %v1995
        %v2566 = vpop.f32.mrb[0].mxu0
        %v2567 = vadd.f32 0.0, %v2566
        %v2568 = vpop.f32.mrb[0].mxu0
        %2569 = vmatprep.mubr.f32.mxu0 %v2028
        %2570 = vmatmul.mubr.f32.gmra.mrb[0].mxu0 %v1996
        %v2571 = vpop.f32.mrb[0].mxu0
        %v2572 = vadd.f32 0.0, %v2571
        %v2573 = vpop.f32.mrb[0].mxu0
        %2574 = vmatprep.mubr.f32.mxu0 %v2029
        %2575 = vmatmul.mubr.f32.gmra.mrb[0].mxu0 %v1997
        %v2576 = vpop.f32.mrb[0].mxu0
        %v2577 = vadd.f32 0.0, %v2576
        %v2578 = vpop.f32.mrb[0].mxu0
        %2579 = vmatprep.mubr.f32.mxu0 %v2030
        %2580 = vmatmul.mubr.f32.gmra.mrb[0].mxu0 %v1998
        %v2581 = vpop.f32.mrb[0].mxu0
        %v2582 = vadd.f32 0.0, %v2581
        %v2583 = vpop.f32.mrb[0].mxu0
        %2584 = vmatprep.mubr.f32.mxu0 %v2031
        %2585 = vmatmul.mubr.f32.gmra.mrb[0].mxu0 %v1999
        %v2586 = vpop.f32.mrb[0].mxu0
        %v2587 = vadd.f32 0.0, %v2586
        %v2588 = vpop.f32.mrb[0].mxu0
        %2589 = vmatprep.mubr.f32.mxu0 %v2032
        %2590 = vmatmul.mubr.f32.gmra.mrb[0].mxu0 %v2000
        %v2591 = vpop.f32.mrb[0].mxu0
        %v2592 = vadd.f32 0.0, %v2591
        %v2593 = vpop.f32.mrb[0].mxu0
        %2594 = vmatprep.mubr.f32.mxu0 %v2033
        %2595 = vmatmul.mubr.f32.gmra.mrb[0].mxu0 %v2001
        %v2596 = vpop.f32.mrb[0].mxu0
        %v2597 = vadd.f32 0.0, %v2596
        %v2598 = vpop.f32.mrb[0].mxu0
        %2599 = vmatprep.mubr.f32.mxu0 %v2034
        %2600 = vmatmul.mubr.f32.gmra.mrb[0].mxu0 %v2002
        %v2601 = vpop.f32.mrb[0].mxu0
        %v2602 = vadd.f32 0.0, %v2601
        %v2603 = vpop.f32.mrb[0].mxu0
        %2604 = vmatprep.mubr.f32.mxu0 %v2035
        %2605 = vmatmul.mubr.f32.gmra.mrb[0].mxu0 %v2003
        %v2606 = vpop.f32.mrb[0].mxu0
        %v2607 = vadd.f32 0.0, %v2606
        %v2608 = vpop.f32.mrb[0].mxu0
        %2609 = vmatprep.mubr.f32.mxu0 %v2036
        %2610 = vmatmul.mubr.f32.gmra.mrb[0].mxu0 %v2004
        %v2611 = vpop.f32.mrb[0].mxu0
        %v2612 = vadd.f32 0.0, %v2611
        %v2613 = vpop.f32.mrb[0].mxu0
        %2614 = vmatprep.mubr.f32.mxu0 %v2037
        %2615 = vmatmul.mubr.f32.gmra.mrb[0].mxu0 %v2005
        %v2616 = vpop.f32.mrb[0].mxu0
        %v2617 = vadd.f32 0.0, %v2616
        %v2618 = vpop.f32.mrb[0].mxu0
        %2619 = vmatprep.mubr.f32.mxu0 %v2038
        %2620 = vmatmul.mubr.f32.gmra.mrb[0].mxu0 %v2006
        %v2621 = vpop.f32.mrb[0].mxu0
        %v2622 = vadd.f32 0.0, %v2621
        %v2623 = vpop.f32.mrb[0].mxu0
        %2624 = vmatprep.mubr.f32.mxu0 %v2039
        %2625 = vmatmul.mubr.f32.gmra.mrb[0].mxu0 %v2007
        %v2626 = vpop.f32.mrb[0].mxu0
        %v2627 = vadd.f32 0.0, %v2626
        %v2628 = vpop.f32.mrb[0].mxu0
        %2629 = vmatprep.mubr.f32.mxu0 %v2040
        %2630 = vmatmul.mubr.f32.gmra.mrb[0].mxu0 %v2008
        %v2631 = vpop.f32.mrb[0].mxu0
        %v2632 = vadd.f32 0.0, %v2631
        %v2633 = vpop.f32.mrb[0].mxu0
        %2634 = vdwg.mxu0
        %2635 = vmatprep.subr.mxu0 0.0
        %2636 = vmatpush1.msra.mxu0 %v2298
        %2637 = vmatprep.subr.mxu0 0.0
        %2638 = vmatpush1.msra.mxu0 %v2299
        %2639 = vmatprep.subr.mxu0 0.0
        %2640 = vmatpush1.msra.mxu0 %v2300
        %2641 = vmatprep.subr.mxu0 0.0
        %2642 = vmatpush1.msra.mxu0 %v2301
        %2643 = vmatprep.subr.mxu0 0.0
        %2644 = vmatpush1.msra.mxu0 %v2302
        %2645 = vmatprep.subr.mxu0 0.0
        %2646 = vmatpush1.msra.mxu0 %v2303
        %2647 = vmatprep.subr.mxu0 0.0
        %2648 = vmatpush1.msra.mxu0 %v2304
        %2649 = vmatprep.subr.mxu0 0.0
        %2650 = vmatpush1.msra.mxu0 %v2305
        %2651 = vmatprep.subr.mxu0 0.0
        %2652 = vmatpush1.msra.mxu0 %v2306
        %2653 = vmatprep.subr.mxu0 0.0
        %2654 = vmatpush1.msra.mxu0 %v2307
        %2655 = vmatprep.subr.mxu0 0.0
        %2656 = vmatpush1.msra.mxu0 %v2308
        %2657 = vmatprep.subr.mxu0 0.0
        %2658 = vmatpush1.msra.mxu0 %v2309
        %2659 = vmatprep.subr.mxu0 0.0
        %2660 = vmatpush1.msra.mxu0 %v2310
        %2661 = vmatprep.subr.mxu0 0.0
        %2662 = vmatpush1.msra.mxu0 %v2311
        %2663 = vmatprep.subr.mxu0 0.0
        %2664 = vmatpush1.msra.mxu0 %v2312
        %2665 = vmatprep.subr.mxu0 0.0
        %2666 = vmatpush1.msra.mxu0 %v2313
        %2667 = vmatprep.subr.mxu0 0.0
        %2668 = vmatpush1.msra.mxu0 %v2314
        %2669 = vmatprep.subr.mxu0 0.0
        %2670 = vmatpush1.msra.mxu0 %v2315
        %2671 = vmatprep.subr.mxu0 0.0
        %2672 = vmatpush1.msra.mxu0 %v2316
        %2673 = vmatprep.subr.mxu0 0.0
        %2674 = vmatpush1.msra.mxu0 %v2317
        %2675 = vmatprep.subr.mxu0 0.0
        %2676 = vmatpush1.msra.mxu0 %v2318
        %2677 = vmatprep.subr.mxu0 0.0
        %2678 = vmatpush1.msra.mxu0 %v2319
        %2679 = vmatprep.subr.mxu0 0.0
        %2680 = vmatpush1.msra.mxu0 %v2320
        %2681 = vmatprep.subr.mxu0 0.0
        %2682 = vmatpush1.msra.mxu0 %v2321
        %2683 = vmatprep.subr.mxu0 0.0
        %2684 = vmatpush1.msra.mxu0 %v2322
        %2685 = vmatprep.subr.mxu0 0.0
        %2686 = vmatpush1.msra.mxu0 %v2323
        %2687 = vmatprep.subr.mxu0 0.0
        %2688 = vmatpush1.msra.mxu0 %v2324
        %2689 = vmatprep.subr.mxu0 0.0
        %2690 = vmatpush1.msra.mxu0 %v2325
        %2691 = vmatprep.subr.mxu0 0.0
        %2692 = vmatpush1.msra.mxu0 %v2326
        %2693 = vmatprep.subr.mxu0 0.0
        %2694 = vmatpush1.msra.mxu0 %v2327
        %2695 = vmatprep.subr.mxu0 0.0
        %2696 = vmatpush1.msra.mxu0 %v2328
        %2697 = vmatprep.subr.mxu0 0.0
        %2698 = vmatpush1.msra.mxu0 %v2329
        %2699 = vmatprep.mubr.f32.mxu0 %v2073
        %2700 = vmatmul.mubr.f32.gmra.mrb[0].mxu0 %v2041
        %v2701 = vpop.f32.mrb[0].mxu0
        %v2702 = vadd.f32 %v2477, %v2701
        %v2703 = vpop.f32.mrb[0].mxu0
        %2704 = vmatprep.mubr.f32.mxu0 %v2074
        %2705 = vmatmul.mubr.f32.gmra.mrb[0].mxu0 %v2042
        %v2706 = vpop.f32.mrb[0].mxu0
        %v2707 = vadd.f32 %v2482, %v2706
        %v2708 = vpop.f32.mrb[0].mxu0
        %2709 = vmatprep.mubr.f32.mxu0 %v2075
        %2710 = vmatmul.mubr.f32.gmra.mrb[0].mxu0 %v2043
        %v2711 = vpop.f32.mrb[0].mxu0
        %v2712 = vadd.f32 %v2487, %v2711
        %v2713 = vpop.f32.mrb[0].mxu0
        %2714 = vmatprep.mubr.f32.mxu0 %v2076
        %2715 = vmatmul.mubr.f32.gmra.mrb[0].mxu0 %v2044
        %v2716 = vpop.f32.mrb[0].mxu0
        %v2717 = vadd.f32 %v2492, %v2716
        %v2718 = vpop.f32.mrb[0].mxu0
        %2719 = vmatprep.mubr.f32.mxu0 %v2077
        %2720 = vmatmul.mubr.f32.gmra.mrb[0].mxu0 %v2045
        %v2721 = vpop.f32.mrb[0].mxu0
        %v2722 = vadd.f32 %v2497, %v2721
        %v2723 = vpop.f32.mrb[0].mxu0
        %2724 = vmatprep.mubr.f32.mxu0 %v2078
        %2725 = vmatmul.mubr.f32.gmra.mrb[0].mxu0 %v2046
        %v2726 = vpop.f32.mrb[0].mxu0
        %v2727 = vadd.f32 %v2502, %v2726
        %v2728 = vpop.f32.mrb[0].mxu0
        %2729 = vmatprep.mubr.f32.mxu0 %v2079
        %2730 = vmatmul.mubr.f32.gmra.mrb[0].mxu0 %v2047
        %v2731 = vpop.f32.mrb[0].mxu0
        %v2732 = vadd.f32 %v2507, %v2731
        %v2733 = vpop.f32.mrb[0].mxu0
        %2734 = vmatprep.mubr.f32.mxu0 %v2080
        %2735 = vmatmul.mubr.f32.gmra.mrb[0].mxu0 %v2048
        %v2736 = vpop.f32.mrb[0].mxu0
        %v2737 = vadd.f32 %v2512, %v2736
        %v2738 = vpop.f32.mrb[0].mxu0
        %2739 = vmatprep.mubr.f32.mxu0 %v2081
        %2740 = vmatmul.mubr.f32.gmra.mrb[0].mxu0 %v2049
        %v2741 = vpop.f32.mrb[0].mxu0
        %v2742 = vadd.f32 %v2517, %v2741
        %v2743 = vpop.f32.mrb[0].mxu0
        %2744 = vmatprep.mubr.f32.mxu0 %v2082
        %2745 = vmatmul.mubr.f32.gmra.mrb[0].mxu0 %v2050
        %v2746 = vpop.f32.mrb[0].mxu0
        %v2747 = vadd.f32 %v2522, %v2746
        %v2748 = vpop.f32.mrb[0].mxu0
        %2749 = vmatprep.mubr.f32.mxu0 %v2083
        %2750 = vmatmul.mubr.f32.gmra.mrb[0].mxu0 %v2051
        %v2751 = vpop.f32.mrb[0].mxu0
        %v2752 = vadd.f32 %v2527, %v2751
        %v2753 = vpop.f32.mrb[0].mxu0
        %2754 = vmatprep.mubr.f32.mxu0 %v2084
        %2755 = vmatmul.mubr.f32.gmra.mrb[0].mxu0 %v2052
        %v2756 = vpop.f32.mrb[0].mxu0
        %v2757 = vadd.f32 %v2532, %v2756
        %v2758 = vpop.f32.mrb[0].mxu0
        %2759 = vmatprep.mubr.f32.mxu0 %v2085
        %2760 = vmatmul.mubr.f32.gmra.mrb[0].mxu0 %v2053
        %v2761 = vpop.f32.mrb[0].mxu0
        %v2762 = vadd.f32 %v2537, %v2761
        %v2763 = vpop.f32.mrb[0].mxu0
        %2764 = vmatprep.mubr.f32.mxu0 %v2086
        %2765 = vmatmul.mubr.f32.gmra.mrb[0].mxu0 %v2054
        %v2766 = vpop.f32.mrb[0].mxu0
        %v2767 = vadd.f32 %v2542, %v2766
        %v2768 = vpop.f32.mrb[0].mxu0
        %2769 = vmatprep.mubr.f32.mxu0 %v2087
        %2770 = vmatmul.mubr.f32.gmra.mrb[0].mxu0 %v2055
        %v2771 = vpop.f32.mrb[0].mxu0
        %v2772 = vadd.f32 %v2547, %v2771
        %v2773 = vpop.f32.mrb[0].mxu0
        %2774 = vmatprep.mubr.f32.mxu0 %v2088
        %2775 = vmatmul.mubr.f32.gmra.mrb[0].mxu0 %v2056
        %v2776 = vpop.f32.mrb[0].mxu0
        %v2777 = vadd.f32 %v2552, %v2776
        %v2778 = vpop.f32.mrb[0].mxu0
        %2779 = vmatprep.mubr.f32.mxu0 %v2089
        %2780 = vmatmul.mubr.f32.gmra.mrb[0].mxu0 %v2057
        %v2781 = vpop.f32.mrb[0].mxu0
        %v2782 = vadd.f32 %v2557, %v2781
        %v2783 = vpop.f32.mrb[0].mxu0
        %2784 = vmatprep.mubr.f32.mxu0 %v2090
        %2785 = vmatmul.mubr.f32.gmra.mrb[0].mxu0 %v2058
        %v2786 = vpop.f32.mrb[0].mxu0
        %v2787 = vadd.f32 %v2562, %v2786
        %v2788 = vpop.f32.mrb[0].mxu0
        %2789 = vmatprep.mubr.f32.mxu0 %v2091
        %2790 = vmatmul.mubr.f32.gmra.mrb[0].mxu0 %v2059
        %v2791 = vpop.f32.mrb[0].mxu0
        %v2792 = vadd.f32 %v2567, %v2791
        %v2793 = vpop.f32.mrb[0].mxu0
        %2794 = vmatprep.mubr.f32.mxu0 %v2092
        %2795 = vmatmul.mubr.f32.gmra.mrb[0].mxu0 %v2060
        %v2796 = vpop.f32.mrb[0].mxu0
        %v2797 = vadd.f32 %v2572, %v2796
        %v2798 = vpop.f32.mrb[0].mxu0
        %2799 = vmatprep.mubr.f32.mxu0 %v2093
        %2800 = vmatmul.mubr.f32.gmra.mrb[0].mxu0 %v2061
        %v2801 = vpop.f32.mrb[0].mxu0
        %v2802 = vadd.f32 %v2577, %v2801
        %v2803 = vpop.f32.mrb[0].mxu0
        %2804 = vmatprep.mubr.f32.mxu0 %v2094
        %2805 = vmatmul.mubr.f32.gmra.mrb[0].mxu0 %v2062
        %v2806 = vpop.f32.mrb[0].mxu0
        %v2807 = vadd.f32 %v2582, %v2806
        %v2808 = vpop.f32.mrb[0].mxu0
        %2809 = vmatprep.mubr.f32.mxu0 %v2095
        %2810 = vmatmul.mubr.f32.gmra.mrb[0].mxu0 %v2063
        %v2811 = vpop.f32.mrb[0].mxu0
        %v2812 = vadd.f32 %v2587, %v2811
        %v2813 = vpop.f32.mrb[0].mxu0
        %2814 = vmatprep.mubr.f32.mxu0 %v2096
        %2815 = vmatmul.mubr.f32.gmra.mrb[0].mxu0 %v2064
        %v2816 = vpop.f32.mrb[0].mxu0
        %v2817 = vadd.f32 %v2592, %v2816
        %v2818 = vpop.f32.mrb[0].mxu0
        %2819 = vmatprep.mubr.f32.mxu0 %v2097
        %2820 = vmatmul.mubr.f32.gmra.mrb[0].mxu0 %v2065
        %v2821 = vpop.f32.mrb[0].mxu0
        %v2822 = vadd.f32 %v2597, %v2821
        %v2823 = vpop.f32.mrb[0].mxu0
        %2824 = vmatprep.mubr.f32.mxu0 %v2098
        %2825 = vmatmul.mubr.f32.gmra.mrb[0].mxu0 %v2066
        %v2826 = vpop.f32.mrb[0].mxu0
        %v2827 = vadd.f32 %v2602, %v2826
        %v2828 = vpop.f32.mrb[0].mxu0
        %2829 = vmatprep.mubr.f32.mxu0 %v2099
        %2830 = vmatmul.mubr.f32.gmra.mrb[0].mxu0 %v2067
        %v2831 = vpop.f32.mrb[0].mxu0
        %v2832 = vadd.f32 %v2607, %v2831
        %v2833 = vpop.f32.mrb[0].mxu0
        %2834 = vmatprep.mubr.f32.mxu0 %v2100
        %2835 = vmatmul.mubr.f32.gmra.mrb[0].mxu0 %v2068
        %v2836 = vpop.f32.mrb[0].mxu0
        %v2837 = vadd.f32 %v2612, %v2836
        %v2838 = vpop.f32.mrb[0].mxu0
        %2839 = vmatprep.mubr.f32.mxu0 %v2101
        %2840 = vmatmul.mubr.f32.gmra.mrb[0].mxu0 %v2069
        %v2841 = vpop.f32.mrb[0].mxu0
        %v2842 = vadd.f32 %v2617, %v2841
        %v2843 = vpop.f32.mrb[0].mxu0
        %2844 = vmatprep.mubr.f32.mxu0 %v2102
        %2845 = vmatmul.mubr.f32.gmra.mrb[0].mxu0 %v2070
        %v2846 = vpop.f32.mrb[0].mxu0
        %v2847 = vadd.f32 %v2622, %v2846
        %v2848 = vpop.f32.mrb[0].mxu0
        %2849 = vmatprep.mubr.f32.mxu0 %v2103
        %2850 = vmatmul.mubr.f32.gmra.mrb[0].mxu0 %v2071
        %v2851 = vpop.f32.mrb[0].mxu0
        %v2852 = vadd.f32 %v2627, %v2851
        %v2853 = vpop.f32.mrb[0].mxu0
        %2854 = vmatprep.mubr.f32.mxu0 %v2104
        %2855 = vmatmul.mubr.f32.gmra.mrb[0].mxu0 %v2072
        %v2856 = vpop.f32.mrb[0].mxu0
        %v2857 = vadd.f32 %v2632, %v2856
        %v2858 = vpop.f32.mrb[0].mxu0
        %2859 = vdwg.mxu0
        %2860 = vmatprep.subr.mxu0 0.0
        %2861 = vmatpush1.msra.mxu0 %v2330
        %2862 = vmatprep.subr.mxu0 0.0
        %2863 = vmatpush1.msra.mxu0 %v2331
        %2864 = vmatprep.subr.mxu0 0.0
        %2865 = vmatpush1.msra.mxu0 %v2332
        %2866 = vmatprep.subr.mxu0 0.0
        %2867 = vmatpush1.msra.mxu0 %v2333
        %2868 = vmatprep.subr.mxu0 0.0
        %2869 = vmatpush1.msra.mxu0 %v2334
        %2870 = vmatprep.subr.mxu0 0.0
        %2871 = vmatpush1.msra.mxu0 %v2335
        %2872 = vmatprep.subr.mxu0 0.0
        %2873 = vmatpush1.msra.mxu0 %v2336
        %2874 = vmatprep.subr.mxu0 0.0
        %2875 = vmatpush1.msra.mxu0 %v2337
        %2876 = vmatprep.subr.mxu0 0.0
        %2877 = vmatpush1.msra.mxu0 %v2338
        %2878 = vmatprep.subr.mxu0 0.0
        %2879 = vmatpush1.msra.mxu0 %v2339
        %2880 = vmatprep.subr.mxu0 0.0
        %2881 = vmatpush1.msra.mxu0 %v2340
        %2882 = vmatprep.subr.mxu0 0.0
        %2883 = vmatpush1.msra.mxu0 %v2341
        %2884 = vmatprep.subr.mxu0 0.0
        %2885 = vmatpush1.msra.mxu0 %v2342
        %2886 = vmatprep.subr.mxu0 0.0
        %2887 = vmatpush1.msra.mxu0 %v2343
        %2888 = vmatprep.subr.mxu0 0.0
        %2889 = vmatpush1.msra.mxu0 %v2344
        %2890 = vmatprep.subr.mxu0 0.0
        %2891 = vmatpush1.msra.mxu0 %v2345
        %2892 = vmatprep.subr.mxu0 0.0
        %2893 = vmatpush1.msra.mxu0 %v2346
        %2894 = vmatprep.subr.mxu0 0.0
        %2895 = vmatpush1.msra.mxu0 %v2347
        %2896 = vmatprep.subr.mxu0 0.0
        %2897 = vmatpush1.msra.mxu0 %v2348
        %2898 = vmatprep.subr.mxu0 0.0
        %2899 = vmatpush1.msra.mxu0 %v2349
        %2900 = vmatprep.subr.mxu0 0.0
        %2901 = vmatpush1.msra.mxu0 %v2350
        %2902 = vmatprep.subr.mxu0 0.0
        %2903 = vmatpush1.msra.mxu0 %v2351
        %2904 = vmatprep.subr.mxu0 0.0
        %2905 = vmatpush1.msra.mxu0 %v2352
        %2906 = vmatprep.subr.mxu0 0.0
        %2907 = vmatpush1.msra.mxu0 %v2353
        %2908 = vmatprep.subr.mxu0 0.0
        %2909 = vmatpush1.msra.mxu0 %v2354
        %2910 = vmatprep.subr.mxu0 0.0
        %2911 = vmatpush1.msra.mxu0 %v2355
        %2912 = vmatprep.subr.mxu0 0.0
        %2913 = vmatpush1.msra.mxu0 %v2356
        %2914 = vmatprep.subr.mxu0 0.0
        %2915 = vmatpush1.msra.mxu0 %v2357
        %2916 = vmatprep.subr.mxu0 0.0
        %2917 = vmatpush1.msra.mxu0 %v2358
        %2918 = vmatprep.subr.mxu0 0.0
        %2919 = vmatpush1.msra.mxu0 %v2359
        %2920 = vmatprep.subr.mxu0 0.0
        %2921 = vmatpush1.msra.mxu0 %v2360
        %2922 = vmatprep.subr.mxu0 0.0
        %2923 = vmatpush1.msra.mxu0 %v2361
        %2924 = vmatprep.mubr.f32.mxu0 %v2137
        %2925 = vmatmul.mubr.f32.gmra.mrb[0].mxu0 %v2105
        %v2926 = vpop.f32.mrb[0].mxu0
        %v2927 = vadd.f32 %v2702, %v2926
        %v2928 = vpop.f32.mrb[0].mxu0
        %2929 = vmatprep.mubr.f32.mxu0 %v2138
        %2930 = vmatmul.mubr.f32.gmra.mrb[0].mxu0 %v2106
        %v2931 = vpop.f32.mrb[0].mxu0
        %v2932 = vadd.f32 %v2707, %v2931
        %v2933 = vpop.f32.mrb[0].mxu0
        %2934 = vmatprep.mubr.f32.mxu0 %v2139
        %2935 = vmatmul.mubr.f32.gmra.mrb[0].mxu0 %v2107
        %v2936 = vpop.f32.mrb[0].mxu0
        %v2937 = vadd.f32 %v2712, %v2936
        %v2938 = vpop.f32.mrb[0].mxu0
        %2939 = vmatprep.mubr.f32.mxu0 %v2140
        %2940 = vmatmul.mubr.f32.gmra.mrb[0].mxu0 %v2108
        %v2941 = vpop.f32.mrb[0].mxu0
        %v2942 = vadd.f32 %v2717, %v2941
        %v2943 = vpop.f32.mrb[0].mxu0
        %2944 = vmatprep.mubr.f32.mxu0 %v2141
        %2945 = vmatmul.mubr.f32.gmra.mrb[0].mxu0 %v2109
        %v2946 = vpop.f32.mrb[0].mxu0
        %v2947 = vadd.f32 %v2722, %v2946
        %v2948 = vpop.f32.mrb[0].mxu0
        %2949 = vmatprep.mubr.f32.mxu0 %v2142
        %2950 = vmatmul.mubr.f32.gmra.mrb[0].mxu0 %v2110
        %v2951 = vpop.f32.mrb[0].mxu0
        %v2952 = vadd.f32 %v2727, %v2951
        %v2953 = vpop.f32.mrb[0].mxu0
        %2954 = vmatprep.mubr.f32.mxu0 %v2143
        %2955 = vmatmul.mubr.f32.gmra.mrb[0].mxu0 %v2111
        %v2956 = vpop.f32.mrb[0].mxu0
        %v2957 = vadd.f32 %v2732, %v2956
        %v2958 = vpop.f32.mrb[0].mxu0
        %2959 = vmatprep.mubr.f32.mxu0 %v2144
        %2960 = vmatmul.mubr.f32.gmra.mrb[0].mxu0 %v2112
        %v2961 = vpop.f32.mrb[0].mxu0
        %v2962 = vadd.f32 %v2737, %v2961
        %v2963 = vpop.f32.mrb[0].mxu0
        %2964 = vmatprep.mubr.f32.mxu0 %v2145
        %2965 = vmatmul.mubr.f32.gmra.mrb[0].mxu0 %v2113
        %v2966 = vpop.f32.mrb[0].mxu0
        %v2967 = vadd.f32 %v2742, %v2966
        %v2968 = vpop.f32.mrb[0].mxu0
        %2969 = vmatprep.mubr.f32.mxu0 %v2146
        %2970 = vmatmul.mubr.f32.gmra.mrb[0].mxu0 %v2114
        %v2971 = vpop.f32.mrb[0].mxu0
        %v2972 = vadd.f32 %v2747, %v2971
        %v2973 = vpop.f32.mrb[0].mxu0
        %2974 = vmatprep.mubr.f32.mxu0 %v2147
        %2975 = vmatmul.mubr.f32.gmra.mrb[0].mxu0 %v2115
        %v2976 = vpop.f32.mrb[0].mxu0
        %v2977 = vadd.f32 %v2752, %v2976
        %v2978 = vpop.f32.mrb[0].mxu0
        %2979 = vmatprep.mubr.f32.mxu0 %v2148
        %2980 = vmatmul.mubr.f32.gmra.mrb[0].mxu0 %v2116
        %v2981 = vpop.f32.mrb[0].mxu0
        %v2982 = vadd.f32 %v2757, %v2981
        %v2983 = vpop.f32.mrb[0].mxu0
        %2984 = vmatprep.mubr.f32.mxu0 %v2149
        %2985 = vmatmul.mubr.f32.gmra.mrb[0].mxu0 %v2117
        %v2986 = vpop.f32.mrb[0].mxu0
        %v2987 = vadd.f32 %v2762, %v2986
        %v2988 = vpop.f32.mrb[0].mxu0
        %2989 = vmatprep.mubr.f32.mxu0 %v2150
        %2990 = vmatmul.mubr.f32.gmra.mrb[0].mxu0 %v2118
        %v2991 = vpop.f32.mrb[0].mxu0
        %v2992 = vadd.f32 %v2767, %v2991
        %v2993 = vpop.f32.mrb[0].mxu0
        %2994 = vmatprep.mubr.f32.mxu0 %v2151
        %2995 = vmatmul.mubr.f32.gmra.mrb[0].mxu0 %v2119
        %v2996 = vpop.f32.mrb[0].mxu0
        %v2997 = vadd.f32 %v2772, %v2996
        %v2998 = vpop.f32.mrb[0].mxu0
        %2999 = vmatprep.mubr.f32.mxu0 %v2152
        %3000 = vmatmul.mubr.f32.gmra.mrb[0].mxu0 %v2120
        %v3001 = vpop.f32.mrb[0].mxu0
        %v3002 = vadd.f32 %v2777, %v3001
        %v3003 = vpop.f32.mrb[0].mxu0
        %3004 = vmatprep.mubr.f32.mxu0 %v2153
        %3005 = vmatmul.mubr.f32.gmra.mrb[0].mxu0 %v2121
        %v3006 = vpop.f32.mrb[0].mxu0
        %v3007 = vadd.f32 %v2782, %v3006
        %v3008 = vpop.f32.mrb[0].mxu0
        %3009 = vmatprep.mubr.f32.mxu0 %v2154
        %3010 = vmatmul.mubr.f32.gmra.mrb[0].mxu0 %v2122
        %v3011 = vpop.f32.mrb[0].mxu0
        %v3012 = vadd.f32 %v2787, %v3011
        %v3013 = vpop.f32.mrb[0].mxu0
        %3014 = vmatprep.mubr.f32.mxu0 %v2155
        %3015 = vmatmul.mubr.f32.gmra.mrb[0].mxu0 %v2123
        %v3016 = vpop.f32.mrb[0].mxu0
        %v3017 = vadd.f32 %v2792, %v3016
        %v3018 = vpop.f32.mrb[0].mxu0
        %3019 = vmatprep.mubr.f32.mxu0 %v2156
        %3020 = vmatmul.mubr.f32.gmra.mrb[0].mxu0 %v2124
        %v3021 = vpop.f32.mrb[0].mxu0
        %v3022 = vadd.f32 %v2797, %v3021
        %v3023 = vpop.f32.mrb[0].mxu0
        %3024 = vmatprep.mubr.f32.mxu0 %v2157
        %3025 = vmatmul.mubr.f32.gmra.mrb[0].mxu0 %v2125
        %v3026 = vpop.f32.mrb[0].mxu0
        %v3027 = vadd.f32 %v2802, %v3026
        %v3028 = vpop.f32.mrb[0].mxu0
        %3029 = vmatprep.mubr.f32.mxu0 %v2158
        %3030 = vmatmul.mubr.f32.gmra.mrb[0].mxu0 %v2126
        %v3031 = vpop.f32.mrb[0].mxu0
        %v3032 = vadd.f32 %v2807, %v3031
        %v3033 = vpop.f32.mrb[0].mxu0
        %3034 = vmatprep.mubr.f32.mxu0 %v2159
        %3035 = vmatmul.mubr.f32.gmra.mrb[0].mxu0 %v2127
        %v3036 = vpop.f32.mrb[0].mxu0
        %v3037 = vadd.f32 %v2812, %v3036
        %v3038 = vpop.f32.mrb[0].mxu0
        %3039 = vmatprep.mubr.f32.mxu0 %v2160
        %3040 = vmatmul.mubr.f32.gmra.mrb[0].mxu0 %v2128
        %v3041 = vpop.f32.mrb[0].mxu0
        %v3042 = vadd.f32 %v2817, %v3041
        %v3043 = vpop.f32.mrb[0].mxu0
        %3044 = vmatprep.mubr.f32.mxu0 %v2161
        %3045 = vmatmul.mubr.f32.gmra.mrb[0].mxu0 %v2129
        %v3046 = vpop.f32.mrb[0].mxu0
        %v3047 = vadd.f32 %v2822, %v3046
        %v3048 = vpop.f32.mrb[0].mxu0
        %3049 = vmatprep.mubr.f32.mxu0 %v2162
        %3050 = vmatmul.mubr.f32.gmra.mrb[0].mxu0 %v2130
        %v3051 = vpop.f32.mrb[0].mxu0
        %v3052 = vadd.f32 %v2827, %v3051
        %v3053 = vpop.f32.mrb[0].mxu0
        %3054 = vmatprep.mubr.f32.mxu0 %v2163
        %3055 = vmatmul.mubr.f32.gmra.mrb[0].mxu0 %v2131
        %v3056 = vpop.f32.mrb[0].mxu0
        %v3057 = vadd.f32 %v2832, %v3056
        %v3058 = vpop.f32.mrb[0].mxu0
        %3059 = vmatprep.mubr.f32.mxu0 %v2164
        %3060 = vmatmul.mubr.f32.gmra.mrb[0].mxu0 %v2132
        %v3061 = vpop.f32.mrb[0].mxu0
        %v3062 = vadd.f32 %v2837, %v3061
        %v3063 = vpop.f32.mrb[0].mxu0
        %3064 = vmatprep.mubr.f32.mxu0 %v2165
        %3065 = vmatmul.mubr.f32.gmra.mrb[0].mxu0 %v2133
        %v3066 = vpop.f32.mrb[0].mxu0
        %v3067 = vadd.f32 %v2842, %v3066
        %v3068 = vpop.f32.mrb[0].mxu0
        %3069 = vmatprep.mubr.f32.mxu0 %v2166
        %3070 = vmatmul.mubr.f32.gmra.mrb[0].mxu0 %v2134
        %v3071 = vpop.f32.mrb[0].mxu0
        %v3072 = vadd.f32 %v2847, %v3071
        %v3073 = vpop.f32.mrb[0].mxu0
        %3074 = vmatprep.mubr.f32.mxu0 %v2167
        %3075 = vmatmul.mubr.f32.gmra.mrb[0].mxu0 %v2135
        %v3076 = vpop.f32.mrb[0].mxu0
        %v3077 = vadd.f32 %v2852, %v3076
        %v3078 = vpop.f32.mrb[0].mxu0
        %3079 = vmatprep.mubr.f32.mxu0 %v2168
        %3080 = vmatmul.mubr.f32.gmra.mrb[0].mxu0 %v2136
        %v3081 = vpop.f32.mrb[0].mxu0
        %v3082 = vadd.f32 %v2857, %v3081
        %v3083 = vpop.f32.mrb[0].mxu0
        %3084 = vdwg.mxu0
        %3085 = vmatprep.subr.mxu0 0.0
        %3086 = vmatpush1.msra.mxu0 %v2362
        %3087 = vmatprep.subr.mxu0 0.0
        %3088 = vmatpush1.msra.mxu0 %v2363
        %3089 = vmatprep.subr.mxu0 0.0
        %3090 = vmatpush1.msra.mxu0 %v2364
        %3091 = vmatprep.subr.mxu0 0.0
        %3092 = vmatpush1.msra.mxu0 %v2365
        %3093 = vmatprep.subr.mxu0 0.0
        %3094 = vmatpush1.msra.mxu0 %v2366
        %3095 = vmatprep.subr.mxu0 0.0
        %3096 = vmatpush1.msra.mxu0 %v2367
        %3097 = vmatprep.subr.mxu0 0.0
        %3098 = vmatpush1.msra.mxu0 %v2368
        %3099 = vmatprep.subr.mxu0 0.0
        %3100 = vmatpush1.msra.mxu0 %v2369
        %3101 = vmatprep.subr.mxu0 0.0
        %3102 = vmatpush1.msra.mxu0 %v2370
        %3103 = vmatprep.subr.mxu0 0.0
        %3104 = vmatpush1.msra.mxu0 %v2371
        %3105 = vmatprep.subr.mxu0 0.0
        %3106 = vmatpush1.msra.mxu0 %v2372
        %3107 = vmatprep.subr.mxu0 0.0
        %3108 = vmatpush1.msra.mxu0 %v2373
        %3109 = vmatprep.subr.mxu0 0.0
        %3110 = vmatpush1.msra.mxu0 %v2374
        %3111 = vmatprep.subr.mxu0 0.0
        %3112 = vmatpush1.msra.mxu0 %v2375
        %3113 = vmatprep.subr.mxu0 0.0
        %3114 = vmatpush1.msra.mxu0 %v2376
        %3115 = vmatprep.subr.mxu0 0.0
        %3116 = vmatpush1.msra.mxu0 %v2377
        %3117 = vmatprep.subr.mxu0 0.0
        %3118 = vmatpush1.msra.mxu0 %v2378
        %3119 = vmatprep.subr.mxu0 0.0
        %3120 = vmatpush1.msra.mxu0 %v2379
        %3121 = vmatprep.subr.mxu0 0.0
        %3122 = vmatpush1.msra.mxu0 %v2380
        %3123 = vmatprep.subr.mxu0 0.0
        %3124 = vmatpush1.msra.mxu0 %v2381
        %3125 = vmatprep.subr.mxu0 0.0
        %3126 = vmatpush1.msra.mxu0 %v2382
        %3127 = vmatprep.subr.mxu0 0.0
        %3128 = vmatpush1.msra.mxu0 %v2383
        %3129 = vmatprep.subr.mxu0 0.0
        %3130 = vmatpush1.msra.mxu0 %v2384
        %3131 = vmatprep.subr.mxu0 0.0
        %3132 = vmatpush1.msra.mxu0 %v2385
        %3133 = vmatprep.subr.mxu0 0.0
        %3134 = vmatpush1.msra.mxu0 %v2386
        %3135 = vmatprep.subr.mxu0 0.0
        %3136 = vmatpush1.msra.mxu0 %v2387
        %3137 = vmatprep.subr.mxu0 0.0
        %3138 = vmatpush1.msra.mxu0 %v2388
        %3139 = vmatprep.subr.mxu0 0.0
        %3140 = vmatpush1.msra.mxu0 %v2389
        %3141 = vmatprep.subr.mxu0 0.0
        %3142 = vmatpush1.msra.mxu0 %v2390
        %3143 = vmatprep.subr.mxu0 0.0
        %3144 = vmatpush1.msra.mxu0 %v2391
        %3145 = vmatprep.subr.mxu0 0.0
        %3146 = vmatpush1.msra.mxu0 %v2392
        %3147 = vmatprep.subr.mxu0 0.0
        %3148 = vmatpush1.msra.mxu0 %v2393
        %3149 = vmatprep.mubr.f32.mxu0 %v2202
        %3150 = vmatmul.mubr.f32.gmra.mrb[0].mxu0 %v2170
        %v3151 = vpop.f32.mrb[0].mxu0
        %v3152 = vadd.f32 %v2927, %v3151
        %v3153 = vpop.f32.mrb[0].mxu0
        %3154 = vmatprep.mubr.f32.mxu0 %v2203
        %3155 = vmatmul.mubr.f32.gmra.mrb[0].mxu0 %v2171
        %v3156 = vpop.f32.mrb[0].mxu0
        %v3157 = vadd.f32 %v2932, %v3156
        %v3158 = vpop.f32.mrb[0].mxu0
        %3159 = vmatprep.mubr.f32.mxu0 %v2204
        %3160 = vmatmul.mubr.f32.gmra.mrb[0].mxu0 %v2172
        %v3161 = vpop.f32.mrb[0].mxu0
        %v3162 = vadd.f32 %v2937, %v3161
        %v3163 = vpop.f32.mrb[0].mxu0
        %3164 = vmatprep.mubr.f32.mxu0 %v2205
        %3165 = vmatmul.mubr.f32.gmra.mrb[0].mxu0 %v2173
        %v3166 = vpop.f32.mrb[0].mxu0
        %v3167 = vadd.f32 %v2942, %v3166
        %v3168 = vpop.f32.mrb[0].mxu0
        %3169 = vmatprep.mubr.f32.mxu0 %v2206
        %3170 = vmatmul.mubr.f32.gmra.mrb[0].mxu0 %v2174
        %v3171 = vpop.f32.mrb[0].mxu0
        %v3172 = vadd.f32 %v2947, %v3171
        %v3173 = vpop.f32.mrb[0].mxu0
        %3174 = vmatprep.mubr.f32.mxu0 %v2207
        %3175 = vmatmul.mubr.f32.gmra.mrb[0].mxu0 %v2175
        %v3176 = vpop.f32.mrb[0].mxu0
        %v3177 = vadd.f32 %v2952, %v3176
        %v3178 = vpop.f32.mrb[0].mxu0
        %3179 = vmatprep.mubr.f32.mxu0 %v2208
        %3180 = vmatmul.mubr.f32.gmra.mrb[0].mxu0 %v2176
        %v3181 = vpop.f32.mrb[0].mxu0
        %v3182 = vadd.f32 %v2957, %v3181
        %v3183 = vpop.f32.mrb[0].mxu0
        %3184 = vmatprep.mubr.f32.mxu0 %v2209
        %3185 = vmatmul.mubr.f32.gmra.mrb[0].mxu0 %v2177
        %v3186 = vpop.f32.mrb[0].mxu0
        %v3187 = vadd.f32 %v2962, %v3186
        %v3188 = vpop.f32.mrb[0].mxu0
        %3189 = vmatprep.mubr.f32.mxu0 %v2210
        %3190 = vmatmul.mubr.f32.gmra.mrb[0].mxu0 %v2178
        %v3191 = vpop.f32.mrb[0].mxu0
        %v3192 = vadd.f32 %v2967, %v3191
        %v3193 = vpop.f32.mrb[0].mxu0
        %3194 = vmatprep.mubr.f32.mxu0 %v2211
        %3195 = vmatmul.mubr.f32.gmra.mrb[0].mxu0 %v2179
        %v3196 = vpop.f32.mrb[0].mxu0
        %v3197 = vadd.f32 %v2972, %v3196
        %v3198 = vpop.f32.mrb[0].mxu0
        %3199 = vmatprep.mubr.f32.mxu0 %v2212
        %3200 = vmatmul.mubr.f32.gmra.mrb[0].mxu0 %v2180
        %v3201 = vpop.f32.mrb[0].mxu0
        %v3202 = vadd.f32 %v2977, %v3201
        %v3203 = vpop.f32.mrb[0].mxu0
        %3204 = vmatprep.mubr.f32.mxu0 %v2213
        %3205 = vmatmul.mubr.f32.gmra.mrb[0].mxu0 %v2181
        %v3206 = vpop.f32.mrb[0].mxu0
        %v3207 = vadd.f32 %v2982, %v3206
        %v3208 = vpop.f32.mrb[0].mxu0
        %3209 = vmatprep.mubr.f32.mxu0 %v2214
        %3210 = vmatmul.mubr.f32.gmra.mrb[0].mxu0 %v2182
        %v3211 = vpop.f32.mrb[0].mxu0
        %v3212 = vadd.f32 %v2987, %v3211
        %v3213 = vpop.f32.mrb[0].mxu0
        %3214 = vmatprep.mubr.f32.mxu0 %v2215
        %3215 = vmatmul.mubr.f32.gmra.mrb[0].mxu0 %v2183
        %v3216 = vpop.f32.mrb[0].mxu0
        %v3217 = vadd.f32 %v2992, %v3216
        %v3218 = vpop.f32.mrb[0].mxu0
        %3219 = vmatprep.mubr.f32.mxu0 %v2216
        %3220 = vmatmul.mubr.f32.gmra.mrb[0].mxu0 %v2184
        %v3221 = vpop.f32.mrb[0].mxu0
        %v3222 = vadd.f32 %v2997, %v3221
        %v3223 = vpop.f32.mrb[0].mxu0
        %3224 = vmatprep.mubr.f32.mxu0 %v2217
        %3225 = vmatmul.mubr.f32.gmra.mrb[0].mxu0 %v2185
        %v3226 = vpop.f32.mrb[0].mxu0
        %v3227 = vadd.f32 %v3002, %v3226
        %v3228 = vpop.f32.mrb[0].mxu0
        %3229 = vmatprep.mubr.f32.mxu0 %v2218
        %3230 = vmatmul.mubr.f32.gmra.mrb[0].mxu0 %v2186
        %v3231 = vpop.f32.mrb[0].mxu0
        %v3232 = vadd.f32 %v3007, %v3231
        %v3233 = vpop.f32.mrb[0].mxu0
        %3234 = vmatprep.mubr.f32.mxu0 %v2219
        %3235 = vmatmul.mubr.f32.gmra.mrb[0].mxu0 %v2187
        %v3236 = vpop.f32.mrb[0].mxu0
        %v3237 = vadd.f32 %v3012, %v3236
        %v3238 = vpop.f32.mrb[0].mxu0
        %3239 = vmatprep.mubr.f32.mxu0 %v2220
        %3240 = vmatmul.mubr.f32.gmra.mrb[0].mxu0 %v2188
        %v3241 = vpop.f32.mrb[0].mxu0
        %v3242 = vadd.f32 %v3017, %v3241
        %v3243 = vpop.f32.mrb[0].mxu0
        %3244 = vmatprep.mubr.f32.mxu0 %v2221
        %3245 = vmatmul.mubr.f32.gmra.mrb[0].mxu0 %v2189
        %v3246 = vpop.f32.mrb[0].mxu0
        %v3247 = vadd.f32 %v3022, %v3246
        %v3248 = vpop.f32.mrb[0].mxu0
        %3249 = vmatprep.mubr.f32.mxu0 %v2222
        %3250 = vmatmul.mubr.f32.gmra.mrb[0].mxu0 %v2190
        %v3251 = vpop.f32.mrb[0].mxu0
        %v3252 = vadd.f32 %v3027, %v3251
        %v3253 = vpop.f32.mrb[0].mxu0
        %3254 = vmatprep.mubr.f32.mxu0 %v2223
        %3255 = vmatmul.mubr.f32.gmra.mrb[0].mxu0 %v2191
        %v3256 = vpop.f32.mrb[0].mxu0
        %v3257 = vadd.f32 %v3032, %v3256
        %v3258 = vpop.f32.mrb[0].mxu0
        %3259 = vmatprep.mubr.f32.mxu0 %v2224
        %3260 = vmatmul.mubr.f32.gmra.mrb[0].mxu0 %v2192
        %v3261 = vpop.f32.mrb[0].mxu0
        %v3262 = vadd.f32 %v3037, %v3261
        %v3263 = vpop.f32.mrb[0].mxu0
        %3264 = vmatprep.mubr.f32.mxu0 %v2225
        %3265 = vmatmul.mubr.f32.gmra.mrb[0].mxu0 %v2193
        %v3266 = vpop.f32.mrb[0].mxu0
        %v3267 = vadd.f32 %v3042, %v3266
        %v3268 = vpop.f32.mrb[0].mxu0
        %3269 = vmatprep.mubr.f32.mxu0 %v2226
        %3270 = vmatmul.mubr.f32.gmra.mrb[0].mxu0 %v2194
        %v3271 = vpop.f32.mrb[0].mxu0
        %v3272 = vadd.f32 %v3047, %v3271
        %v3273 = vpop.f32.mrb[0].mxu0
        %3274 = vmatprep.mubr.f32.mxu0 %v2227
        %3275 = vmatmul.mubr.f32.gmra.mrb[0].mxu0 %v2195
        %v3276 = vpop.f32.mrb[0].mxu0
        %v3277 = vadd.f32 %v3052, %v3276
        %v3278 = vpop.f32.mrb[0].mxu0
        %3279 = vmatprep.mubr.f32.mxu0 %v2228
        %3280 = vmatmul.mubr.f32.gmra.mrb[0].mxu0 %v2196
        %v3281 = vpop.f32.mrb[0].mxu0
        %v3282 = vadd.f32 %v3057, %v3281
        %v3283 = vpop.f32.mrb[0].mxu0
        %3284 = vmatprep.mubr.f32.mxu0 %v2229
        %3285 = vmatmul.mubr.f32.gmra.mrb[0].mxu0 %v2197
        %v3286 = vpop.f32.mrb[0].mxu0
        %v3287 = vadd.f32 %v3062, %v3286
        %v3288 = vpop.f32.mrb[0].mxu0
        %3289 = vmatprep.mubr.f32.mxu0 %v2230
        %3290 = vmatmul.mubr.f32.gmra.mrb[0].mxu0 %v2198
        %v3291 = vpop.f32.mrb[0].mxu0
        %v3292 = vadd.f32 %v3067, %v3291
        %v3293 = vpop.f32.mrb[0].mxu0
        %3294 = vmatprep.mubr.f32.mxu0 %v2231
        %3295 = vmatmul.mubr.f32.gmra.mrb[0].mxu0 %v2199
        %v3296 = vpop.f32.mrb[0].mxu0
        %v3297 = vadd.f32 %v3072, %v3296
        %v3298 = vpop.f32.mrb[0].mxu0
        %3299 = vmatprep.mubr.f32.mxu0 %v2232
        %3300 = vmatmul.mubr.f32.gmra.mrb[0].mxu0 %v2200
        %v3301 = vpop.f32.mrb[0].mxu0
        %v3302 = vadd.f32 %v3077, %v3301
        %v3303 = vpop.f32.mrb[0].mxu0
        %3304 = vmatprep.mubr.f32.mxu0 %v2233
        %3305 = vmatmul.mubr.f32.gmra.mrb[0].mxu0 %v2201
        %v3306 = vpop.f32.mrb[0].mxu0
        %v3307 = vadd.f32 %v3082, %v3306
        %v3308 = vpop.f32.mrb[0].mxu0
        %3309 = vdwg.mxu0
        %3310 = vmatprep.subr.mxu0 0.0
        %3311 = vmatpush1.msra.mxu0 %v2394
        %3312 = vmatprep.subr.mxu0 0.0
        %3313 = vmatpush1.msra.mxu0 %v2395
        %3314 = vmatprep.subr.mxu0 0.0
        %3315 = vmatpush1.msra.mxu0 %v2396
        %3316 = vmatprep.subr.mxu0 0.0
        %3317 = vmatpush1.msra.mxu0 %v2397
        %3318 = vmatprep.subr.mxu0 0.0
        %3319 = vmatpush1.msra.mxu0 %v2398
        %3320 = vmatprep.subr.mxu0 0.0
        %3321 = vmatpush1.msra.mxu0 %v2399
        %3322 = vmatprep.subr.mxu0 0.0
        %3323 = vmatpush1.msra.mxu0 %v2400
        %3324 = vmatprep.subr.mxu0 0.0
        %3325 = vmatpush1.msra.mxu0 %v2401
        %3326 = vmatprep.subr.mxu0 0.0
        %3327 = vmatpush1.msra.mxu0 %v2402
        %3328 = vmatprep.subr.mxu0 0.0
        %3329 = vmatpush1.msra.mxu0 %v2403
        %3330 = vmatprep.subr.mxu0 0.0
        %3331 = vmatpush1.msra.mxu0 %v2404
        %3332 = vmatprep.subr.mxu0 0.0
        %3333 = vmatpush1.msra.mxu0 %v2405
        %3334 = vmatprep.subr.mxu0 0.0
        %3335 = vmatpush1.msra.mxu0 %v2406
        %3336 = vmatprep.subr.mxu0 0.0
        %3337 = vmatpush1.msra.mxu0 %v2407
        %3338 = vmatprep.subr.mxu0 0.0
        %3339 = vmatpush1.msra.mxu0 %v2408
        %3340 = vmatprep.subr.mxu0 0.0
        %3341 = vmatpush1.msra.mxu0 %v2409
        %3342 = vmatprep.subr.mxu0 0.0
        %3343 = vmatpush1.msra.mxu0 0.0
        %3344 = vmatprep.subr.mxu0 0.0
        %3345 = vmatpush1.msra.mxu0 0.0
        %3346 = vmatprep.subr.mxu0 0.0
        %3347 = vmatpush1.msra.mxu0 0.0
        %3348 = vmatprep.subr.mxu0 0.0
        %3349 = vmatpush1.msra.mxu0 0.0
        %3350 = vmatprep.subr.mxu0 0.0
        %3351 = vmatpush1.msra.mxu0 0.0
        %3352 = vmatprep.subr.mxu0 0.0
        %3353 = vmatpush1.msra.mxu0 0.0
        %3354 = vmatprep.subr.mxu0 0.0
        %3355 = vmatpush1.msra.mxu0 0.0
        %3356 = vmatprep.subr.mxu0 0.0
        %3357 = vmatpush1.msra.mxu0 0.0
        %3358 = vmatprep.subr.mxu0 0.0
        %3359 = vmatpush1.msra.mxu0 0.0
        %3360 = vmatprep.subr.mxu0 0.0
        %3361 = vmatpush1.msra.mxu0 0.0
        %3362 = vmatprep.subr.mxu0 0.0
        %3363 = vmatpush1.msra.mxu0 0.0
        %3364 = vmatprep.subr.mxu0 0.0
        %3365 = vmatpush1.msra.mxu0 0.0
        %3366 = vmatprep.subr.mxu0 0.0
        %3367 = vmatpush1.msra.mxu0 0.0
        %3368 = vmatprep.subr.mxu0 0.0
        %3369 = vmatpush1.msra.mxu0 0.0
        %3370 = vmatprep.subr.mxu0 0.0
        %3371 = vmatpush1.msra.mxu0 0.0
        %3372 = vmatprep.subr.mxu0 0.0
        %3373 = vmatpush1.msra.mxu0 0.0
        %3374 = vmatprep.mubr.f32.mxu0 0.0
        %3375 = vmatmul.mubr.f32.gmra.mrb[0].mxu0 %v2234
        %v3376 = vpop.f32.mrb[0].mxu0
        %v3377 = vadd.f32 %v3152, %v3376
        %v3378 = vpop.f32.mrb[0].mxu0
        %3379 = vmatprep.mubr.f32.mxu0 0.0
        %3380 = vmatmul.mubr.f32.gmra.mrb[0].mxu0 %v2235
        %v3381 = vpop.f32.mrb[0].mxu0
        %v3382 = vadd.f32 %v3157, %v3381
        %v3383 = vpop.f32.mrb[0].mxu0
        %3384 = vmatprep.mubr.f32.mxu0 0.0
        %3385 = vmatmul.mubr.f32.gmra.mrb[0].mxu0 %v2236
        %v3386 = vpop.f32.mrb[0].mxu0
        %v3387 = vadd.f32 %v3162, %v3386
        %v3388 = vpop.f32.mrb[0].mxu0
        %3389 = vmatprep.mubr.f32.mxu0 0.0
        %3390 = vmatmul.mubr.f32.gmra.mrb[0].mxu0 %v2237
        %v3391 = vpop.f32.mrb[0].mxu0
        %v3392 = vadd.f32 %v3167, %v3391
        %v3393 = vpop.f32.mrb[0].mxu0
        %3394 = vmatprep.mubr.f32.mxu0 0.0
        %3395 = vmatmul.mubr.f32.gmra.mrb[0].mxu0 %v2238
        %v3396 = vpop.f32.mrb[0].mxu0
        %v3397 = vadd.f32 %v3172, %v3396
        %v3398 = vpop.f32.mrb[0].mxu0
        %3399 = vmatprep.mubr.f32.mxu0 0.0
        %3400 = vmatmul.mubr.f32.gmra.mrb[0].mxu0 %v2239
        %v3401 = vpop.f32.mrb[0].mxu0
        %v3402 = vadd.f32 %v3177, %v3401
        %v3403 = vpop.f32.mrb[0].mxu0
        %3404 = vmatprep.mubr.f32.mxu0 0.0
        %3405 = vmatmul.mubr.f32.gmra.mrb[0].mxu0 %v2240
        %v3406 = vpop.f32.mrb[0].mxu0
        %v3407 = vadd.f32 %v3182, %v3406
        %v3408 = vpop.f32.mrb[0].mxu0
        %3409 = vmatprep.mubr.f32.mxu0 0.0
        %3410 = vmatmul.mubr.f32.gmra.mrb[0].mxu0 %v2241
        %v3411 = vpop.f32.mrb[0].mxu0
        %v3412 = vadd.f32 %v3187, %v3411
        %v3413 = vpop.f32.mrb[0].mxu0
        %3414 = vmatprep.mubr.f32.mxu0 0.0
        %3415 = vmatmul.mubr.f32.gmra.mrb[0].mxu0 %v2242
        %v3416 = vpop.f32.mrb[0].mxu0
        %v3417 = vadd.f32 %v3192, %v3416
        %v3418 = vpop.f32.mrb[0].mxu0
        %3419 = vmatprep.mubr.f32.mxu0 0.0
        %3420 = vmatmul.mubr.f32.gmra.mrb[0].mxu0 %v2243
        %v3421 = vpop.f32.mrb[0].mxu0
        %v3422 = vadd.f32 %v3197, %v3421
        %v3423 = vpop.f32.mrb[0].mxu0
        %3424 = vmatprep.mubr.f32.mxu0 0.0
        %3425 = vmatmul.mubr.f32.gmra.mrb[0].mxu0 %v2244
        %v3426 = vpop.f32.mrb[0].mxu0
        %v3427 = vadd.f32 %v3202, %v3426
        %v3428 = vpop.f32.mrb[0].mxu0
        %3429 = vmatprep.mubr.f32.mxu0 0.0
        %3430 = vmatmul.mubr.f32.gmra.mrb[0].mxu0 %v2245
        %v3431 = vpop.f32.mrb[0].mxu0
        %v3432 = vadd.f32 %v3207, %v3431
        %v3433 = vpop.f32.mrb[0].mxu0
        %3434 = vmatprep.mubr.f32.mxu0 0.0
        %3435 = vmatmul.mubr.f32.gmra.mrb[0].mxu0 %v2246
        %v3436 = vpop.f32.mrb[0].mxu0
        %v3437 = vadd.f32 %v3212, %v3436
        %v3438 = vpop.f32.mrb[0].mxu0
        %3439 = vmatprep.mubr.f32.mxu0 0.0
        %3440 = vmatmul.mubr.f32.gmra.mrb[0].mxu0 %v2247
        %v3441 = vpop.f32.mrb[0].mxu0
        %v3442 = vadd.f32 %v3217, %v3441
        %v3443 = vpop.f32.mrb[0].mxu0
        %3444 = vmatprep.mubr.f32.mxu0 0.0
        %3445 = vmatmul.mubr.f32.gmra.mrb[0].mxu0 %v2248
        %v3446 = vpop.f32.mrb[0].mxu0
        %v3447 = vadd.f32 %v3222, %v3446
        %v3448 = vpop.f32.mrb[0].mxu0
        %3449 = vmatprep.mubr.f32.mxu0 0.0
        %3450 = vmatmul.mubr.f32.gmra.mrb[0].mxu0 %v2249
        %v3451 = vpop.f32.mrb[0].mxu0
        %v3452 = vadd.f32 %v3227, %v3451
        %v3453 = vpop.f32.mrb[0].mxu0
        %3454 = vmatprep.mubr.f32.mxu0 0.0
        %3455 = vmatmul.mubr.f32.gmra.mrb[0].mxu0 %v2250
        %v3456 = vpop.f32.mrb[0].mxu0
        %v3457 = vadd.f32 %v3232, %v3456
        %v3458 = vpop.f32.mrb[0].mxu0
        %3459 = vmatprep.mubr.f32.mxu0 0.0
        %3460 = vmatmul.mubr.f32.gmra.mrb[0].mxu0 %v2251
        %v3461 = vpop.f32.mrb[0].mxu0
        %v3462 = vadd.f32 %v3237, %v3461
        %v3463 = vpop.f32.mrb[0].mxu0
        %3464 = vmatprep.mubr.f32.mxu0 0.0
        %3465 = vmatmul.mubr.f32.gmra.mrb[0].mxu0 %v2252
        %v3466 = vpop.f32.mrb[0].mxu0
        %v3467 = vadd.f32 %v3242, %v3466
        %v3468 = vpop.f32.mrb[0].mxu0
        %3469 = vmatprep.mubr.f32.mxu0 0.0
        %3470 = vmatmul.mubr.f32.gmra.mrb[0].mxu0 %v2253
        %v3471 = vpop.f32.mrb[0].mxu0
        %v3472 = vadd.f32 %v3247, %v3471
        %v3473 = vpop.f32.mrb[0].mxu0
        %3474 = vmatprep.mubr.f32.mxu0 0.0
        %3475 = vmatmul.mubr.f32.gmra.mrb[0].mxu0 %v2254
        %v3476 = vpop.f32.mrb[0].mxu0
        %v3477 = vadd.f32 %v3252, %v3476
        %v3478 = vpop.f32.mrb[0].mxu0
        %3479 = vmatprep.mubr.f32.mxu0 0.0
        %3480 = vmatmul.mubr.f32.gmra.mrb[0].mxu0 %v2255
        %v3481 = vpop.f32.mrb[0].mxu0
        %v3482 = vadd.f32 %v3257, %v3481
        %v3483 = vpop.f32.mrb[0].mxu0
        %3484 = vmatprep.mubr.f32.mxu0 0.0
        %3485 = vmatmul.mubr.f32.gmra.mrb[0].mxu0 %v2256
        %v3486 = vpop.f32.mrb[0].mxu0
        %v3487 = vadd.f32 %v3262, %v3486
        %v3488 = vpop.f32.mrb[0].mxu0
        %3489 = vmatprep.mubr.f32.mxu0 0.0
        %3490 = vmatmul.mubr.f32.gmra.mrb[0].mxu0 %v2257
        %v3491 = vpop.f32.mrb[0].mxu0
        %v3492 = vadd.f32 %v3267, %v3491
        %v3493 = vpop.f32.mrb[0].mxu0
        %3494 = vmatprep.mubr.f32.mxu0 0.0
        %3495 = vmatmul.mubr.f32.gmra.mrb[0].mxu0 %v2258
        %v3496 = vpop.f32.mrb[0].mxu0
        %v3497 = vadd.f32 %v3272, %v3496
        %v3498 = vpop.f32.mrb[0].mxu0
        %3499 = vmatprep.mubr.f32.mxu0 0.0
        %3500 = vmatmul.mubr.f32.gmra.mrb[0].mxu0 %v2259
        %v3501 = vpop.f32.mrb[0].mxu0
        %v3502 = vadd.f32 %v3277, %v3501
        %v3503 = vpop.f32.mrb[0].mxu0
        %3504 = vmatprep.mubr.f32.mxu0 0.0
        %3505 = vmatmul.mubr.f32.gmra.mrb[0].mxu0 %v2260
        %v3506 = vpop.f32.mrb[0].mxu0
        %v3507 = vadd.f32 %v3282, %v3506
        %v3508 = vpop.f32.mrb[0].mxu0
        %3509 = vmatprep.mubr.f32.mxu0 0.0
        %3510 = vmatmul.mubr.f32.gmra.mrb[0].mxu0 %v2261
        %v3511 = vpop.f32.mrb[0].mxu0
        %v3512 = vadd.f32 %v3287, %v3511
        %v3513 = vpop.f32.mrb[0].mxu0
        %3514 = vmatprep.mubr.f32.mxu0 0.0
        %3515 = vmatmul.mubr.f32.gmra.mrb[0].mxu0 %v2262
        %v3516 = vpop.f32.mrb[0].mxu0
        %v3517 = vadd.f32 %v3292, %v3516
        %v3518 = vpop.f32.mrb[0].mxu0
        %3519 = vmatprep.mubr.f32.mxu0 0.0
        %3520 = vmatmul.mubr.f32.gmra.mrb[0].mxu0 %v2263
        %v3521 = vpop.f32.mrb[0].mxu0
        %v3522 = vadd.f32 %v3297, %v3521
        %v3523 = vpop.f32.mrb[0].mxu0
        %3524 = vmatprep.mubr.f32.mxu0 0.0
        %3525 = vmatmul.mubr.f32.gmra.mrb[0].mxu0 %v2264
        %v3526 = vpop.f32.mrb[0].mxu0
        %v3527 = vadd.f32 %v3302, %v3526
        %v3528 = vpop.f32.mrb[0].mxu0
        %3529 = vmatprep.mubr.f32.mxu0 0.0
        %3530 = vmatmul.mubr.f32.gmra.mrb[0].mxu0 %v2265
        %v3531 = vpop.f32.mrb[0].mxu0
        %v3532 = vadd.f32 %v3307, %v3531
        %v3533 = vpop.f32.mrb[0].mxu0
        %3534 = vdwg.mxu0
        %s3535 = scalar_lea.vmem %s183, 24
        %v3536 = vld [vmem:[%s3535 + $0x1] sm:$0xff]
        %v3537 = vld [vmem:[%s3535 + $0x9] sm:$0xff]
        %v3538 = vld [vmem:[%s3535 + $0x19] sm:$0xff]
        %v3539 = vld [vmem:[%s3535 + $0x21] sm:$0xff]
        %v3540 = vld [vmem:[%s3535 + $0x31] sm:$0xff]
        %v3541 = vld [vmem:[%s3535 + $0x39] sm:$0xff]
        %v3542 = vld [vmem:[%s3535 + $0x49] sm:$0xff]
        %v3543 = vld [vmem:[%s3535 + $0x51] sm:$0xff]
        %v3544 = vld [vmem:[%s3535 + $0x61] sm:$0xff]
        %v3545 = vld [vmem:[%s3535 + $0x69] sm:$0xff]
        %v3546 = vld [vmem:[%s3535 + $0x79] sm:$0xff]
        %v3547 = vld [vmem:[%s3535 + $0x81] sm:$0xff]
        %v3548 = vld [vmem:[%s3535 + $0x91] sm:$0xff]
        %v3549 = vld [vmem:[%s3535 + $0x99] sm:$0xff]
        %v3550 = vld [vmem:[%s3535 + $0xa9] sm:$0xff]
        %v3551 = vld [vmem:[%s3535 + $0xb1] sm:$0xff]
        %v3552 = vld [vmem:[%s3535 + $0xc1] sm:$0xff]
        %v3553 = vld [vmem:[%s3535 + $0xc9] sm:$0xff]
        %v3554 = vld [vmem:[%s3535 + $0xd9] sm:$0xff]
        %v3555 = vld [vmem:[%s3535 + $0xe1] sm:$0xff]
        %v3556 = vld [vmem:[%s3535 + $0xf1] sm:$0xff]
        %v3557 = vld [vmem:[%s3535 + $0xf9] sm:$0xff]
        %v3558 = vld [vmem:[%s3535 + $0x109] sm:$0xff]
        %v3559 = vld [vmem:[%s3535 + $0x111] sm:$0xff]
        %v3560 = vld [vmem:[%s3535 + $0x121] sm:$0xff]
        %v3561 = vld [vmem:[%s3535 + $0x129] sm:$0xff]
        %v3562 = vld [vmem:[%s3535 + $0x139] sm:$0xff]
        %v3563 = vld [vmem:[%s3535 + $0x141] sm:$0xff]
        %v3564 = vld [vmem:[%s3535 + $0x151] sm:$0xff]
        %v3565 = vld [vmem:[%s3535 + $0x159] sm:$0xff]
        %v3566 = vld [vmem:[%s3535 + $0x169] sm:$0xff]
        %v3567 = vld [vmem:[%s3535 + $0x171] sm:$0xff]
        %v3568 = vadd.f32 %v3377, %v3536
        %v3569 = vadd.f32 %v3382, %v3537
        %v3570 = vadd.f32 %v3387, %v3538
        %v3571 = vadd.f32 %v3392, %v3539
        %v3572 = vadd.f32 %v3397, %v3540
        %v3573 = vadd.f32 %v3402, %v3541
        %v3574 = vadd.f32 %v3407, %v3542
        %v3575 = vadd.f32 %v3412, %v3543
        %v3576 = vadd.f32 %v3417, %v3544
        %v3577 = vadd.f32 %v3422, %v3545
        %v3578 = vadd.f32 %v3427, %v3546
        %v3579 = vadd.f32 %v3432, %v3547
        %v3580 = vadd.f32 %v3437, %v3548
        %v3581 = vadd.f32 %v3442, %v3549
        %v3582 = vadd.f32 %v3447, %v3550
        %v3583 = vadd.f32 %v3452, %v3551
        %v3584 = vadd.f32 %v3457, %v3552
        %v3585 = vadd.f32 %v3462, %v3553
        %v3586 = vadd.f32 %v3467, %v3554
        %v3587 = vadd.f32 %v3472, %v3555
        %v3588 = vadd.f32 %v3477, %v3556
        %v3589 = vadd.f32 %v3482, %v3557
        %v3590 = vadd.f32 %v3487, %v3558
        %v3591 = vadd.f32 %v3492, %v3559
        %v3592 = vadd.f32 %v3497, %v3560
        %v3593 = vadd.f32 %v3502, %v3561
        %v3594 = vadd.f32 %v3507, %v3562
        %v3595 = vadd.f32 %v3512, %v3563
        %v3596 = vadd.f32 %v3517, %v3564
        %v3597 = vadd.f32 %v3522, %v3565
        %v3598 = vadd.f32 %v3527, %v3566
        %v3599 = vadd.f32 %v3532, %v3567
        %3600 = vst [vmem:[%s178] sm:$0xff] %v3568
        %3601 = vst [vmem:[%s178 + $0x8] sm:$0xff] %v3569
        %3602 = vst [vmem:[%s178 + $0x10] sm:$0xff] %v3570
        %3603 = vst [vmem:[%s178 + $0x18] sm:$0xff] %v3571
        %3604 = vst [vmem:[%s178 + $0x20] sm:$0xff] %v3572
        %3605 = vst [vmem:[%s178 + $0x28] sm:$0xff] %v3573
        %3606 = vst [vmem:[%s178 + $0x30] sm:$0xff] %v3574
        %3607 = vst [vmem:[%s178 + $0x38] sm:$0xff] %v3575
        %3608 = vst [vmem:[%s178 + $0x40] sm:$0xff] %v3576
        %3609 = vst [vmem:[%s178 + $0x48] sm:$0xff] %v3577
        %3610 = vst [vmem:[%s178 + $0x50] sm:$0xff] %v3578
        %3611 = vst [vmem:[%s178 + $0x58] sm:$0xff] %v3579
        %3612 = vst [vmem:[%s178 + $0x60] sm:$0xff] %v3580
        %3613 = vst [vmem:[%s178 + $0x68] sm:$0xff] %v3581
        %3614 = vst [vmem:[%s178 + $0x70] sm:$0xff] %v3582
        %3615 = vst [vmem:[%s178 + $0x78] sm:$0xff] %v3583
        %3616 = vst [vmem:[%s178 + $0x80] sm:$0xff] %v3584
        %3617 = vst [vmem:[%s178 + $0x88] sm:$0xff] %v3585
        %3618 = vst [vmem:[%s178 + $0x90] sm:$0xff] %v3586
        %3619 = vst [vmem:[%s178 + $0x98] sm:$0xff] %v3587
        %3620 = vst [vmem:[%s178 + $0xa0] sm:$0xff] %v3588
        %3621 = vst [vmem:[%s178 + $0xa8] sm:$0xff] %v3589
        %3622 = vst [vmem:[%s178 + $0xb0] sm:$0xff] %v3590
        %3623 = vst [vmem:[%s178 + $0xb8] sm:$0xff] %v3591
        %3624 = vst [vmem:[%s178 + $0xc0] sm:$0xff] %v3592
        %3625 = vst [vmem:[%s178 + $0xc8] sm:$0xff] %v3593
        %3626 = vst [vmem:[%s178 + $0xd0] sm:$0xff] %v3594
        %3627 = vst [vmem:[%s178 + $0xd8] sm:$0xff] %v3595
        %3628 = vst [vmem:[%s178 + $0xe0] sm:$0xff] %v3596
        %3629 = vst [vmem:[%s178 + $0xe8] sm:$0xff] %v3597
        %3630 = vst [vmem:[%s178 + $0xf0] sm:$0xff] %v3598
        %3631 = vst [vmem:[%s178 + $0xf8] sm:$0xff] %v3599
        %s3632 = sand.u32 %s94, 1
        %s3633 = scalar_lea.sflag [#allocation5], %s3632
        %s3634 = sand.u32 %s94, 1
        %s3635 = smul.addr %s3634, 256
        %s3636 = scalar_lea.vmem [#allocation6], %s3635
        // Predicated region
        $region37: #{tpu_custom_call.1} parent=31 // pred_check
          %p3637 = pneg %p104
        $region38: #{tpu_custom_call.1} parent=31 // pred_check_branch
          %3639 = sbr.rel (%p3637) target = $region40
        $region39: #{tpu_custom_call.1} parent=31 // pred_region
          %s3641 = ssub.s32 4096, 4096
          %3642 = vsyncadd %s3633, %s3641
          %s3643 = smul.addr %s18, 32
          %s3644 = smul.addr %s3643, 128
          %s3645 = scalar_lea.hbm %s3, %s3644
          %s3646 = sshll.u32 %s3636, 4
          %s3647 = int_to_ptr.vmem [resolvable:$true] %s3646
          %3652 = dma.vmem_to_hbm [thread:$0]  %s3647, 4096, %s3645, %s3633, 128, 128, 8
        $region40: #{tpu_custom_call.1} parent=31 // pred_fallthru
          _
      $region32: #{tpu_custom_call.1} parent=5 // pred_fallthru
        _
      %p3653 = scmp.le.s32.totalorder 2, %s13
      // Predicated region
      $region41: #{tpu_custom_call.1} parent=5 // pred_check
        %p3654 = pneg %p3653
      $region42: #{tpu_custom_call.1} parent=5 // pred_check_branch
        %3656 = sbr.rel (%p3654) target = $region44
      $region43: #{tpu_custom_call.1} parent=5 // pred_region
        %s3657 = ssub.s32 %s13, 2
        // Predicated region
        $region45: #{tpu_custom_call.1} parent=43 // pred_check
          %p3658 = pneg %p110
        $region46: #{tpu_custom_call.1} parent=43 // pred_check_branch
          %3660 = sbr.rel (%p3658) target = $region48
        $region47: #{tpu_custom_call.1} parent=43 // pred_region
          %s3661 = sand.u32 %s95, 1
          %s3662 = scalar_lea.sflag [#allocation5], %s3661
          %s3663 = sand.u32 %s95, 1
          %s3664 = smul.addr %s3663, 256
          %s3665 = scalar_lea.vmem [#allocation6], %s3664
          %3666 = dma.done %s3662, 4096
        $region48: #{tpu_custom_call.1} parent=43 // pred_fallthru
          _
      $region44: #{tpu_custom_call.1} parent=5 // pred_fallthru
        _
    $region6: #{tpu_custom_call.1} parent=1 // loop_footer
      %s17 = sadd.s32 1, %s13
    $region7: #{tpu_custom_call.1} parent=1 // loop_footer_branch
      %12 = sbr.rel target = $region3
    $region8: #{tpu_custom_call.1} parent=1 // loop_exit
      _
    %3667 = vsyncpa [#allocation4], 1
    %s3668 = scalar_lea.sflag [#allocation4], 1
    %3669 = vsyncpa %s3668, 1
    %3670 = vsyncpa [#allocation5], 1
    %s3671 = scalar_lea.sflag [#allocation5], 1
    %3672 = vsyncpa %s3671, 1

</llo_original>
